<compile_context>
chip_gen: v6e
topology: v6e:2x2x1
jax: 0.10.0
libtpu: 0.0.40
codegen_flags: <defaults>
</compile_context>

<pallas_src>
import numpy as np
import jax
import jax.numpy as jnp
from jax.experimental import pallas as pl
from jax.experimental.pallas import tpu as pltpu


def make_kernel(TB, H, W):
    """Fused forward kernel for one TB-sample batch tile.

    Lane convention: lane = (spatial index on the current grid) * TB + sample.
    Conv taps / pool windows are lane shifts by multiples of TB; only columns
    belonging to valid output positions are consumed downstream, so the garbage
    computed at out-of-range positions is never read.
    """
    H1, W1 = H - 2, W - 2            # conv1 output spatial (26, 26)
    P1H, P1W = H1 // 3, W1 // 3      # pool1 output spatial (8, 8)  (floor, as PyTorch)
    H2, W2 = P1H - 2, P1W - 2        # conv2 output spatial (6, 6)
    P2H, P2W = H2 // 3, W2 // 3      # pool2 output spatial (2, 2)

    L0 = H * W * TB                                   # stage-A lane width
    SH1 = [(ky * W + kx) * TB for ky in range(3) for kx in range(3)]
    N1 = L0 - SH1[-1]                                 # conv1 output width
    SP1 = [(r * W + c) * TB for r in range(3) for c in range(3)]
    N2 = N1 - SP1[-1]                                 # pool1 output width
    CH1 = [(3 * p * W + 3 * q) * TB for p in range(P1H) for q in range(P1W)]
    LC = P1H * P1W * TB                               # compact stage-B lane width
    SH2 = [(ky * P1W + kx) * TB for ky in range(3) for kx in range(3)]
    N3 = LC - SH2[-1]                                 # conv2 output width
    SP2 = [(r * P1W + c) * TB for r in range(3) for c in range(3)]
    N4 = N3 - SP2[-1]                                 # pool2 output width
    CH2 = [(3 * p * P1W + 3 * q) * TB for p in range(P2H) for q in range(P2W)]

    def kernel(x_ref, w1_ref, b1_ref, w2_ref, b2_ref,
               wf1_ref, bf1_ref, wf2_ref, bf2_ref, wf3_ref, bf3_ref,
               out_ref):
        f32, bf16 = jnp.float32, jnp.bfloat16
        x = x_ref[...].astype(f32)                               # (Cin, L0)

        # ---- conv1 + bias + ReLU: im2col via 9 lane shifts, ONE K=27 matmul ----
        xs1 = jnp.concatenate([x[:, s:s + N1] for s in SH1], axis=0)
        y1 = jnp.dot(w1_ref[...], xs1.astype(bf16), preferred_element_type=f32)
        y1 = jnp.maximum(y1 + b1_ref[...], 0.0)                  # (C1, N1)

        # ---- maxpool 3x3 / stride 3: elementwise max of 9 lane-shifted views ----
        a1 = y1[:, :N2]
        for s in SP1[1:]:
            a1 = jnp.maximum(a1, y1[:, s:s + N2])                # (C1, N2)

        # ---- compact to the dense pooled grid: 64 contiguous TB-wide slices ----
        a1c = jnp.concatenate([a1[:, o:o + TB] for o in CH1], axis=1)   # (C1, LC)

        # ---- conv2 + bias + ReLU: ONE K=72 matmul on the compact grid ----
        xs2 = jnp.concatenate([a1c[:, s:s + N3] for s in SH2], axis=0)
        y2 = jnp.dot(w2_ref[...], xs2.astype(bf16), preferred_element_type=f32)
        y2 = jnp.maximum(y2 + b2_ref[...], 0.0)                  # (C2, N3)

        # ---- maxpool 3x3 / stride 3 ----
        a2 = y2[:, :N4]
        for s in SP2[1:]:
            a2 = jnp.maximum(a2, y2[:, s:s + N4])                # (C2, N4)

        # ---- flatten: 4 contiguous TB-wide chunks -> (feat, TB), one tiny
        #      transpose to batch-major (fc1 weights pre-permuted to match). ----
        fcin = jnp.concatenate([a2[:, o:o + TB] for o in CH2], axis=0)  # (feat, TB)
        fcin = jnp.transpose(fcin).astype(bf16)                         # (TB, feat)

        # ---- FC stack (batch-major, bf16 operands, f32 accumulation). ----
        # TODO(synk): Dropout(p=0.3) is identity in eval mode; a training-mode
        # kernel would mask with pltpu.prng_seed / pltpu.prng_random_bits here.
        h = jnp.maximum(
            jnp.dot(fcin, wf1_ref[...], preferred_element_type=f32) + bf1_ref[...],
            0.0)
        h = jnp.maximum(
            jnp.dot(h.astype(bf16), wf2_ref[...], preferred_element_type=f32)
            + bf2_ref[...], 0.0)
        logits = (jnp.dot(h.astype(bf16), wf3_ref[...], preferred_element_type=f32)
                  + bf3_ref[...])
        out_ref[...] = logits.astype(out_ref.dtype)              # (TB, NCP) lane-dense

    return kernel


def net_forward(x_nchw, params):
    """Forward pass matching PyTorch Net.forward (eval mode) on NCHW input."""
    B, Cin, H, W = x_nchw.shape
    num_class = params["fc3_w"].shape[0]
    C1 = params["conv1_w"].shape[0]
    C2 = params["conv2_w"].shape[0]
    F1 = params["fc1_w"].shape[0]
    F2 = params["fc2_w"].shape[0]

    H1, W1 = H - 2, W - 2
    P1H, P1W = H1 // 3, W1 // 3
    H2, W2 = P1H - 2, P1W - 2
    P2H, P2W = H2 // 3, W2 // 3
    feat = P2H * P2W * C2
    assert feat == params["fc1_w"].shape[1], "fc1 in_features mismatch"

    # Batch tile: multiple of 8 (dense sublane blocks for the (TB, 128) output),
    # capped at 32 (VMEM headroom on v5e/v7x), and >= 2 grid steps once B >= 16.
    TB = min(32, max(8, 8 * ((B + 15) // 16)))
    Bp = ((B + TB - 1) // TB) * TB
    nt = Bp // TB
    NCP = ((num_class + 127) // 128) * 128       # lane-padded logits width

    x = x_nchw.astype(jnp.float32)
    if Bp != B:
        x = jnp.pad(x, ((0, Bp - B), (0, 0), (0, 0), (0, 0)))
    # (Bp, Cin, H, W) -> (nt, Cin, H*W*TB) with lane = (y*W + x)*TB + sample.
    # TODO(synk): this relayout is one extra XLA pass over the (small) input;
    # it could be fused into the producer of x upstream.
    xr = (x.reshape(nt, TB, Cin, H * W).transpose(0, 2, 3, 1)
           .reshape(nt, Cin, H * W * TB).astype(jnp.bfloat16))

    # Conv weights packed for the merged-tap matmuls: (Cout, 9*Cin) with row
    # order matching the in-kernel im2col concat ((ky, kx) major, cin minor).
    w1 = params["conv1_w"].transpose(0, 2, 3, 1).reshape(C1, 9 * Cin).astype(jnp.bfloat16)
    b1 = params["conv1_b"].reshape(C1, 1).astype(jnp.float32)
    w2 = params["conv2_w"].transpose(0, 2, 3, 1).reshape(C2, 9 * C1).astype(jnp.bfloat16)
    b2 = params["conv2_b"].reshape(C2, 1).astype(jnp.float32)

    # fc1: permute PyTorch's (c2, p, q) flatten order to the kernel's (p, q, c2)
    # order and transpose to (in, out) for the batch-major matmul.
    wf1 = (params["fc1_w"].reshape(F1, C2, P2H, P2W).transpose(2, 3, 1, 0)
           .reshape(feat, F1).astype(jnp.bfloat16))
    bf1 = params["fc1_b"].reshape(1, F1).astype(jnp.float32)
    wf2 = params["fc2_w"].T.astype(jnp.bfloat16)                 # (256, 128)
    bf2 = params["fc2_b"].reshape(1, F2).astype(jnp.float32)
    # fc3: lane-pad the class dimension so the output store is dense (TB, 128).
    wf3 = jnp.zeros((F2, NCP), jnp.bfloat16).at[:, :num_class].set(
        params["fc3_w"].T.astype(jnp.bfloat16))
    bf3 = jnp.zeros((1, NCP), jnp.float32).at[0, :num_class].set(
        params["fc3_b"].astype(jnp.float32))

    kernel = make_kernel(TB, H, W)

    def full(a):
        n = a.ndim
        return pl.BlockSpec(a.shape, lambda j, n=n: (0,) * n)

    out = pl.pallas_call(
        kernel,
        out_shape=jax.ShapeDtypeStruct((Bp, NCP), jnp.float32),
        grid_spec=pltpu.PrefetchScalarGridSpec(
            num_scalar_prefetch=0,
            grid=(nt,),
            in_specs=[
                pl.BlockSpec((None, Cin, H * W * TB), lambda j: (j, 0, 0)),
                full(w1), full(b1), full(w2), full(b2),
                full(wf1), full(bf1), full(wf2), full(bf2), full(wf3), full(bf3),
            ],
            out_specs=pl.BlockSpec((TB, NCP), lambda j: (j, 0)),
        ),
        compiler_params=pltpu.CompilerParams(
            dimension_semantics=("parallel",)),
    )(xr, w1, b1, w2, b2, wf1, bf1, wf2, bf2, wf3, bf3)

    return out[:B, :num_class]


def init_params(key, input_channel, num_class):
    ks = jax.random.split(key, 10)
    w = lambda k, s: 0.1 * jax.random.normal(k, s, jnp.float32)
    return dict(
        conv1_w=w(ks[0], (8, input_channel, 3, 3)), conv1_b=w(ks[1], (8,)),
        conv2_w=w(ks[2], (16, 8, 3, 3)),            conv2_b=w(ks[3], (16,)),
        fc1_w=w(ks[4], (256, 64)),                  fc1_b=w(ks[5], (256,)),
        fc2_w=w(ks[6], (128, 256)),                 fc2_b=w(ks[7], (128,)),
        fc3_w=w(ks[8], (num_class, 128)),           fc3_b=w(ks[9], (num_class,)),
    )


def reference_forward(x, params):
    """Pure-JAX reference mirroring the PyTorch forward (NCHW, eval mode)."""
    prec = jax.lax.Precision.HIGHEST

    def conv(x, w, b):
        y = jax.lax.conv_general_dilated(
            x, w, (1, 1), "VALID",
            dimension_numbers=("NCHW", "OIHW", "NCHW"), precision=prec)
        return y + b[None, :, None, None]

    def pool(x):
        return jax.lax.reduce_window(x, -jnp.inf, jax.lax.max,
                                     (1, 1, 3, 3), (1, 1, 3, 3), "VALID")

    y = pool(jax.nn.relu(conv(x, params["conv1_w"], params["conv1_b"])))
    y = pool(jax.nn.relu(conv(y, params["conv2_w"], params["conv2_b"])))
    y = y.reshape(y.shape[0], -1)
    y = jax.nn.relu(jnp.dot(y, params["fc1_w"].T, precision=prec) + params["fc1_b"])
    y = jax.nn.relu(jnp.dot(y, params["fc2_w"].T, precision=prec) + params["fc2_b"])
    return jnp.dot(y, params["fc3_w"].T, precision=prec) + params["fc3_b"]


if __name__ == "__main__":
    key = jax.random.PRNGKey(0)
    k_x, k_p = jax.random.split(key)

    input_channel, num_class = 3, 10
    B, H, W = 2, 28, 28   # 28x28 spatial is implied by fc1's in_features == 64

    x = jax.random.normal(k_x, (B, input_channel, H, W), jnp.float32)
    params = init_params(k_p, input_channel, num_class)

    out = jax.block_until_ready(net_forward(x, params))
    assert out.shape == (B, num_class)

    ref = jax.block_until_ready(reference_forward(x, params))
    # Tolerance loosened vs. the f32-HIGHEST reference because the kernel uses
    # bf16 MXU operands (native single-pass path) per the performance review.
    np.testing.assert_allclose(np.asarray(out), np.asarray(ref),
                               rtol=5e-2, atol=5e-2)
    print("KERNEL_OK")
</pallas_src>

<mosaic_0001>
module attributes {stable_mosaic.version = 11 : i64} {
  func.func @kernel(%arg0: i32, %arg1: memref<1x3x6272xbf16, #tpu.memory_space<vmem>>, %arg2: memref<8x27xbf16, #tpu.memory_space<vmem>>, %arg3: memref<8x1xf32, #tpu.memory_space<vmem>>, %arg4: memref<16x72xbf16, #tpu.memory_space<vmem>>, %arg5: memref<16x1xf32, #tpu.memory_space<vmem>>, %arg6: memref<64x256xbf16, #tpu.memory_space<vmem>>, %arg7: memref<1x256xf32, #tpu.memory_space<vmem>>, %arg8: memref<256x128xbf16, #tpu.memory_space<vmem>>, %arg9: memref<1x128xf32, #tpu.memory_space<vmem>>, %arg10: memref<128x128xbf16, #tpu.memory_space<vmem>>, %arg11: memref<1x128xf32, #tpu.memory_space<vmem>>, %arg12: memref<8x128xf32, #tpu.memory_space<vmem>>) attributes {dimension_semantics = [#tpu.dimension_semantics<parallel>], iteration_bounds = array<i64: 1>, scalar_prefetch = 0 : i64, scratch_operands = 0 : i64, tpu.core_type = #tpu.core_type<tc>, window_params = [{transform_indices = @transform_0, window_bounds = array<i64: 1, 3, 6272>}, {pipeline_mode = #tpu.pipeline_mode<synchronous>, transform_indices = @transform_1, window_bounds = array<i64: 8, 27>}, {pipeline_mode = #tpu.pipeline_mode<synchronous>, transform_indices = @transform_2, window_bounds = array<i64: 8, 1>}, {pipeline_mode = #tpu.pipeline_mode<synchronous>, transform_indices = @transform_3, window_bounds = array<i64: 16, 72>}, {pipeline_mode = #tpu.pipeline_mode<synchronous>, transform_indices = @transform_4, window_bounds = array<i64: 16, 1>}, {pipeline_mode = #tpu.pipeline_mode<synchronous>, transform_indices = @transform_5, window_bounds = array<i64: 64, 256>}, {pipeline_mode = #tpu.pipeline_mode<synchronous>, transform_indices = @transform_6, window_bounds = array<i64: 1, 256>}, {pipeline_mode = #tpu.pipeline_mode<synchronous>, transform_indices = @transform_7, window_bounds = array<i64: 256, 128>}, {pipeline_mode = #tpu.pipeline_mode<synchronous>, transform_indices = @transform_8, window_bounds = array<i64: 1, 128>}, {pipeline_mode = #tpu.pipeline_mode<synchronous>, transform_indices = @transform_9, window_bounds = array<i64: 128, 128>}, {pipeline_mode = #tpu.pipeline_mode<synchronous>, transform_indices = @transform_10, window_bounds = array<i64: 1, 128>}, {transform_indices = @transform_11, window_bounds = array<i64: 8, 128>}]} {
    %c0 = arith.constant 0 : index
    %c0_0 = arith.constant 0 : index
    %c0_1 = arith.constant 0 : index
    %0 = vector.load %arg1[%c0, %c0_0, %c0_1] : memref<1x3x6272xbf16, #tpu.memory_space<vmem>>, vector<1x3x6272xbf16>
    %1 = vector.shape_cast %0 : vector<1x3x6272xbf16> to vector<3x6272xbf16>
    %2 = arith.extf %1 : vector<3x6272xbf16> to vector<3x6272xf32>
    %3 = vector.extract_strided_slice %2 {offsets = [0, 0], sizes = [3, 5808], strides = [1, 1]} : vector<3x6272xf32> to vector<3x5808xf32>
    %4 = vector.extract_strided_slice %2 {offsets = [0, 8], sizes = [3, 5808], strides = [1, 1]} : vector<3x6272xf32> to vector<3x5808xf32>
    %5 = vector.extract_strided_slice %2 {offsets = [0, 16], sizes = [3, 5808], strides = [1, 1]} : vector<3x6272xf32> to vector<3x5808xf32>
    %6 = vector.extract_strided_slice %2 {offsets = [0, 224], sizes = [3, 5808], strides = [1, 1]} : vector<3x6272xf32> to vector<3x5808xf32>
    %7 = vector.extract_strided_slice %2 {offsets = [0, 232], sizes = [3, 5808], strides = [1, 1]} : vector<3x6272xf32> to vector<3x5808xf32>
    %8 = vector.extract_strided_slice %2 {offsets = [0, 240], sizes = [3, 5808], strides = [1, 1]} : vector<3x6272xf32> to vector<3x5808xf32>
    %9 = vector.extract_strided_slice %2 {offsets = [0, 448], sizes = [3, 5808], strides = [1, 1]} : vector<3x6272xf32> to vector<3x5808xf32>
    %10 = vector.extract_strided_slice %2 {offsets = [0, 456], sizes = [3, 5808], strides = [1, 1]} : vector<3x6272xf32> to vector<3x5808xf32>
    %11 = vector.extract_strided_slice %2 {offsets = [0, 464], sizes = [3, 5808], strides = [1, 1]} : vector<3x6272xf32> to vector<3x5808xf32>
    %12 = tpu.concatenate %3, %4, %5, %6, %7, %8, %9, %10, %11 in 0 : vector<3x5808xf32>, vector<3x5808xf32>, vector<3x5808xf32>, vector<3x5808xf32>, vector<3x5808xf32>, vector<3x5808xf32>, vector<3x5808xf32>, vector<3x5808xf32>, vector<3x5808xf32> -> vector<27x5808xf32>
    %c0_2 = arith.constant 0 : index
    %c0_3 = arith.constant 0 : index
    %13 = vector.load %arg2[%c0_2, %c0_3] : memref<8x27xbf16, #tpu.memory_space<vmem>>, vector<8x27xbf16>
    %14 = arith.truncf %12 : vector<27x5808xf32> to vector<27x5808xbf16>
    %cst = arith.constant dense<0.000000e+00> : vector<8x5808xf32>
    %15 = tpu.matmul %13, %14, %cst {dimension_numbers = #tpu.dot_dimension_numbers<[1], [0], [0], [1], [0, 0, 1, 1], [], []>} : vector<8x27xbf16>, vector<27x5808xbf16>, vector<8x5808xf32> -> vector<8x5808xf32>
    %c0_4 = arith.constant 0 : index
    %c0_5 = arith.constant 0 : index
    %16 = vector.load %arg3[%c0_4, %c0_5] : memref<8x1xf32, #tpu.memory_space<vmem>>, vector<8x1xf32>
    %17 = vector.broadcast %16 : vector<8x1xf32> to vector<8x5808xf32>
    %18 = arith.addf %15, %17 : vector<8x5808xf32>
    %cst_6 = arith.constant 0.000000e+00 : f32
    %19 = vector.broadcast %cst_6 : f32 to vector<8x5808xf32>
    %20 = arith.maximumf %18, %19 : vector<8x5808xf32>
    %21 = vector.extract_strided_slice %20 {offsets = [0, 0], sizes = [8, 5344], strides = [1, 1]} : vector<8x5808xf32> to vector<8x5344xf32>
    %22 = vector.extract_strided_slice %20 {offsets = [0, 8], sizes = [8, 5344], strides = [1, 1]} : vector<8x5808xf32> to vector<8x5344xf32>
    %23 = arith.maximumf %21, %22 : vector<8x5344xf32>
    %24 = vector.extract_strided_slice %20 {offsets = [0, 16], sizes = [8, 5344], strides = [1, 1]} : vector<8x5808xf32> to vector<8x5344xf32>
    %25 = arith.maximumf %23, %24 : vector<8x5344xf32>
    %26 = vector.extract_strided_slice %20 {offsets = [0, 224], sizes = [8, 5344], strides = [1, 1]} : vector<8x5808xf32> to vector<8x5344xf32>
    %27 = arith.maximumf %25, %26 : vector<8x5344xf32>
    %28 = vector.extract_strided_slice %20 {offsets = [0, 232], sizes = [8, 5344], strides = [1, 1]} : vector<8x5808xf32> to vector<8x5344xf32>
    %29 = arith.maximumf %27, %28 : vector<8x5344xf32>
    %30 = vector.extract_strided_slice %20 {offsets = [0, 240], sizes = [8, 5344], strides = [1, 1]} : vector<8x5808xf32> to vector<8x5344xf32>
    %31 = arith.maximumf %29, %30 : vector<8x5344xf32>
    %32 = vector.extract_strided_slice %20 {offsets = [0, 448], sizes = [8, 5344], strides = [1, 1]} : vector<8x5808xf32> to vector<8x5344xf32>
    %33 = arith.maximumf %31, %32 : vector<8x5344xf32>
    %34 = vector.extract_strided_slice %20 {offsets = [0, 456], sizes = [8, 5344], strides = [1, 1]} : vector<8x5808xf32> to vector<8x5344xf32>
    %35 = arith.maximumf %33, %34 : vector<8x5344xf32>
    %36 = vector.extract_strided_slice %20 {offsets = [0, 464], sizes = [8, 5344], strides = [1, 1]} : vector<8x5808xf32> to vector<8x5344xf32>
    %37 = arith.maximumf %35, %36 : vector<8x5344xf32>
    %38 = vector.extract_strided_slice %37 {offsets = [0, 0], sizes = [8, 8], strides = [1, 1]} : vector<8x5344xf32> to vector<8x8xf32>
    %39 = vector.extract_strided_slice %37 {offsets = [0, 24], sizes = [8, 8], strides = [1, 1]} : vector<8x5344xf32> to vector<8x8xf32>
    %40 = vector.extract_strided_slice %37 {offsets = [0, 48], sizes = [8, 8], strides = [1, 1]} : vector<8x5344xf32> to vector<8x8xf32>
    %41 = vector.extract_strided_slice %37 {offsets = [0, 72], sizes = [8, 8], strides = [1, 1]} : vector<8x5344xf32> to vector<8x8xf32>
    %42 = vector.extract_strided_slice %37 {offsets = [0, 96], sizes = [8, 8], strides = [1, 1]} : vector<8x5344xf32> to vector<8x8xf32>
    %43 = vector.extract_strided_slice %37 {offsets = [0, 120], sizes = [8, 8], strides = [1, 1]} : vector<8x5344xf32> to vector<8x8xf32>
    %44 = vector.extract_strided_slice %37 {offsets = [0, 144], sizes = [8, 8], strides = [1, 1]} : vector<8x5344xf32> to vector<8x8xf32>
    %45 = vector.extract_strided_slice %37 {offsets = [0, 168], sizes = [8, 8], strides = [1, 1]} : vector<8x5344xf32> to vector<8x8xf32>
    %46 = vector.extract_strided_slice %37 {offsets = [0, 672], sizes = [8, 8], strides = [1, 1]} : vector<8x5344xf32> to vector<8x8xf32>
    %47 = vector.extract_strided_slice %37 {offsets = [0, 696], sizes = [8, 8], strides = [1, 1]} : vector<8x5344xf32> to vector<8x8xf32>
    %48 = vector.extract_strided_slice %37 {offsets = [0, 720], sizes = [8, 8], strides = [1, 1]} : vector<8x5344xf32> to vector<8x8xf32>
    %49 = vector.extract_strided_slice %37 {offsets = [0, 744], sizes = [8, 8], strides = [1, 1]} : vector<8x5344xf32> to vector<8x8xf32>
    %50 = vector.extract_strided_slice %37 {offsets = [0, 768], sizes = [8, 8], strides = [1, 1]} : vector<8x5344xf32> to vector<8x8xf32>
    %51 = vector.extract_strided_slice %37 {offsets = [0, 792], sizes = [8, 8], strides = [1, 1]} : vector<8x5344xf32> to vector<8x8xf32>
    %52 = vector.extract_strided_slice %37 {offsets = [0, 816], sizes = [8, 8], strides = [1, 1]} : vector<8x5344xf32> to vector<8x8xf32>
    %53 = vector.extract_strided_slice %37 {offsets = [0, 840], sizes = [8, 8], strides = [1, 1]} : vector<8x5344xf32> to vector<8x8xf32>
    %54 = vector.extract_strided_slice %37 {offsets = [0, 1344], sizes = [8, 8], strides = [1, 1]} : vector<8x5344xf32> to vector<8x8xf32>
    %55 = vector.extract_strided_slice %37 {offsets = [0, 1368], sizes = [8, 8], strides = [1, 1]} : vector<8x5344xf32> to vector<8x8xf32>
    %56 = vector.extract_strided_slice %37 {offsets = [0, 1392], sizes = [8, 8], strides = [1, 1]} : vector<8x5344xf32> to vector<8x8xf32>
    %57 = vector.extract_strided_slice %37 {offsets = [0, 1416], sizes = [8, 8], strides = [1, 1]} : vector<8x5344xf32> to vector<8x8xf32>
    %58 = vector.extract_strided_slice %37 {offsets = [0, 1440], sizes = [8, 8], strides = [1, 1]} : vector<8x5344xf32> to vector<8x8xf32>
    %59 = vector.extract_strided_slice %37 {offsets = [0, 1464], sizes = [8, 8], strides = [1, 1]} : vector<8x5344xf32> to vector<8x8xf32>
    %60 = vector.extract_strided_slice %37 {offsets = [0, 1488], sizes = [8, 8], strides = [1, 1]} : vector<8x5344xf32> to vector<8x8xf32>
    %61 = vector.extract_strided_slice %37 {offsets = [0, 1512], sizes = [8, 8], strides = [1, 1]} : vector<8x5344xf32> to vector<8x8xf32>
    %62 = vector.extract_strided_slice %37 {offsets = [0, 2016], sizes = [8, 8], strides = [1, 1]} : vector<8x5344xf32> to vector<8x8xf32>
    %63 = vector.extract_strided_slice %37 {offsets = [0, 2040], sizes = [8, 8], strides = [1, 1]} : vector<8x5344xf32> to vector<8x8xf32>
    %64 = vector.extract_strided_slice %37 {offsets = [0, 2064], sizes = [8, 8], strides = [1, 1]} : vector<8x5344xf32> to vector<8x8xf32>
    %65 = vector.extract_strided_slice %37 {offsets = [0, 2088], sizes = [8, 8], strides = [1, 1]} : vector<8x5344xf32> to vector<8x8xf32>
    %66 = vector.extract_strided_slice %37 {offsets = [0, 2112], sizes = [8, 8], strides = [1, 1]} : vector<8x5344xf32> to vector<8x8xf32>
    %67 = vector.extract_strided_slice %37 {offsets = [0, 2136], sizes = [8, 8], strides = [1, 1]} : vector<8x5344xf32> to vector<8x8xf32>
    %68 = vector.extract_strided_slice %37 {offsets = [0, 2160], sizes = [8, 8], strides = [1, 1]} : vector<8x5344xf32> to vector<8x8xf32>
    %69 = vector.extract_strided_slice %37 {offsets = [0, 2184], sizes = [8, 8], strides = [1, 1]} : vector<8x5344xf32> to vector<8x8xf32>
    %70 = vector.extract_strided_slice %37 {offsets = [0, 2688], sizes = [8, 8], strides = [1, 1]} : vector<8x5344xf32> to vector<8x8xf32>
    %71 = vector.extract_strided_slice %37 {offsets = [0, 2712], sizes = [8, 8], strides = [1, 1]} : vector<8x5344xf32> to vector<8x8xf32>
    %72 = vector.extract_strided_slice %37 {offsets = [0, 2736], sizes = [8, 8], strides = [1, 1]} : vector<8x5344xf32> to vector<8x8xf32>
    %73 = vector.extract_strided_slice %37 {offsets = [0, 2760], sizes = [8, 8], strides = [1, 1]} : vector<8x5344xf32> to vector<8x8xf32>
    %74 = vector.extract_strided_slice %37 {offsets = [0, 2784], sizes = [8, 8], strides = [1, 1]} : vector<8x5344xf32> to vector<8x8xf32>
    %75 = vector.extract_strided_slice %37 {offsets = [0, 2808], sizes = [8, 8], strides = [1, 1]} : vector<8x5344xf32> to vector<8x8xf32>
    %76 = vector.extract_strided_slice %37 {offsets = [0, 2832], sizes = [8, 8], strides = [1, 1]} : vector<8x5344xf32> to vector<8x8xf32>
    %77 = vector.extract_strided_slice %37 {offsets = [0, 2856], sizes = [8, 8], strides = [1, 1]} : vector<8x5344xf32> to vector<8x8xf32>
    %78 = vector.extract_strided_slice %37 {offsets = [0, 3360], sizes = [8, 8], strides = [1, 1]} : vector<8x5344xf32> to vector<8x8xf32>
    %79 = vector.extract_strided_slice %37 {offsets = [0, 3384], sizes = [8, 8], strides = [1, 1]} : vector<8x5344xf32> to vector<8x8xf32>
    %80 = vector.extract_strided_slice %37 {offsets = [0, 3408], sizes = [8, 8], strides = [1, 1]} : vector<8x5344xf32> to vector<8x8xf32>
    %81 = vector.extract_strided_slice %37 {offsets = [0, 3432], sizes = [8, 8], strides = [1, 1]} : vector<8x5344xf32> to vector<8x8xf32>
    %82 = vector.extract_strided_slice %37 {offsets = [0, 3456], sizes = [8, 8], strides = [1, 1]} : vector<8x5344xf32> to vector<8x8xf32>
    %83 = vector.extract_strided_slice %37 {offsets = [0, 3480], sizes = [8, 8], strides = [1, 1]} : vector<8x5344xf32> to vector<8x8xf32>
    %84 = vector.extract_strided_slice %37 {offsets = [0, 3504], sizes = [8, 8], strides = [1, 1]} : vector<8x5344xf32> to vector<8x8xf32>
    %85 = vector.extract_strided_slice %37 {offsets = [0, 3528], sizes = [8, 8], strides = [1, 1]} : vector<8x5344xf32> to vector<8x8xf32>
    %86 = vector.extract_strided_slice %37 {offsets = [0, 4032], sizes = [8, 8], strides = [1, 1]} : vector<8x5344xf32> to vector<8x8xf32>
    %87 = vector.extract_strided_slice %37 {offsets = [0, 4056], sizes = [8, 8], strides = [1, 1]} : vector<8x5344xf32> to vector<8x8xf32>
    %88 = vector.extract_strided_slice %37 {offsets = [0, 4080], sizes = [8, 8], strides = [1, 1]} : vector<8x5344xf32> to vector<8x8xf32>
    %89 = vector.extract_strided_slice %37 {offsets = [0, 4104], sizes = [8, 8], strides = [1, 1]} : vector<8x5344xf32> to vector<8x8xf32>
    %90 = vector.extract_strided_slice %37 {offsets = [0, 4128], sizes = [8, 8], strides = [1, 1]} : vector<8x5344xf32> to vector<8x8xf32>
    %91 = vector.extract_strided_slice %37 {offsets = [0, 4152], sizes = [8, 8], strides = [1, 1]} : vector<8x5344xf32> to vector<8x8xf32>
    %92 = vector.extract_strided_slice %37 {offsets = [0, 4176], sizes = [8, 8], strides = [1, 1]} : vector<8x5344xf32> to vector<8x8xf32>
    %93 = vector.extract_strided_slice %37 {offsets = [0, 4200], sizes = [8, 8], strides = [1, 1]} : vector<8x5344xf32> to vector<8x8xf32>
    %94 = vector.extract_strided_slice %37 {offsets = [0, 4704], sizes = [8, 8], strides = [1, 1]} : vector<8x5344xf32> to vector<8x8xf32>
    %95 = vector.extract_strided_slice %37 {offsets = [0, 4728], sizes = [8, 8], strides = [1, 1]} : vector<8x5344xf32> to vector<8x8xf32>
    %96 = vector.extract_strided_slice %37 {offsets = [0, 4752], sizes = [8, 8], strides = [1, 1]} : vector<8x5344xf32> to vector<8x8xf32>
    %97 = vector.extract_strided_slice %37 {offsets = [0, 4776], sizes = [8, 8], strides = [1, 1]} : vector<8x5344xf32> to vector<8x8xf32>
    %98 = vector.extract_strided_slice %37 {offsets = [0, 4800], sizes = [8, 8], strides = [1, 1]} : vector<8x5344xf32> to vector<8x8xf32>
    %99 = vector.extract_strided_slice %37 {offsets = [0, 4824], sizes = [8, 8], strides = [1, 1]} : vector<8x5344xf32> to vector<8x8xf32>
    %100 = vector.extract_strided_slice %37 {offsets = [0, 4848], sizes = [8, 8], strides = [1, 1]} : vector<8x5344xf32> to vector<8x8xf32>
    %101 = vector.extract_strided_slice %37 {offsets = [0, 4872], sizes = [8, 8], strides = [1, 1]} : vector<8x5344xf32> to vector<8x8xf32>
    %102 = tpu.concatenate %38, %39, %40, %41, %42, %43, %44, %45, %46, %47, %48, %49, %50, %51, %52, %53 in 1 : vector<8x8xf32>, vector<8x8xf32>, vector<8x8xf32>, vector<8x8xf32>, vector<8x8xf32>, vector<8x8xf32>, vector<8x8xf32>, vector<8x8xf32>, vector<8x8xf32>, vector<8x8xf32>, vector<8x8xf32>, vector<8x8xf32>, vector<8x8xf32>, vector<8x8xf32>, vector<8x8xf32>, vector<8x8xf32> -> vector<8x128xf32>
    %103 = tpu.concatenate %54, %55, %56, %57, %58, %59, %60, %61, %62, %63, %64, %65, %66, %67, %68, %69 in 1 : vector<8x8xf32>, vector<8x8xf32>, vector<8x8xf32>, vector<8x8xf32>, vector<8x8xf32>, vector<8x8xf32>, vector<8x8xf32>, vector<8x8xf32>, vector<8x8xf32>, vector<8x8xf32>, vector<8x8xf32>, vector<8x8xf32>, vector<8x8xf32>, vector<8x8xf32>, vector<8x8xf32>, vector<8x8xf32> -> vector<8x128xf32>
    %104 = tpu.concatenate %70, %71, %72, %73, %74, %75, %76, %77, %78, %79, %80, %81, %82, %83, %84, %85 in 1 : vector<8x8xf32>, vector<8x8xf32>, vector<8x8xf32>, vector<8x8xf32>, vector<8x8xf32>, vector<8x8xf32>, vector<8x8xf32>, vector<8x8xf32>, vector<8x8xf32>, vector<8x8xf32>, vector<8x8xf32>, vector<8x8xf32>, vector<8x8xf32>, vector<8x8xf32>, vector<8x8xf32>, vector<8x8xf32> -> vector<8x128xf32>
    %105 = tpu.concatenate %86, %87, %88, %89, %90, %91, %92, %93, %94, %95, %96, %97, %98, %99, %100, %101 in 1 : vector<8x8xf32>, vector<8x8xf32>, vector<8x8xf32>, vector<8x8xf32>, vector<8x8xf32>, vector<8x8xf32>, vector<8x8xf32>, vector<8x8xf32>, vector<8x8xf32>, vector<8x8xf32>, vector<8x8xf32>, vector<8x8xf32>, vector<8x8xf32>, vector<8x8xf32>, vector<8x8xf32>, vector<8x8xf32> -> vector<8x128xf32>
    %106 = tpu.concatenate %102, %103, %104, %105 in 1 : vector<8x128xf32>, vector<8x128xf32>, vector<8x128xf32>, vector<8x128xf32> -> vector<8x512xf32>
    %107 = vector.extract_strided_slice %106 {offsets = [0, 0], sizes = [8, 368], strides = [1, 1]} : vector<8x512xf32> to vector<8x368xf32>
    %108 = vector.extract_strided_slice %106 {offsets = [0, 8], sizes = [8, 368], strides = [1, 1]} : vector<8x512xf32> to vector<8x368xf32>
    %109 = vector.extract_strided_slice %106 {offsets = [0, 16], sizes = [8, 368], strides = [1, 1]} : vector<8x512xf32> to vector<8x368xf32>
    %110 = vector.extract_strided_slice %106 {offsets = [0, 64], sizes = [8, 368], strides = [1, 1]} : vector<8x512xf32> to vector<8x368xf32>
    %111 = vector.extract_strided_slice %106 {offsets = [0, 72], sizes = [8, 368], strides = [1, 1]} : vector<8x512xf32> to vector<8x368xf32>
    %112 = vector.extract_strided_slice %106 {offsets = [0, 80], sizes = [8, 368], strides = [1, 1]} : vector<8x512xf32> to vector<8x368xf32>
    %113 = vector.extract_strided_slice %106 {offsets = [0, 128], sizes = [8, 368], strides = [1, 1]} : vector<8x512xf32> to vector<8x368xf32>
    %114 = vector.extract_strided_slice %106 {offsets = [0, 136], sizes = [8, 368], strides = [1, 1]} : vector<8x512xf32> to vector<8x368xf32>
    %115 = vector.extract_strided_slice %106 {offsets = [0, 144], sizes = [8, 368], strides = [1, 1]} : vector<8x512xf32> to vector<8x368xf32>
    %116 = tpu.concatenate %107, %108, %109, %110, %111, %112, %113, %114, %115 in 0 : vector<8x368xf32>, vector<8x368xf32>, vector<8x368xf32>, vector<8x368xf32>, vector<8x368xf32>, vector<8x368xf32>, vector<8x368xf32>, vector<8x368xf32>, vector<8x368xf32> -> vector<72x368xf32>
    %c0_7 = arith.constant 0 : index
    %c0_8 = arith.constant 0 : index
    %117 = vector.load %arg4[%c0_7, %c0_8] : memref<16x72xbf16, #tpu.memory_space<vmem>>, vector<16x72xbf16>
    %118 = arith.truncf %116 : vector<72x368xf32> to vector<72x368xbf16>
    %cst_9 = arith.constant dense<0.000000e+00> : vector<16x368xf32>
    %119 = tpu.matmul %117, %118, %cst_9 {dimension_numbers = #tpu.dot_dimension_numbers<[1], [0], [0], [1], [0, 0, 1, 1], [], []>} : vector<16x72xbf16>, vector<72x368xbf16>, vector<16x368xf32> -> vector<16x368xf32>
    %c0_10 = arith.constant 0 : index
    %c0_11 = arith.constant 0 : index
    %120 = vector.load %arg5[%c0_10, %c0_11] : memref<16x1xf32, #tpu.memory_space<vmem>>, vector<16x1xf32>
    %121 = vector.broadcast %120 : vector<16x1xf32> to vector<16x368xf32>
    %122 = arith.addf %119, %121 : vector<16x368xf32>
    %cst_12 = arith.constant 0.000000e+00 : f32
    %123 = vector.broadcast %cst_12 : f32 to vector<16x368xf32>
    %124 = arith.maximumf %122, %123 : vector<16x368xf32>
    %125 = vector.extract_strided_slice %124 {offsets = [0, 0], sizes = [16, 224], strides = [1, 1]} : vector<16x368xf32> to vector<16x224xf32>
    %126 = vector.extract_strided_slice %124 {offsets = [0, 8], sizes = [16, 224], strides = [1, 1]} : vector<16x368xf32> to vector<16x224xf32>
    %127 = arith.maximumf %125, %126 : vector<16x224xf32>
    %128 = vector.extract_strided_slice %124 {offsets = [0, 16], sizes = [16, 224], strides = [1, 1]} : vector<16x368xf32> to vector<16x224xf32>
    %129 = arith.maximumf %127, %128 : vector<16x224xf32>
    %130 = vector.extract_strided_slice %124 {offsets = [0, 64], sizes = [16, 224], strides = [1, 1]} : vector<16x368xf32> to vector<16x224xf32>
    %131 = arith.maximumf %129, %130 : vector<16x224xf32>
    %132 = vector.extract_strided_slice %124 {offsets = [0, 72], sizes = [16, 224], strides = [1, 1]} : vector<16x368xf32> to vector<16x224xf32>
    %133 = arith.maximumf %131, %132 : vector<16x224xf32>
    %134 = vector.extract_strided_slice %124 {offsets = [0, 80], sizes = [16, 224], strides = [1, 1]} : vector<16x368xf32> to vector<16x224xf32>
    %135 = arith.maximumf %133, %134 : vector<16x224xf32>
    %136 = vector.extract_strided_slice %124 {offsets = [0, 128], sizes = [16, 224], strides = [1, 1]} : vector<16x368xf32> to vector<16x224xf32>
    %137 = arith.maximumf %135, %136 : vector<16x224xf32>
    %138 = vector.extract_strided_slice %124 {offsets = [0, 136], sizes = [16, 224], strides = [1, 1]} : vector<16x368xf32> to vector<16x224xf32>
    %139 = arith.maximumf %137, %138 : vector<16x224xf32>
    %140 = vector.extract_strided_slice %124 {offsets = [0, 144], sizes = [16, 224], strides = [1, 1]} : vector<16x368xf32> to vector<16x224xf32>
    %141 = arith.maximumf %139, %140 : vector<16x224xf32>
    %142 = vector.extract_strided_slice %141 {offsets = [0, 0], sizes = [16, 8], strides = [1, 1]} : vector<16x224xf32> to vector<16x8xf32>
    %143 = vector.extract_strided_slice %141 {offsets = [0, 24], sizes = [16, 8], strides = [1, 1]} : vector<16x224xf32> to vector<16x8xf32>
    %144 = vector.extract_strided_slice %141 {offsets = [0, 192], sizes = [16, 8], strides = [1, 1]} : vector<16x224xf32> to vector<16x8xf32>
    %145 = vector.extract_strided_slice %141 {offsets = [0, 216], sizes = [16, 8], strides = [1, 1]} : vector<16x224xf32> to vector<16x8xf32>
    %146 = tpu.concatenate %142, %143, %144, %145 in 0 : vector<16x8xf32>, vector<16x8xf32>, vector<16x8xf32>, vector<16x8xf32> -> vector<64x8xf32>
    %147 = tpu.transpose %146, [1, 0] : vector<64x8xf32> -> vector<8x64xf32>
    %148 = arith.truncf %147 : vector<8x64xf32> to vector<8x64xbf16>
    %c0_13 = arith.constant 0 : index
    %c0_14 = arith.constant 0 : index
    %149 = vector.load %arg6[%c0_13, %c0_14] : memref<64x256xbf16, #tpu.memory_space<vmem>>, vector<64x256xbf16>
    %cst_15 = arith.constant dense<0.000000e+00> : vector<8x256xf32>
    %150 = tpu.matmul %148, %149, %cst_15 {dimension_numbers = #tpu.dot_dimension_numbers<[1], [0], [0], [1], [0, 0, 1, 1], [], []>} : vector<8x64xbf16>, vector<64x256xbf16>, vector<8x256xf32> -> vector<8x256xf32>
    %c0_16 = arith.constant 0 : index
    %c0_17 = arith.constant 0 : index
    %151 = vector.load %arg7[%c0_16, %c0_17] : memref<1x256xf32, #tpu.memory_space<vmem>>, vector<1x256xf32>
    %152 = vector.broadcast %151 : vector<1x256xf32> to vector<8x256xf32>
    %153 = arith.addf %150, %152 : vector<8x256xf32>
    %cst_18 = arith.constant 0.000000e+00 : f32
    %154 = vector.broadcast %cst_18 : f32 to vector<8x256xf32>
    %155 = arith.maximumf %153, %154 : vector<8x256xf32>
    %156 = arith.truncf %155 : vector<8x256xf32> to vector<8x256xbf16>
    %c0_19 = arith.constant 0 : index
    %c0_20 = arith.constant 0 : index
    %157 = vector.load %arg8[%c0_19, %c0_20] : memref<256x128xbf16, #tpu.memory_space<vmem>>, vector<256x128xbf16>
    %cst_21 = arith.constant dense<0.000000e+00> : vector<8x128xf32>
    %158 = tpu.matmul %156, %157, %cst_21 {dimension_numbers = #tpu.dot_dimension_numbers<[1], [0], [0], [1], [0, 0, 1, 1], [], []>} : vector<8x256xbf16>, vector<256x128xbf16>, vector<8x128xf32> -> vector<8x128xf32>
    %c0_22 = arith.constant 0 : index
    %c0_23 = arith.constant 0 : index
    %159 = vector.load %arg9[%c0_22, %c0_23] : memref<1x128xf32, #tpu.memory_space<vmem>>, vector<1x128xf32>
    %160 = vector.broadcast %159 : vector<1x128xf32> to vector<8x128xf32>
    %161 = arith.addf %158, %160 : vector<8x128xf32>
    %cst_24 = arith.constant 0.000000e+00 : f32
    %162 = vector.broadcast %cst_24 : f32 to vector<8x128xf32>
    %163 = arith.maximumf %161, %162 : vector<8x128xf32>
    %164 = arith.truncf %163 : vector<8x128xf32> to vector<8x128xbf16>
    %c0_25 = arith.constant 0 : index
    %c0_26 = arith.constant 0 : index
    %165 = vector.load %arg10[%c0_25, %c0_26] : memref<128x128xbf16, #tpu.memory_space<vmem>>, vector<128x128xbf16>
    %cst_27 = arith.constant dense<0.000000e+00> : vector<8x128xf32>
    %166 = tpu.matmul %164, %165, %cst_27 {dimension_numbers = #tpu.dot_dimension_numbers<[1], [0], [0], [1], [0, 0, 1, 1], [], []>} : vector<8x128xbf16>, vector<128x128xbf16>, vector<8x128xf32> -> vector<8x128xf32>
    %c0_28 = arith.constant 0 : index
    %c0_29 = arith.constant 0 : index
    %167 = vector.load %arg11[%c0_28, %c0_29] : memref<1x128xf32, #tpu.memory_space<vmem>>, vector<1x128xf32>
    %168 = vector.broadcast %167 : vector<1x128xf32> to vector<8x128xf32>
    %169 = arith.addf %166, %168 : vector<8x128xf32>
    %c0_30 = arith.constant 0 : index
    %c0_31 = arith.constant 0 : index
    %170 = vector.load %arg12[%c0_30, %c0_31] : memref<8x128xf32, #tpu.memory_space<vmem>>, vector<8x128xf32>
    tpu.vector_store %arg12[%c0_30, %c0_31], %169 {strides = array<i32>} : memref<8x128xf32, #tpu.memory_space<vmem>>, vector<8x128xf32>,
    return
  }
  func.func @transform_0(%arg0: i32) -> (i32, i32, i32) {
    %c0_i32 = arith.constant 0 : i32
    %c0_i32_0 = arith.constant 0 : i32
    %c0_i32_1 = arith.constant 0 : i32
    return %arg0, %c0_i32, %c0_i32_0 : i32, i32, i32
  }
  func.func @transform_1(%arg0: i32) -> (i32, i32) {
    %c0_i32 = arith.constant 0 : i32
    %c0_i32_0 = arith.constant 0 : i32
    %c0_i32_1 = arith.constant 0 : i32
    return %c0_i32, %c0_i32_0 : i32, i32
  }
  func.func @transform_2(%arg0: i32) -> (i32, i32) {
    %c0_i32 = arith.constant 0 : i32
    %c0_i32_0 = arith.constant 0 : i32
    %c0_i32_1 = arith.constant 0 : i32
    return %c0_i32, %c0_i32_0 : i32, i32
  }
  func.func @transform_3(%arg0: i32) -> (i32, i32) {
    %c0_i32 = arith.constant 0 : i32
    %c0_i32_0 = arith.constant 0 : i32
    %c0_i32_1 = arith.constant 0 : i32
    return %c0_i32, %c0_i32_0 : i32, i32
  }
  func.func @transform_4(%arg0: i32) -> (i32, i32) {
    %c0_i32 = arith.constant 0 : i32
    %c0_i32_0 = arith.constant 0 : i32
    %c0_i32_1 = arith.constant 0 : i32
    return %c0_i32, %c0_i32_0 : i32, i32
  }
  func.func @transform_5(%arg0: i32) -> (i32, i32) {
    %c0_i32 = arith.constant 0 : i32
    %c0_i32_0 = arith.constant 0 : i32
    %c0_i32_1 = arith.constant 0 : i32
    return %c0_i32, %c0_i32_0 : i32, i32
  }
  func.func @transform_6(%arg0: i32) -> (i32, i32) {
    %c0_i32 = arith.constant 0 : i32
    %c0_i32_0 = arith.constant 0 : i32
    %c0_i32_1 = arith.constant 0 : i32
    return %c0_i32, %c0_i32_0 : i32, i32
  }
  func.func @transform_7(%arg0: i32) -> (i32, i32) {
    %c0_i32 = arith.constant 0 : i32
    %c0_i32_0 = arith.constant 0 : i32
    %c0_i32_1 = arith.constant 0 : i32
    return %c0_i32, %c0_i32_0 : i32, i32
  }
  func.func @transform_8(%arg0: i32) -> (i32, i32) {
    %c0_i32 = arith.constant 0 : i32
    %c0_i32_0 = arith.constant 0 : i32
    %c0_i32_1 = arith.constant 0 : i32
    return %c0_i32, %c0_i32_0 : i32, i32
  }
  func.func @transform_9(%arg0: i32) -> (i32, i32) {
    %c0_i32 = arith.constant 0 : i32
    %c0_i32_0 = arith.constant 0 : i32
    %c0_i32_1 = arith.constant 0 : i32
    return %c0_i32, %c0_i32_0 : i32, i32
  }
  func.func @transform_10(%arg0: i32) -> (i32, i32) {
    %c0_i32 = arith.constant 0 : i32
    %c0_i32_0 = arith.constant 0 : i32
    %c0_i32_1 = arith.constant 0 : i32
    return %c0_i32, %c0_i32_0 : i32, i32
  }
  func.func @transform_11(%arg0: i32) -> (i32, i32) {
    %c0_i32 = arith.constant 0 : i32
    %c0_i32_0 = arith.constant 0 : i32
    return %arg0, %c0_i32 : i32, i32
  }
}

</mosaic_0001>

<llo_original>
// kernel: tpu_custom_call.1
$region0: #{tpu_custom_call.1}
  #allocation0 [shape = 'u32[]', space=smem, size = 0x4, offset = 0x4, fixed_abs, tag = 'smem constant byte address 0x4 - core index']
  #allocation1 [shape = 'u32[144,128]{1,0:T(1,128)}', space=vmem, size = 0x12000, scoped, tag = 'internal scratch']
  %s0 = inlined_call_operand.hbm [shape: bf16[1,3,6272], index: 0, kind: input, shape index: {}]
  %s1 = inlined_call_operand.vmem [shape: bf16[8,27], index: 1, kind: input, shape index: {}]
  %s2 = inlined_call_operand.vmem [shape: f32[8,1], index: 2, kind: input, shape index: {}]
  %s3 = inlined_call_operand.vmem [shape: bf16[16,72], index: 3, kind: input, shape index: {}]
  %s4 = inlined_call_operand.vmem [shape: f32[16,1], index: 4, kind: input, shape index: {}]
  %s5 = inlined_call_operand.hbm [shape: bf16[64,256], index: 5, kind: input, shape index: {}]
  %s6 = inlined_call_operand.vmem [shape: f32[1,256], index: 6, kind: input, shape index: {}]
  %s7 = inlined_call_operand.hbm [shape: bf16[256,128], index: 7, kind: input, shape index: {}]
  %s8 = inlined_call_operand.vmem [shape: f32[1,128], index: 8, kind: input, shape index: {}]
  %s9 = inlined_call_operand.hbm [shape: bf16[128,128], index: 9, kind: input, shape index: {}]
  %s10 = inlined_call_operand.vmem [shape: f32[1,128], index: 10, kind: input, shape index: {}]
  %s11 = inlined_call_operand.hbm [shape: f32[8,128], index: 11, kind: output, shape index: {}]
  %s12 = sld [smem:[#allocation0]]
  $region70: #{tpu_custom_call.1} parent=0
    _
  %s14 = ssub.s32 1, %s12
  %s15 = scalar_select 0, %s14, %s12
  $region1: #{tpu_custom_call.1} parent=0
    #allocation2 [shape = 'u8[50176]{0}', space=vmem, size = 0xc400, scoped, tag = 'input window, operand 0, single buffered']
    #allocation3 [shape = 's32[1]{0}', space=sflag, size = 0x4, scoped, tag = 'scoped memory for tpu_custom_call.1']
    #allocation4 [shape = 's32[1]{0}', space=sflag, size = 0x4, scoped, tag = 'scoped memory for tpu_custom_call.1']
    #allocation5 [shape = 'u8[32768]{0}', space=vmem, size = 0x8000, scoped, tag = 'input window, operand 5, single buffered']
    #allocation6 [shape = 's32[1]{0}', space=sflag, size = 0x4, scoped, tag = 'scoped memory for tpu_custom_call.1']
    #allocation7 [shape = 'u8[65536]{0}', space=vmem, size = 0x10000, scoped, tag = 'input window, operand 7, single buffered']
    #allocation8 [shape = 'u8[32768]{0}', space=vmem, size = 0x8000, scoped, tag = 'input window, operand 9, single buffered']
    #allocation9 [shape = 's32[1]{0}', space=sflag, size = 0x4, scoped, tag = 'scoped memory for tpu_custom_call.1']
    #allocation10 [shape = 'u8[4096]{0}', space=vmem, size = 0x1000, scoped, tag = 'output window, operand 0, single buffered']
    %16 = vsyncpa [#allocation3], 0
    %17 = vsyncpa [#allocation6], 0
    %18 = vsyncpa [#allocation9], 0
    %19 = vsyncpa [#allocation4], 0
    // Predicated region
    $region2: #{tpu_custom_call.1} parent=1 // pred_check
      _
    $region3: #{tpu_custom_call.1} parent=1 // pred_check_branch
      %21 = sbr.rel (0) target = $region5
    $region4: #{tpu_custom_call.1} parent=1 // pred_region
      %s23 = ssub.s32 1568, 1568
      %24 = vsyncadd [#allocation3], %s23
      %s26 = sshll.u32 [#allocation2], 4
      %s27 = int_to_ptr.vmem [resolvable:$true] %s26
      %29 = dma.hbm_to_vmem [thread:$0]  %s0, 1568, %s27, [#allocation3]
    $region5: #{tpu_custom_call.1} parent=1 // pred_fallthru
      _
    // Predicated region
    $region6: #{tpu_custom_call.1} parent=1 // pred_check
      _
    $region7: #{tpu_custom_call.1} parent=1 // pred_check_branch
      %31 = sbr.rel (0) target = $region9
    $region8: #{tpu_custom_call.1} parent=1 // pred_region
      _
    $region9: #{tpu_custom_call.1} parent=1 // pred_fallthru
      _
    // Predicated region
    $region10: #{tpu_custom_call.1} parent=1 // pred_check
      _
    $region11: #{tpu_custom_call.1} parent=1 // pred_check_branch
      %33 = sbr.rel (0) target = $region13
    $region12: #{tpu_custom_call.1} parent=1 // pred_region
      _
    $region13: #{tpu_custom_call.1} parent=1 // pred_fallthru
      _
    // Predicated region
    $region14: #{tpu_custom_call.1} parent=1 // pred_check
      _
    $region15: #{tpu_custom_call.1} parent=1 // pred_check_branch
      %35 = sbr.rel (0) target = $region17
    $region16: #{tpu_custom_call.1} parent=1 // pred_region
      _
    $region17: #{tpu_custom_call.1} parent=1 // pred_fallthru
      _
    // Predicated region
    $region18: #{tpu_custom_call.1} parent=1 // pred_check
      _
    $region19: #{tpu_custom_call.1} parent=1 // pred_check_branch
      %37 = sbr.rel (0) target = $region21
    $region20: #{tpu_custom_call.1} parent=1 // pred_region
      _
    $region21: #{tpu_custom_call.1} parent=1 // pred_fallthru
      _
    // Predicated region
    $region22: #{tpu_custom_call.1} parent=1 // pred_check
      _
    $region23: #{tpu_custom_call.1} parent=1 // pred_check_branch
      %39 = sbr.rel (0) target = $region25
    $region24: #{tpu_custom_call.1} parent=1 // pred_region
      %s41 = ssub.s32 1024, 1024
      %42 = vsyncadd [#allocation6], %s41
      %s43 = sshll.u32 [#allocation5], 4
      %s44 = int_to_ptr.vmem [resolvable:$true] %s43
      %49 = dma.hbm_to_vmem [thread:$0]  %s5, 1024, %s44, [#allocation6], 128, 128, 8
    $region25: #{tpu_custom_call.1} parent=1 // pred_fallthru
      _
    // Predicated region
    $region26: #{tpu_custom_call.1} parent=1 // pred_check
      _
    $region27: #{tpu_custom_call.1} parent=1 // pred_check_branch
      %51 = sbr.rel (0) target = $region29
    $region28: #{tpu_custom_call.1} parent=1 // pred_region
      _
    $region29: #{tpu_custom_call.1} parent=1 // pred_fallthru
      _
    // Predicated region
    $region30: #{tpu_custom_call.1} parent=1 // pred_check
      _
    $region31: #{tpu_custom_call.1} parent=1 // pred_check_branch
      %53 = sbr.rel (0) target = $region33
    $region32: #{tpu_custom_call.1} parent=1 // pred_region
      %s55 = ssub.s32 2048, 2048
      %56 = vsyncadd [#allocation6], %s55
      %s57 = sshll.u32 [#allocation7], 4
      %s58 = int_to_ptr.vmem [resolvable:$true] %s57
      %63 = dma.hbm_to_vmem [thread:$0]  %s7, 2048, %s58, [#allocation6], 64, 64, 4
    $region33: #{tpu_custom_call.1} parent=1 // pred_fallthru
      _
    // Predicated region
    $region34: #{tpu_custom_call.1} parent=1 // pred_check
      _
    $region35: #{tpu_custom_call.1} parent=1 // pred_check_branch
      %65 = sbr.rel (0) target = $region37
    $region36: #{tpu_custom_call.1} parent=1 // pred_region
      _
    $region37: #{tpu_custom_call.1} parent=1 // pred_fallthru
      _
    // Predicated region
    $region38: #{tpu_custom_call.1} parent=1 // pred_check
      _
    $region39: #{tpu_custom_call.1} parent=1 // pred_check_branch
      %67 = sbr.rel (0) target = $region41
    $region40: #{tpu_custom_call.1} parent=1 // pred_region
      %s69 = ssub.s32 1024, 1024
      %70 = vsyncadd [#allocation9], %s69
      %s71 = sshll.u32 [#allocation8], 4
      %s72 = int_to_ptr.vmem [resolvable:$true] %s71
      %77 = dma.hbm_to_vmem [thread:$0]  %s9, 1024, %s72, [#allocation9], 64, 64, 4
    $region41: #{tpu_custom_call.1} parent=1 // pred_fallthru
      _
    // Predicated region
    $region42: #{tpu_custom_call.1} parent=1 // pred_check
      _
    $region43: #{tpu_custom_call.1} parent=1 // pred_check_branch
      %79 = sbr.rel (0) target = $region45
    $region44: #{tpu_custom_call.1} parent=1 // pred_region
      _
    $region45: #{tpu_custom_call.1} parent=1 // pred_fallthru
      _
    // Predicated region
    $region46: #{tpu_custom_call.1} parent=1 // pred_check
      _
    $region47: #{tpu_custom_call.1} parent=1 // pred_check_branch
      %81 = sbr.rel (0) target = $region49
    $region48: #{tpu_custom_call.1} parent=1 // pred_region
      %82 = dma.done [#allocation3], 1568
    $region49: #{tpu_custom_call.1} parent=1 // pred_fallthru
      _
    // Predicated region
    $region50: #{tpu_custom_call.1} parent=1 // pred_check
      _
    $region51: #{tpu_custom_call.1} parent=1 // pred_check_branch
      %84 = sbr.rel (0) target = $region53
    $region52: #{tpu_custom_call.1} parent=1 // pred_region
      %85 = dma.done [#allocation6], 1024
    $region53: #{tpu_custom_call.1} parent=1 // pred_fallthru
      _
    // Predicated region
    $region54: #{tpu_custom_call.1} parent=1 // pred_check
      _
    $region55: #{tpu_custom_call.1} parent=1 // pred_check_branch
      %87 = sbr.rel (0) target = $region57
    $region56: #{tpu_custom_call.1} parent=1 // pred_region
      %88 = dma.done [#allocation6], 2048
    $region57: #{tpu_custom_call.1} parent=1 // pred_fallthru
      _
    // Predicated region
    $region58: #{tpu_custom_call.1} parent=1 // pred_check
      _
    $region59: #{tpu_custom_call.1} parent=1 // pred_check_branch
      %90 = sbr.rel (0) target = $region61
    $region60: #{tpu_custom_call.1} parent=1 // pred_region
      %91 = dma.done [#allocation9], 1024
    $region61: #{tpu_custom_call.1} parent=1 // pred_fallthru
      _
    %v93 = vld [vmem:[#allocation2] sm:$0xff]
    %v94 = vld [vmem:[#allocation2 + $0x8] sm:$0xff]
    %v95 = vld [vmem:[#allocation2 + $0x10] sm:$0xff]
    %v96 = vld [vmem:[#allocation2 + $0x18] sm:$0xff]
    %v97 = vld [vmem:[#allocation2 + $0x20] sm:$0xff]
    %v98 = vld [vmem:[#allocation2 + $0x28] sm:$0xff]
    %v99 = vld [vmem:[#allocation2 + $0x30] sm:$0xff]
    %v100 = vld [vmem:[#allocation2 + $0x38] sm:$0xff]
    %v101 = vld [vmem:[#allocation2 + $0x40] sm:$0xff]
    %v102 = vld [vmem:[#allocation2 + $0x48] sm:$0xff]
    %v103 = vld [vmem:[#allocation2 + $0x50] sm:$0xff]
    %v104 = vld [vmem:[#allocation2 + $0x58] sm:$0xff]
    %v105 = vunpack.c.l.bf16 %v93
    %v106 = vunpack.c.h.bf16 %v93
    %v107 = vunpack.c.l.bf16 %v94
    %v108 = vunpack.c.h.bf16 %v94
    %v109 = vunpack.c.l.bf16 %v95
    %v110 = vunpack.c.h.bf16 %v95
    %v111 = vunpack.c.l.bf16 %v96
    %v112 = vunpack.c.h.bf16 %v96
    %v113 = vunpack.c.l.bf16 %v97
    %v114 = vunpack.c.h.bf16 %v97
    %v115 = vunpack.c.l.bf16 %v98
    %v116 = vunpack.c.h.bf16 %v98
    %v117 = vunpack.c.l.bf16 %v99
    %v118 = vunpack.c.h.bf16 %v99
    %v119 = vunpack.c.l.bf16 %v100
    %v120 = vunpack.c.h.bf16 %v100
    %v121 = vunpack.c.l.bf16 %v101
    %v122 = vunpack.c.h.bf16 %v101
    %v123 = vunpack.c.l.bf16 %v102
    %v124 = vunpack.c.h.bf16 %v102
    %v125 = vunpack.c.l.bf16 %v103
    %v126 = vunpack.c.h.bf16 %v103
    %v127 = vunpack.c.l.bf16 %v104
    %v128 = vunpack.c.h.bf16 %v104
    %v152 = vcombine.high %v105, %v105
    %v153 = vcombine.high %v106, %v106
    %v154 = vcombine.high %v107, %v107
    %v155 = vcombine.high %v108, %v108
    %v156 = vcombine.high %v109, %v109
    %v157 = vcombine.high %v110, %v110
    %v158 = vcombine.high %v111, %v111
    %v159 = vcombine.high %v112, %v112
    %v160 = vcombine.high %v113, %v113
    %v161 = vcombine.high %v114, %v114
    %v162 = vcombine.high %v115, %v115
    %v163 = vcombine.high %v116, %v116
    %v164 = vcombine.high %v117, %v117
    %v165 = vcombine.high %v118, %v118
    %v166 = vcombine.high %v119, %v119
    %v167 = vcombine.high %v120, %v120
    %v168 = vcombine.high %v121, %v121
    %v169 = vcombine.high %v122, %v122
    %v170 = vcombine.high %v123, %v123
    %v171 = vcombine.high %v124, %v124
    %v172 = vcombine.high %v125, %v125
    %v173 = vcombine.high %v126, %v126
    %v196 = vrot.slane %v105, 5
    %v197 = vrot.slane %v152, 5
    %v198 = vrot.slane %v106, 5
    %v199 = vrot.slane %v153, 5
    %v200 = vrot.slane %v107, 5
    %v201 = vrot.slane %v154, 5
    %v202 = vrot.slane %v108, 5
    %v203 = vrot.slane %v155, 5
    %v204 = vrot.slane %v109, 5
    %v205 = vrot.slane %v156, 5
    %v206 = vrot.slane %v110, 5
    %v207 = vrot.slane %v157, 5
    %v208 = vrot.slane %v111, 5
    %v209 = vrot.slane %v158, 5
    %v210 = vrot.slane %v112, 5
    %v211 = vrot.slane %v159, 5
    %v212 = vrot.slane %v113, 5
    %v213 = vrot.slane %v160, 5
    %v214 = vrot.slane %v114, 5
    %v215 = vrot.slane %v161, 5
    %v216 = vrot.slane %v115, 5
    %v217 = vrot.slane %v162, 5
    %v218 = vrot.slane %v116, 5
    %v219 = vrot.slane %v163, 5
    %v220 = vrot.slane %v117, 5
    %v221 = vrot.slane %v164, 5
    %v222 = vrot.slane %v118, 5
    %v223 = vrot.slane %v165, 5
    %v224 = vrot.slane %v119, 5
    %v225 = vrot.slane %v166, 5
    %v226 = vrot.slane %v120, 5
    %v227 = vrot.slane %v167, 5
    %v228 = vrot.slane %v121, 5
    %v229 = vrot.slane %v168, 5
    %v230 = vrot.slane %v122, 5
    %v231 = vrot.slane %v169, 5
    %v232 = vrot.slane %v123, 5
    %v233 = vrot.slane %v170, 5
    %v234 = vrot.slane %v124, 5
    %v235 = vrot.slane %v171, 5
    %v236 = vrot.slane %v125, 5
    %v237 = vrot.slane %v172, 5
    %v238 = vrot.slane %v126, 5
    %v239 = vrot.slane %v173, 5
    %v240 = vrot.slane %v127, 5
    %241 = vrot.lane.b32.xlu0 %v196, 120
    %v242 = vpop.permute.xlu0 %241
    %243 = vrot.lane.b32.xlu0 %v197, 120
    %v244 = vpop.permute.xlu0 %243
    %245 = vrot.lane.b32.xlu0 %v198, 120
    %v246 = vpop.permute.xlu0 %245
    %247 = vrot.lane.b32.xlu0 %v199, 120
    %v248 = vpop.permute.xlu0 %247
    %249 = vrot.lane.b32.xlu0 %v200, 120
    %v250 = vpop.permute.xlu0 %249
    %251 = vrot.lane.b32.xlu0 %v201, 120
    %v252 = vpop.permute.xlu0 %251
    %253 = vrot.lane.b32.xlu0 %v202, 120
    %v254 = vpop.permute.xlu0 %253
    %255 = vrot.lane.b32.xlu0 %v203, 120
    %v256 = vpop.permute.xlu0 %255
    %257 = vrot.lane.b32.xlu0 %v204, 120
    %v258 = vpop.permute.xlu0 %257
    %259 = vrot.lane.b32.xlu0 %v205, 120
    %v260 = vpop.permute.xlu0 %259
    %261 = vrot.lane.b32.xlu0 %v206, 120
    %v262 = vpop.permute.xlu0 %261
    %263 = vrot.lane.b32.xlu0 %v207, 120
    %v264 = vpop.permute.xlu0 %263
    %265 = vrot.lane.b32.xlu0 %v208, 120
    %v266 = vpop.permute.xlu0 %265
    %267 = vrot.lane.b32.xlu0 %v209, 120
    %v268 = vpop.permute.xlu0 %267
    %269 = vrot.lane.b32.xlu0 %v210, 120
    %v270 = vpop.permute.xlu0 %269
    %271 = vrot.lane.b32.xlu0 %v211, 120
    %v272 = vpop.permute.xlu0 %271
    %273 = vrot.lane.b32.xlu0 %v212, 120
    %v274 = vpop.permute.xlu0 %273
    %275 = vrot.lane.b32.xlu0 %v213, 120
    %v276 = vpop.permute.xlu0 %275
    %277 = vrot.lane.b32.xlu0 %v214, 120
    %v278 = vpop.permute.xlu0 %277
    %279 = vrot.lane.b32.xlu0 %v215, 120
    %v280 = vpop.permute.xlu0 %279
    %281 = vrot.lane.b32.xlu0 %v216, 120
    %v282 = vpop.permute.xlu0 %281
    %283 = vrot.lane.b32.xlu0 %v217, 120
    %v284 = vpop.permute.xlu0 %283
    %285 = vrot.lane.b32.xlu0 %v218, 120
    %v286 = vpop.permute.xlu0 %285
    %287 = vrot.lane.b32.xlu0 %v219, 120
    %v288 = vpop.permute.xlu0 %287
    %289 = vrot.lane.b32.xlu0 %v220, 120
    %v290 = vpop.permute.xlu0 %289
    %291 = vrot.lane.b32.xlu0 %v221, 120
    %v292 = vpop.permute.xlu0 %291
    %293 = vrot.lane.b32.xlu0 %v222, 120
    %v294 = vpop.permute.xlu0 %293
    %295 = vrot.lane.b32.xlu0 %v223, 120
    %v296 = vpop.permute.xlu0 %295
    %297 = vrot.lane.b32.xlu0 %v224, 120
    %v298 = vpop.permute.xlu0 %297
    %299 = vrot.lane.b32.xlu0 %v225, 120
    %v300 = vpop.permute.xlu0 %299
    %301 = vrot.lane.b32.xlu0 %v226, 120
    %v302 = vpop.permute.xlu0 %301
    %303 = vrot.lane.b32.xlu0 %v227, 120
    %v304 = vpop.permute.xlu0 %303
    %305 = vrot.lane.b32.xlu0 %v228, 120
    %v306 = vpop.permute.xlu0 %305
    %307 = vrot.lane.b32.xlu0 %v229, 120
    %v308 = vpop.permute.xlu0 %307
    %309 = vrot.lane.b32.xlu0 %v230, 120
    %v310 = vpop.permute.xlu0 %309
    %311 = vrot.lane.b32.xlu0 %v231, 120
    %v312 = vpop.permute.xlu0 %311
    %313 = vrot.lane.b32.xlu0 %v232, 120
    %v314 = vpop.permute.xlu0 %313
    %315 = vrot.lane.b32.xlu0 %v233, 120
    %v316 = vpop.permute.xlu0 %315
    %317 = vrot.lane.b32.xlu0 %v234, 120
    %v318 = vpop.permute.xlu0 %317
    %319 = vrot.lane.b32.xlu0 %v235, 120
    %v320 = vpop.permute.xlu0 %319
    %321 = vrot.lane.b32.xlu0 %v236, 120
    %v322 = vpop.permute.xlu0 %321
    %323 = vrot.lane.b32.xlu0 %v237, 120
    %v324 = vpop.permute.xlu0 %323
    %325 = vrot.lane.b32.xlu0 %v238, 120
    %v326 = vpop.permute.xlu0 %325
    %327 = vrot.lane.b32.xlu0 %v239, 120
    %v328 = vpop.permute.xlu0 %327
    %329 = vrot.lane.b32.xlu0 %v240, 120
    %v330 = vpop.permute.xlu0 %329
    %vm331 = vcmask 982016
    %v332 = vsel %vm331, %v242, %v244
    %v333 = vsel %vm331, %v244, %v246
    %v334 = vsel %vm331, %v246, %v248
    %v335 = vsel %vm331, %v248, %v250
    %v336 = vsel %vm331, %v250, %v252
    %v337 = vsel %vm331, %v252, %v254
    %v338 = vsel %vm331, %v254, %v256
    %v339 = vsel %vm331, %v256, %v258
    %v340 = vsel %vm331, %v258, %v260
    %v341 = vsel %vm331, %v260, %v262
    %v342 = vsel %vm331, %v262, %v264
    %v343 = vsel %vm331, %v264, %v266
    %v344 = vsel %vm331, %v266, %v268
    %v345 = vsel %vm331, %v268, %v270
    %v346 = vsel %vm331, %v270, %v272
    %v347 = vsel %vm331, %v272, %v274
    %v348 = vsel %vm331, %v274, %v276
    %v349 = vsel %vm331, %v276, %v278
    %v350 = vsel %vm331, %v278, %v280
    %v351 = vsel %vm331, %v280, %v282
    %v352 = vsel %vm331, %v282, %v284
    %v353 = vsel %vm331, %v284, %v286
    %v354 = vsel %vm331, %v286, %v288
    %v355 = vsel %vm331, %v288, %v290
    %v356 = vsel %vm331, %v290, %v292
    %v357 = vsel %vm331, %v292, %v294
    %v358 = vsel %vm331, %v294, %v296
    %v359 = vsel %vm331, %v296, %v298
    %v360 = vsel %vm331, %v298, %v300
    %v361 = vsel %vm331, %v300, %v302
    %v362 = vsel %vm331, %v302, %v304
    %v363 = vsel %vm331, %v304, %v306
    %v364 = vsel %vm331, %v306, %v308
    %v365 = vsel %vm331, %v308, %v310
    %v366 = vsel %vm331, %v310, %v312
    %v367 = vsel %vm331, %v312, %v314
    %v368 = vsel %vm331, %v314, %v316
    %v369 = vsel %vm331, %v316, %v318
    %v370 = vsel %vm331, %v318, %v320
    %v371 = vsel %vm331, %v320, %v322
    %v372 = vsel %vm331, %v322, %v324
    %v373 = vsel %vm331, %v324, %v326
    %v374 = vsel %vm331, %v326, %v328
    %v375 = vsel %vm331, %v328, %v330
    %v420 = vrot.slane %v105, 2
    %v421 = vrot.slane %v152, 2
    %v422 = vrot.slane %v106, 2
    %v423 = vrot.slane %v153, 2
    %v424 = vrot.slane %v107, 2
    %v425 = vrot.slane %v154, 2
    %v426 = vrot.slane %v108, 2
    %v427 = vrot.slane %v155, 2
    %v428 = vrot.slane %v109, 2
    %v429 = vrot.slane %v156, 2
    %v430 = vrot.slane %v110, 2
    %v431 = vrot.slane %v157, 2
    %v432 = vrot.slane %v111, 2
    %v433 = vrot.slane %v158, 2
    %v434 = vrot.slane %v112, 2
    %v435 = vrot.slane %v159, 2
    %v436 = vrot.slane %v113, 2
    %v437 = vrot.slane %v160, 2
    %v438 = vrot.slane %v114, 2
    %v439 = vrot.slane %v161, 2
    %v440 = vrot.slane %v115, 2
    %v441 = vrot.slane %v162, 2
    %v442 = vrot.slane %v116, 2
    %v443 = vrot.slane %v163, 2
    %v444 = vrot.slane %v117, 2
    %v445 = vrot.slane %v164, 2
    %v446 = vrot.slane %v118, 2
    %v447 = vrot.slane %v165, 2
    %v448 = vrot.slane %v119, 2
    %v449 = vrot.slane %v166, 2
    %v450 = vrot.slane %v120, 2
    %v451 = vrot.slane %v167, 2
    %v452 = vrot.slane %v121, 2
    %v453 = vrot.slane %v168, 2
    %v454 = vrot.slane %v122, 2
    %v455 = vrot.slane %v169, 2
    %v456 = vrot.slane %v123, 2
    %v457 = vrot.slane %v170, 2
    %v458 = vrot.slane %v124, 2
    %v459 = vrot.slane %v171, 2
    %v460 = vrot.slane %v125, 2
    %v461 = vrot.slane %v172, 2
    %v462 = vrot.slane %v126, 2
    %v463 = vrot.slane %v173, 2
    %v464 = vrot.slane %v127, 2
    %465 = vrot.lane.b32.xlu0 %v420, 112
    %v466 = vpop.permute.xlu0 %465
    %467 = vrot.lane.b32.xlu0 %v421, 112
    %v468 = vpop.permute.xlu0 %467
    %469 = vrot.lane.b32.xlu0 %v422, 112
    %v470 = vpop.permute.xlu0 %469
    %471 = vrot.lane.b32.xlu0 %v423, 112
    %v472 = vpop.permute.xlu0 %471
    %473 = vrot.lane.b32.xlu0 %v424, 112
    %v474 = vpop.permute.xlu0 %473
    %475 = vrot.lane.b32.xlu0 %v425, 112
    %v476 = vpop.permute.xlu0 %475
    %477 = vrot.lane.b32.xlu0 %v426, 112
    %v478 = vpop.permute.xlu0 %477
    %479 = vrot.lane.b32.xlu0 %v427, 112
    %v480 = vpop.permute.xlu0 %479
    %481 = vrot.lane.b32.xlu0 %v428, 112
    %v482 = vpop.permute.xlu0 %481
    %483 = vrot.lane.b32.xlu0 %v429, 112
    %v484 = vpop.permute.xlu0 %483
    %485 = vrot.lane.b32.xlu0 %v430, 112
    %v486 = vpop.permute.xlu0 %485
    %487 = vrot.lane.b32.xlu0 %v431, 112
    %v488 = vpop.permute.xlu0 %487
    %489 = vrot.lane.b32.xlu0 %v432, 112
    %v490 = vpop.permute.xlu0 %489
    %491 = vrot.lane.b32.xlu0 %v433, 112
    %v492 = vpop.permute.xlu0 %491
    %493 = vrot.lane.b32.xlu0 %v434, 112
    %v494 = vpop.permute.xlu0 %493
    %495 = vrot.lane.b32.xlu0 %v435, 112
    %v496 = vpop.permute.xlu0 %495
    %497 = vrot.lane.b32.xlu0 %v436, 112
    %v498 = vpop.permute.xlu0 %497
    %499 = vrot.lane.b32.xlu0 %v437, 112
    %v500 = vpop.permute.xlu0 %499
    %501 = vrot.lane.b32.xlu0 %v438, 112
    %v502 = vpop.permute.xlu0 %501
    %503 = vrot.lane.b32.xlu0 %v439, 112
    %v504 = vpop.permute.xlu0 %503
    %505 = vrot.lane.b32.xlu0 %v440, 112
    %v506 = vpop.permute.xlu0 %505
    %507 = vrot.lane.b32.xlu0 %v441, 112
    %v508 = vpop.permute.xlu0 %507
    %509 = vrot.lane.b32.xlu0 %v442, 112
    %v510 = vpop.permute.xlu0 %509
    %511 = vrot.lane.b32.xlu0 %v443, 112
    %v512 = vpop.permute.xlu0 %511
    %513 = vrot.lane.b32.xlu0 %v444, 112
    %v514 = vpop.permute.xlu0 %513
    %515 = vrot.lane.b32.xlu0 %v445, 112
    %v516 = vpop.permute.xlu0 %515
    %517 = vrot.lane.b32.xlu0 %v446, 112
    %v518 = vpop.permute.xlu0 %517
    %519 = vrot.lane.b32.xlu0 %v447, 112
    %v520 = vpop.permute.xlu0 %519
    %521 = vrot.lane.b32.xlu0 %v448, 112
    %v522 = vpop.permute.xlu0 %521
    %523 = vrot.lane.b32.xlu0 %v449, 112
    %v524 = vpop.permute.xlu0 %523
    %525 = vrot.lane.b32.xlu0 %v450, 112
    %v526 = vpop.permute.xlu0 %525
    %527 = vrot.lane.b32.xlu0 %v451, 112
    %v528 = vpop.permute.xlu0 %527
    %529 = vrot.lane.b32.xlu0 %v452, 112
    %v530 = vpop.permute.xlu0 %529
    %531 = vrot.lane.b32.xlu0 %v453, 112
    %v532 = vpop.permute.xlu0 %531
    %533 = vrot.lane.b32.xlu0 %v454, 112
    %v534 = vpop.permute.xlu0 %533
    %535 = vrot.lane.b32.xlu0 %v455, 112
    %v536 = vpop.permute.xlu0 %535
    %537 = vrot.lane.b32.xlu0 %v456, 112
    %v538 = vpop.permute.xlu0 %537
    %539 = vrot.lane.b32.xlu0 %v457, 112
    %v540 = vpop.permute.xlu0 %539
    %541 = vrot.lane.b32.xlu0 %v458, 112
    %v542 = vpop.permute.xlu0 %541
    %543 = vrot.lane.b32.xlu0 %v459, 112
    %v544 = vpop.permute.xlu0 %543
    %545 = vrot.lane.b32.xlu0 %v460, 112
    %v546 = vpop.permute.xlu0 %545
    %547 = vrot.lane.b32.xlu0 %v461, 112
    %v548 = vpop.permute.xlu0 %547
    %549 = vrot.lane.b32.xlu0 %v462, 112
    %v550 = vpop.permute.xlu0 %549
    %551 = vrot.lane.b32.xlu0 %v463, 112
    %v552 = vpop.permute.xlu0 %551
    %553 = vrot.lane.b32.xlu0 %v464, 112
    %v554 = vpop.permute.xlu0 %553
    %vm555 = vcmask 916480
    %v556 = vsel %vm555, %v466, %v468
    %v557 = vsel %vm555, %v468, %v470
    %v558 = vsel %vm555, %v470, %v472
    %v559 = vsel %vm555, %v472, %v474
    %v560 = vsel %vm555, %v474, %v476
    %v561 = vsel %vm555, %v476, %v478
    %v562 = vsel %vm555, %v478, %v480
    %v563 = vsel %vm555, %v480, %v482
    %v564 = vsel %vm555, %v482, %v484
    %v565 = vsel %vm555, %v484, %v486
    %v566 = vsel %vm555, %v486, %v488
    %v567 = vsel %vm555, %v488, %v490
    %v568 = vsel %vm555, %v490, %v492
    %v569 = vsel %vm555, %v492, %v494
    %v570 = vsel %vm555, %v494, %v496
    %v571 = vsel %vm555, %v496, %v498
    %v572 = vsel %vm555, %v498, %v500
    %v573 = vsel %vm555, %v500, %v502
    %v574 = vsel %vm555, %v502, %v504
    %v575 = vsel %vm555, %v504, %v506
    %v576 = vsel %vm555, %v506, %v508
    %v577 = vsel %vm555, %v508, %v510
    %v578 = vsel %vm555, %v510, %v512
    %v579 = vsel %vm555, %v512, %v514
    %v580 = vsel %vm555, %v514, %v516
    %v581 = vsel %vm555, %v516, %v518
    %v582 = vsel %vm555, %v518, %v520
    %v583 = vsel %vm555, %v520, %v522
    %v584 = vsel %vm555, %v522, %v524
    %v585 = vsel %vm555, %v524, %v526
    %v586 = vsel %vm555, %v526, %v528
    %v587 = vsel %vm555, %v528, %v530
    %v588 = vsel %vm555, %v530, %v532
    %v589 = vsel %vm555, %v532, %v534
    %v590 = vsel %vm555, %v534, %v536
    %v591 = vsel %vm555, %v536, %v538
    %v592 = vsel %vm555, %v538, %v540
    %v593 = vsel %vm555, %v540, %v542
    %v594 = vsel %vm555, %v542, %v544
    %v595 = vsel %vm555, %v544, %v546
    %v596 = vsel %vm555, %v546, %v548
    %v597 = vsel %vm555, %v548, %v550
    %v598 = vsel %vm555, %v550, %v552
    %v599 = vsel %vm555, %v552, %v554
    %v645 = vcombine.high %v127, %v127
    %v646 = vrot.slane %v152, 7
    %v647 = vrot.slane %v106, 7
    %v648 = vrot.slane %v153, 7
    %v649 = vrot.slane %v107, 7
    %v650 = vrot.slane %v154, 7
    %v651 = vrot.slane %v108, 7
    %v652 = vrot.slane %v155, 7
    %v653 = vrot.slane %v109, 7
    %v654 = vrot.slane %v156, 7
    %v655 = vrot.slane %v110, 7
    %v656 = vrot.slane %v157, 7
    %v657 = vrot.slane %v111, 7
    %v658 = vrot.slane %v158, 7
    %v659 = vrot.slane %v112, 7
    %v660 = vrot.slane %v159, 7
    %v661 = vrot.slane %v113, 7
    %v662 = vrot.slane %v160, 7
    %v663 = vrot.slane %v114, 7
    %v664 = vrot.slane %v161, 7
    %v665 = vrot.slane %v115, 7
    %v666 = vrot.slane %v162, 7
    %v667 = vrot.slane %v116, 7
    %v668 = vrot.slane %v163, 7
    %v669 = vrot.slane %v117, 7
    %v670 = vrot.slane %v164, 7
    %v671 = vrot.slane %v118, 7
    %v672 = vrot.slane %v165, 7
    %v673 = vrot.slane %v119, 7
    %v674 = vrot.slane %v166, 7
    %v675 = vrot.slane %v120, 7
    %v676 = vrot.slane %v167, 7
    %v677 = vrot.slane %v121, 7
    %v678 = vrot.slane %v168, 7
    %v679 = vrot.slane %v122, 7
    %v680 = vrot.slane %v169, 7
    %v681 = vrot.slane %v123, 7
    %v682 = vrot.slane %v170, 7
    %v683 = vrot.slane %v124, 7
    %v684 = vrot.slane %v171, 7
    %v685 = vrot.slane %v125, 7
    %v686 = vrot.slane %v172, 7
    %v687 = vrot.slane %v126, 7
    %v688 = vrot.slane %v173, 7
    %v689 = vrot.slane %v127, 7
    %v690 = vrot.slane %v645, 7
    %691 = vrot.lane.b32.xlu0 %v646, 32
    %v692 = vpop.permute.xlu0 %691
    %693 = vrot.lane.b32.xlu0 %v647, 32
    %v694 = vpop.permute.xlu0 %693
    %695 = vrot.lane.b32.xlu0 %v648, 32
    %v696 = vpop.permute.xlu0 %695
    %697 = vrot.lane.b32.xlu0 %v649, 32
    %v698 = vpop.permute.xlu0 %697
    %699 = vrot.lane.b32.xlu0 %v650, 32
    %v700 = vpop.permute.xlu0 %699
    %701 = vrot.lane.b32.xlu0 %v651, 32
    %v702 = vpop.permute.xlu0 %701
    %703 = vrot.lane.b32.xlu0 %v652, 32
    %v704 = vpop.permute.xlu0 %703
    %705 = vrot.lane.b32.xlu0 %v653, 32
    %v706 = vpop.permute.xlu0 %705
    %707 = vrot.lane.b32.xlu0 %v654, 32
    %v708 = vpop.permute.xlu0 %707
    %709 = vrot.lane.b32.xlu0 %v655, 32
    %v710 = vpop.permute.xlu0 %709
    %711 = vrot.lane.b32.xlu0 %v656, 32
    %v712 = vpop.permute.xlu0 %711
    %713 = vrot.lane.b32.xlu0 %v657, 32
    %v714 = vpop.permute.xlu0 %713
    %715 = vrot.lane.b32.xlu0 %v658, 32
    %v716 = vpop.permute.xlu0 %715
    %717 = vrot.lane.b32.xlu0 %v659, 32
    %v718 = vpop.permute.xlu0 %717
    %719 = vrot.lane.b32.xlu0 %v660, 32
    %v720 = vpop.permute.xlu0 %719
    %721 = vrot.lane.b32.xlu0 %v661, 32
    %v722 = vpop.permute.xlu0 %721
    %723 = vrot.lane.b32.xlu0 %v662, 32
    %v724 = vpop.permute.xlu0 %723
    %725 = vrot.lane.b32.xlu0 %v663, 32
    %v726 = vpop.permute.xlu0 %725
    %727 = vrot.lane.b32.xlu0 %v664, 32
    %v728 = vpop.permute.xlu0 %727
    %729 = vrot.lane.b32.xlu0 %v665, 32
    %v730 = vpop.permute.xlu0 %729
    %731 = vrot.lane.b32.xlu0 %v666, 32
    %v732 = vpop.permute.xlu0 %731
    %733 = vrot.lane.b32.xlu0 %v667, 32
    %v734 = vpop.permute.xlu0 %733
    %735 = vrot.lane.b32.xlu0 %v668, 32
    %v736 = vpop.permute.xlu0 %735
    %737 = vrot.lane.b32.xlu0 %v669, 32
    %v738 = vpop.permute.xlu0 %737
    %739 = vrot.lane.b32.xlu0 %v670, 32
    %v740 = vpop.permute.xlu0 %739
    %741 = vrot.lane.b32.xlu0 %v671, 32
    %v742 = vpop.permute.xlu0 %741
    %743 = vrot.lane.b32.xlu0 %v672, 32
    %v744 = vpop.permute.xlu0 %743
    %745 = vrot.lane.b32.xlu0 %v673, 32
    %v746 = vpop.permute.xlu0 %745
    %747 = vrot.lane.b32.xlu0 %v674, 32
    %v748 = vpop.permute.xlu0 %747
    %749 = vrot.lane.b32.xlu0 %v675, 32
    %v750 = vpop.permute.xlu0 %749
    %751 = vrot.lane.b32.xlu0 %v676, 32
    %v752 = vpop.permute.xlu0 %751
    %753 = vrot.lane.b32.xlu0 %v677, 32
    %v754 = vpop.permute.xlu0 %753
    %755 = vrot.lane.b32.xlu0 %v678, 32
    %v756 = vpop.permute.xlu0 %755
    %757 = vrot.lane.b32.xlu0 %v679, 32
    %v758 = vpop.permute.xlu0 %757
    %759 = vrot.lane.b32.xlu0 %v680, 32
    %v760 = vpop.permute.xlu0 %759
    %761 = vrot.lane.b32.xlu0 %v681, 32
    %v762 = vpop.permute.xlu0 %761
    %763 = vrot.lane.b32.xlu0 %v682, 32
    %v764 = vpop.permute.xlu0 %763
    %765 = vrot.lane.b32.xlu0 %v683, 32
    %v766 = vpop.permute.xlu0 %765
    %767 = vrot.lane.b32.xlu0 %v684, 32
    %v768 = vpop.permute.xlu0 %767
    %769 = vrot.lane.b32.xlu0 %v685, 32
    %v770 = vpop.permute.xlu0 %769
    %771 = vrot.lane.b32.xlu0 %v686, 32
    %v772 = vpop.permute.xlu0 %771
    %773 = vrot.lane.b32.xlu0 %v687, 32
    %v774 = vpop.permute.xlu0 %773
    %775 = vrot.lane.b32.xlu0 %v688, 32
    %v776 = vpop.permute.xlu0 %775
    %777 = vrot.lane.b32.xlu0 %v689, 32
    %v778 = vpop.permute.xlu0 %777
    %779 = vrot.lane.b32.xlu0 %v690, 32
    %v780 = vpop.permute.xlu0 %779
    %vm781 = vcmask 261120
    %v782 = vsel %vm781, %v692, %v694
    %v783 = vsel %vm781, %v694, %v696
    %v784 = vsel %vm781, %v696, %v698
    %v785 = vsel %vm781, %v698, %v700
    %v786 = vsel %vm781, %v700, %v702
    %v787 = vsel %vm781, %v702, %v704
    %v788 = vsel %vm781, %v704, %v706
    %v789 = vsel %vm781, %v706, %v708
    %v790 = vsel %vm781, %v708, %v710
    %v791 = vsel %vm781, %v710, %v712
    %v792 = vsel %vm781, %v712, %v714
    %v793 = vsel %vm781, %v714, %v716
    %v794 = vsel %vm781, %v716, %v718
    %v795 = vsel %vm781, %v718, %v720
    %v796 = vsel %vm781, %v720, %v722
    %v797 = vsel %vm781, %v722, %v724
    %v798 = vsel %vm781, %v724, %v726
    %v799 = vsel %vm781, %v726, %v728
    %v800 = vsel %vm781, %v728, %v730
    %v801 = vsel %vm781, %v730, %v732
    %v802 = vsel %vm781, %v732, %v734
    %v803 = vsel %vm781, %v734, %v736
    %v804 = vsel %vm781, %v736, %v738
    %v805 = vsel %vm781, %v738, %v740
    %v806 = vsel %vm781, %v740, %v742
    %v807 = vsel %vm781, %v742, %v744
    %v808 = vsel %vm781, %v744, %v746
    %v809 = vsel %vm781, %v746, %v748
    %v810 = vsel %vm781, %v748, %v750
    %v811 = vsel %vm781, %v750, %v752
    %v812 = vsel %vm781, %v752, %v754
    %v813 = vsel %vm781, %v754, %v756
    %v814 = vsel %vm781, %v756, %v758
    %v815 = vsel %vm781, %v758, %v760
    %v816 = vsel %vm781, %v760, %v762
    %v817 = vsel %vm781, %v762, %v764
    %v818 = vsel %vm781, %v764, %v766
    %v819 = vsel %vm781, %v766, %v768
    %v820 = vsel %vm781, %v768, %v770
    %v821 = vsel %vm781, %v770, %v772
    %v822 = vsel %vm781, %v772, %v774
    %v823 = vsel %vm781, %v774, %v776
    %v824 = vsel %vm781, %v776, %v778
    %v825 = vsel %vm781, %v778, %v780
    %v870 = vcombine.low %v106, %v106
    %v871 = vcombine.low %v107, %v107
    %v872 = vcombine.low %v108, %v108
    %v873 = vcombine.low %v109, %v109
    %v874 = vcombine.low %v110, %v110
    %v875 = vcombine.low %v111, %v111
    %v876 = vcombine.low %v112, %v112
    %v877 = vcombine.low %v113, %v113
    %v878 = vcombine.low %v114, %v114
    %v879 = vcombine.low %v115, %v115
    %v880 = vcombine.low %v116, %v116
    %v881 = vcombine.low %v117, %v117
    %v882 = vcombine.low %v118, %v118
    %v883 = vcombine.low %v119, %v119
    %v884 = vcombine.low %v120, %v120
    %v885 = vcombine.low %v121, %v121
    %v886 = vcombine.low %v122, %v122
    %v887 = vcombine.low %v123, %v123
    %v888 = vcombine.low %v124, %v124
    %v889 = vcombine.low %v125, %v125
    %v890 = vcombine.low %v126, %v126
    %v891 = vcombine.low %v127, %v127
    %892 = vrot.lane.b32.xlu0 %v105, 24
    %v893 = vpop.permute.xlu0 %892
    %894 = vrot.lane.b32.xlu0 %v870, 24
    %v895 = vpop.permute.xlu0 %894
    %896 = vrot.lane.b32.xlu0 %v106, 24
    %v897 = vpop.permute.xlu0 %896
    %898 = vrot.lane.b32.xlu0 %v871, 24
    %v899 = vpop.permute.xlu0 %898
    %900 = vrot.lane.b32.xlu0 %v107, 24
    %v901 = vpop.permute.xlu0 %900
    %902 = vrot.lane.b32.xlu0 %v872, 24
    %v903 = vpop.permute.xlu0 %902
    %904 = vrot.lane.b32.xlu0 %v108, 24
    %v905 = vpop.permute.xlu0 %904
    %906 = vrot.lane.b32.xlu0 %v873, 24
    %v907 = vpop.permute.xlu0 %906
    %908 = vrot.lane.b32.xlu0 %v109, 24
    %v909 = vpop.permute.xlu0 %908
    %910 = vrot.lane.b32.xlu0 %v874, 24
    %v911 = vpop.permute.xlu0 %910
    %912 = vrot.lane.b32.xlu0 %v110, 24
    %v913 = vpop.permute.xlu0 %912
    %914 = vrot.lane.b32.xlu0 %v875, 24
    %v915 = vpop.permute.xlu0 %914
    %916 = vrot.lane.b32.xlu0 %v111, 24
    %v917 = vpop.permute.xlu0 %916
    %918 = vrot.lane.b32.xlu0 %v876, 24
    %v919 = vpop.permute.xlu0 %918
    %920 = vrot.lane.b32.xlu0 %v112, 24
    %v921 = vpop.permute.xlu0 %920
    %922 = vrot.lane.b32.xlu0 %v877, 24
    %v923 = vpop.permute.xlu0 %922
    %924 = vrot.lane.b32.xlu0 %v113, 24
    %v925 = vpop.permute.xlu0 %924
    %926 = vrot.lane.b32.xlu0 %v878, 24
    %v927 = vpop.permute.xlu0 %926
    %928 = vrot.lane.b32.xlu0 %v114, 24
    %v929 = vpop.permute.xlu0 %928
    %930 = vrot.lane.b32.xlu0 %v879, 24
    %v931 = vpop.permute.xlu0 %930
    %932 = vrot.lane.b32.xlu0 %v115, 24
    %v933 = vpop.permute.xlu0 %932
    %934 = vrot.lane.b32.xlu0 %v880, 24
    %v935 = vpop.permute.xlu0 %934
    %936 = vrot.lane.b32.xlu0 %v116, 24
    %v937 = vpop.permute.xlu0 %936
    %938 = vrot.lane.b32.xlu0 %v881, 24
    %v939 = vpop.permute.xlu0 %938
    %940 = vrot.lane.b32.xlu0 %v117, 24
    %v941 = vpop.permute.xlu0 %940
    %942 = vrot.lane.b32.xlu0 %v882, 24
    %v943 = vpop.permute.xlu0 %942
    %944 = vrot.lane.b32.xlu0 %v118, 24
    %v945 = vpop.permute.xlu0 %944
    %946 = vrot.lane.b32.xlu0 %v883, 24
    %v947 = vpop.permute.xlu0 %946
    %948 = vrot.lane.b32.xlu0 %v119, 24
    %v949 = vpop.permute.xlu0 %948
    %950 = vrot.lane.b32.xlu0 %v884, 24
    %v951 = vpop.permute.xlu0 %950
    %952 = vrot.lane.b32.xlu0 %v120, 24
    %v953 = vpop.permute.xlu0 %952
    %954 = vrot.lane.b32.xlu0 %v885, 24
    %v955 = vpop.permute.xlu0 %954
    %956 = vrot.lane.b32.xlu0 %v121, 24
    %v957 = vpop.permute.xlu0 %956
    %958 = vrot.lane.b32.xlu0 %v886, 24
    %v959 = vpop.permute.xlu0 %958
    %960 = vrot.lane.b32.xlu0 %v122, 24
    %v961 = vpop.permute.xlu0 %960
    %962 = vrot.lane.b32.xlu0 %v887, 24
    %v963 = vpop.permute.xlu0 %962
    %964 = vrot.lane.b32.xlu0 %v123, 24
    %v965 = vpop.permute.xlu0 %964
    %966 = vrot.lane.b32.xlu0 %v888, 24
    %v967 = vpop.permute.xlu0 %966
    %968 = vrot.lane.b32.xlu0 %v124, 24
    %v969 = vpop.permute.xlu0 %968
    %970 = vrot.lane.b32.xlu0 %v889, 24
    %v971 = vpop.permute.xlu0 %970
    %972 = vrot.lane.b32.xlu0 %v125, 24
    %v973 = vpop.permute.xlu0 %972
    %974 = vrot.lane.b32.xlu0 %v890, 24
    %v975 = vpop.permute.xlu0 %974
    %976 = vrot.lane.b32.xlu0 %v126, 24
    %v977 = vpop.permute.xlu0 %976
    %978 = vrot.lane.b32.xlu0 %v891, 24
    %v979 = vpop.permute.xlu0 %978
    %980 = vrot.lane.b32.xlu0 %v127, 24
    %v981 = vpop.permute.xlu0 %980
    %vm982 = vcmask 195584
    %v983 = vsel %vm982, %v893, %v895
    %v984 = vsel %vm982, %v895, %v897
    %v985 = vsel %vm982, %v897, %v899
    %v986 = vsel %vm982, %v899, %v901
    %v987 = vsel %vm982, %v901, %v903
    %v988 = vsel %vm982, %v903, %v905
    %v989 = vsel %vm982, %v905, %v907
    %v990 = vsel %vm982, %v907, %v909
    %v991 = vsel %vm982, %v909, %v911
    %v992 = vsel %vm982, %v911, %v913
    %v993 = vsel %vm982, %v913, %v915
    %v994 = vsel %vm982, %v915, %v917
    %v995 = vsel %vm982, %v917, %v919
    %v996 = vsel %vm982, %v919, %v921
    %v997 = vsel %vm982, %v921, %v923
    %v998 = vsel %vm982, %v923, %v925
    %v999 = vsel %vm982, %v925, %v927
    %v1000 = vsel %vm982, %v927, %v929
    %v1001 = vsel %vm982, %v929, %v931
    %v1002 = vsel %vm982, %v931, %v933
    %v1003 = vsel %vm982, %v933, %v935
    %v1004 = vsel %vm982, %v935, %v937
    %v1005 = vsel %vm982, %v937, %v939
    %v1006 = vsel %vm982, %v939, %v941
    %v1007 = vsel %vm982, %v941, %v943
    %v1008 = vsel %vm982, %v943, %v945
    %v1009 = vsel %vm982, %v945, %v947
    %v1010 = vsel %vm982, %v947, %v949
    %v1011 = vsel %vm982, %v949, %v951
    %v1012 = vsel %vm982, %v951, %v953
    %v1013 = vsel %vm982, %v953, %v955
    %v1014 = vsel %vm982, %v955, %v957
    %v1015 = vsel %vm982, %v957, %v959
    %v1016 = vsel %vm982, %v959, %v961
    %v1017 = vsel %vm982, %v961, %v963
    %v1018 = vsel %vm982, %v963, %v965
    %v1019 = vsel %vm982, %v965, %v967
    %v1020 = vsel %vm982, %v967, %v969
    %v1021 = vsel %vm982, %v969, %v971
    %v1022 = vsel %vm982, %v971, %v973
    %v1023 = vsel %vm982, %v973, %v975
    %v1024 = vsel %vm982, %v975, %v977
    %v1025 = vsel %vm982, %v977, %v979
    %v1026 = vsel %vm982, %v979, %v981
    %v1071 = vrot.slane %v152, 1
    %v1072 = vrot.slane %v106, 1
    %v1073 = vrot.slane %v153, 1
    %v1074 = vrot.slane %v107, 1
    %v1075 = vrot.slane %v154, 1
    %v1076 = vrot.slane %v108, 1
    %v1077 = vrot.slane %v155, 1
    %v1078 = vrot.slane %v109, 1
    %v1079 = vrot.slane %v156, 1
    %v1080 = vrot.slane %v110, 1
    %v1081 = vrot.slane %v157, 1
    %v1082 = vrot.slane %v111, 1
    %v1083 = vrot.slane %v158, 1
    %v1084 = vrot.slane %v112, 1
    %v1085 = vrot.slane %v159, 1
    %v1086 = vrot.slane %v113, 1
    %v1087 = vrot.slane %v160, 1
    %v1088 = vrot.slane %v114, 1
    %v1089 = vrot.slane %v161, 1
    %v1090 = vrot.slane %v115, 1
    %v1091 = vrot.slane %v162, 1
    %v1092 = vrot.slane %v116, 1
    %v1093 = vrot.slane %v163, 1
    %v1094 = vrot.slane %v117, 1
    %v1095 = vrot.slane %v164, 1
    %v1096 = vrot.slane %v118, 1
    %v1097 = vrot.slane %v165, 1
    %v1098 = vrot.slane %v119, 1
    %v1099 = vrot.slane %v166, 1
    %v1100 = vrot.slane %v120, 1
    %v1101 = vrot.slane %v167, 1
    %v1102 = vrot.slane %v121, 1
    %v1103 = vrot.slane %v168, 1
    %v1104 = vrot.slane %v122, 1
    %v1105 = vrot.slane %v169, 1
    %v1106 = vrot.slane %v123, 1
    %v1107 = vrot.slane %v170, 1
    %v1108 = vrot.slane %v124, 1
    %v1109 = vrot.slane %v171, 1
    %v1110 = vrot.slane %v125, 1
    %v1111 = vrot.slane %v172, 1
    %v1112 = vrot.slane %v126, 1
    %v1113 = vrot.slane %v173, 1
    %v1114 = vrot.slane %v127, 1
    %v1115 = vrot.slane %v645, 1
    %1116 = vrot.lane.b32.xlu0 %v1071, 16
    %v1117 = vpop.permute.xlu0 %1116
    %1118 = vrot.lane.b32.xlu0 %v1072, 16
    %v1119 = vpop.permute.xlu0 %1118
    %1120 = vrot.lane.b32.xlu0 %v1073, 16
    %v1121 = vpop.permute.xlu0 %1120
    %1122 = vrot.lane.b32.xlu0 %v1074, 16
    %v1123 = vpop.permute.xlu0 %1122
    %1124 = vrot.lane.b32.xlu0 %v1075, 16
    %v1125 = vpop.permute.xlu0 %1124
    %1126 = vrot.lane.b32.xlu0 %v1076, 16
    %v1127 = vpop.permute.xlu0 %1126
    %1128 = vrot.lane.b32.xlu0 %v1077, 16
    %v1129 = vpop.permute.xlu0 %1128
    %1130 = vrot.lane.b32.xlu0 %v1078, 16
    %v1131 = vpop.permute.xlu0 %1130
    %1132 = vrot.lane.b32.xlu0 %v1079, 16
    %v1133 = vpop.permute.xlu0 %1132
    %1134 = vrot.lane.b32.xlu0 %v1080, 16
    %v1135 = vpop.permute.xlu0 %1134
    %1136 = vrot.lane.b32.xlu0 %v1081, 16
    %v1137 = vpop.permute.xlu0 %1136
    %1138 = vrot.lane.b32.xlu0 %v1082, 16
    %v1139 = vpop.permute.xlu0 %1138
    %1140 = vrot.lane.b32.xlu0 %v1083, 16
    %v1141 = vpop.permute.xlu0 %1140
    %1142 = vrot.lane.b32.xlu0 %v1084, 16
    %v1143 = vpop.permute.xlu0 %1142
    %1144 = vrot.lane.b32.xlu0 %v1085, 16
    %v1145 = vpop.permute.xlu0 %1144
    %1146 = vrot.lane.b32.xlu0 %v1086, 16
    %v1147 = vpop.permute.xlu0 %1146
    %1148 = vrot.lane.b32.xlu0 %v1087, 16
    %v1149 = vpop.permute.xlu0 %1148
    %1150 = vrot.lane.b32.xlu0 %v1088, 16
    %v1151 = vpop.permute.xlu0 %1150
    %1152 = vrot.lane.b32.xlu0 %v1089, 16
    %v1153 = vpop.permute.xlu0 %1152
    %1154 = vrot.lane.b32.xlu0 %v1090, 16
    %v1155 = vpop.permute.xlu0 %1154
    %1156 = vrot.lane.b32.xlu0 %v1091, 16
    %v1157 = vpop.permute.xlu0 %1156
    %1158 = vrot.lane.b32.xlu0 %v1092, 16
    %v1159 = vpop.permute.xlu0 %1158
    %1160 = vrot.lane.b32.xlu0 %v1093, 16
    %v1161 = vpop.permute.xlu0 %1160
    %1162 = vrot.lane.b32.xlu0 %v1094, 16
    %v1163 = vpop.permute.xlu0 %1162
    %1164 = vrot.lane.b32.xlu0 %v1095, 16
    %v1165 = vpop.permute.xlu0 %1164
    %1166 = vrot.lane.b32.xlu0 %v1096, 16
    %v1167 = vpop.permute.xlu0 %1166
    %1168 = vrot.lane.b32.xlu0 %v1097, 16
    %v1169 = vpop.permute.xlu0 %1168
    %1170 = vrot.lane.b32.xlu0 %v1098, 16
    %v1171 = vpop.permute.xlu0 %1170
    %1172 = vrot.lane.b32.xlu0 %v1099, 16
    %v1173 = vpop.permute.xlu0 %1172
    %1174 = vrot.lane.b32.xlu0 %v1100, 16
    %v1175 = vpop.permute.xlu0 %1174
    %1176 = vrot.lane.b32.xlu0 %v1101, 16
    %v1177 = vpop.permute.xlu0 %1176
    %1178 = vrot.lane.b32.xlu0 %v1102, 16
    %v1179 = vpop.permute.xlu0 %1178
    %1180 = vrot.lane.b32.xlu0 %v1103, 16
    %v1181 = vpop.permute.xlu0 %1180
    %1182 = vrot.lane.b32.xlu0 %v1104, 16
    %v1183 = vpop.permute.xlu0 %1182
    %1184 = vrot.lane.b32.xlu0 %v1105, 16
    %v1185 = vpop.permute.xlu0 %1184
    %1186 = vrot.lane.b32.xlu0 %v1106, 16
    %v1187 = vpop.permute.xlu0 %1186
    %1188 = vrot.lane.b32.xlu0 %v1107, 16
    %v1189 = vpop.permute.xlu0 %1188
    %1190 = vrot.lane.b32.xlu0 %v1108, 16
    %v1191 = vpop.permute.xlu0 %1190
    %1192 = vrot.lane.b32.xlu0 %v1109, 16
    %v1193 = vpop.permute.xlu0 %1192
    %1194 = vrot.lane.b32.xlu0 %v1110, 16
    %v1195 = vpop.permute.xlu0 %1194
    %1196 = vrot.lane.b32.xlu0 %v1111, 16
    %v1197 = vpop.permute.xlu0 %1196
    %1198 = vrot.lane.b32.xlu0 %v1112, 16
    %v1199 = vpop.permute.xlu0 %1198
    %1200 = vrot.lane.b32.xlu0 %v1113, 16
    %v1201 = vpop.permute.xlu0 %1200
    %1202 = vrot.lane.b32.xlu0 %v1114, 16
    %v1203 = vpop.permute.xlu0 %1202
    %1204 = vrot.lane.b32.xlu0 %v1115, 16
    %v1205 = vpop.permute.xlu0 %1204
    %vm1206 = vcmask 130048
    %v1207 = vsel %vm1206, %v1117, %v1119
    %v1208 = vsel %vm1206, %v1119, %v1121
    %v1209 = vsel %vm1206, %v1121, %v1123
    %v1210 = vsel %vm1206, %v1123, %v1125
    %v1211 = vsel %vm1206, %v1125, %v1127
    %v1212 = vsel %vm1206, %v1127, %v1129
    %v1213 = vsel %vm1206, %v1129, %v1131
    %v1214 = vsel %vm1206, %v1131, %v1133
    %v1215 = vsel %vm1206, %v1133, %v1135
    %v1216 = vsel %vm1206, %v1135, %v1137
    %v1217 = vsel %vm1206, %v1137, %v1139
    %v1218 = vsel %vm1206, %v1139, %v1141
    %v1219 = vsel %vm1206, %v1141, %v1143
    %v1220 = vsel %vm1206, %v1143, %v1145
    %v1221 = vsel %vm1206, %v1145, %v1147
    %v1222 = vsel %vm1206, %v1147, %v1149
    %v1223 = vsel %vm1206, %v1149, %v1151
    %v1224 = vsel %vm1206, %v1151, %v1153
    %v1225 = vsel %vm1206, %v1153, %v1155
    %v1226 = vsel %vm1206, %v1155, %v1157
    %v1227 = vsel %vm1206, %v1157, %v1159
    %v1228 = vsel %vm1206, %v1159, %v1161
    %v1229 = vsel %vm1206, %v1161, %v1163
    %v1230 = vsel %vm1206, %v1163, %v1165
    %v1231 = vsel %vm1206, %v1165, %v1167
    %v1232 = vsel %vm1206, %v1167, %v1169
    %v1233 = vsel %vm1206, %v1169, %v1171
    %v1234 = vsel %vm1206, %v1171, %v1173
    %v1235 = vsel %vm1206, %v1173, %v1175
    %v1236 = vsel %vm1206, %v1175, %v1177
    %v1237 = vsel %vm1206, %v1177, %v1179
    %v1238 = vsel %vm1206, %v1179, %v1181
    %v1239 = vsel %vm1206, %v1181, %v1183
    %v1240 = vsel %vm1206, %v1183, %v1185
    %v1241 = vsel %vm1206, %v1185, %v1187
    %v1242 = vsel %vm1206, %v1187, %v1189
    %v1243 = vsel %vm1206, %v1189, %v1191
    %v1244 = vsel %vm1206, %v1191, %v1193
    %v1245 = vsel %vm1206, %v1193, %v1195
    %v1246 = vsel %vm1206, %v1195, %v1197
    %v1247 = vsel %vm1206, %v1197, %v1199
    %v1248 = vsel %vm1206, %v1199, %v1201
    %v1249 = vsel %vm1206, %v1201, %v1203
    %v1250 = vsel %vm1206, %v1203, %v1205
    %v1295 = vcombine.high %v128, %v128
    %v1296 = vrot.slane %v153, 6
    %v1297 = vrot.slane %v107, 6
    %v1298 = vrot.slane %v154, 6
    %v1299 = vrot.slane %v108, 6
    %v1300 = vrot.slane %v155, 6
    %v1301 = vrot.slane %v109, 6
    %v1302 = vrot.slane %v156, 6
    %v1303 = vrot.slane %v110, 6
    %v1304 = vrot.slane %v157, 6
    %v1305 = vrot.slane %v111, 6
    %v1306 = vrot.slane %v158, 6
    %v1307 = vrot.slane %v112, 6
    %v1308 = vrot.slane %v159, 6
    %v1309 = vrot.slane %v113, 6
    %v1310 = vrot.slane %v160, 6
    %v1311 = vrot.slane %v114, 6
    %v1312 = vrot.slane %v161, 6
    %v1313 = vrot.slane %v115, 6
    %v1314 = vrot.slane %v162, 6
    %v1315 = vrot.slane %v116, 6
    %v1316 = vrot.slane %v163, 6
    %v1317 = vrot.slane %v117, 6
    %v1318 = vrot.slane %v164, 6
    %v1319 = vrot.slane %v118, 6
    %v1320 = vrot.slane %v165, 6
    %v1321 = vrot.slane %v119, 6
    %v1322 = vrot.slane %v166, 6
    %v1323 = vrot.slane %v120, 6
    %v1324 = vrot.slane %v167, 6
    %v1325 = vrot.slane %v121, 6
    %v1326 = vrot.slane %v168, 6
    %v1327 = vrot.slane %v122, 6
    %v1328 = vrot.slane %v169, 6
    %v1329 = vrot.slane %v123, 6
    %v1330 = vrot.slane %v170, 6
    %v1331 = vrot.slane %v124, 6
    %v1332 = vrot.slane %v171, 6
    %v1333 = vrot.slane %v125, 6
    %v1334 = vrot.slane %v172, 6
    %v1335 = vrot.slane %v126, 6
    %v1336 = vrot.slane %v173, 6
    %v1337 = vrot.slane %v127, 6
    %v1338 = vrot.slane %v645, 6
    %v1339 = vrot.slane %v128, 6
    %v1340 = vrot.slane %v1295, 6
    %1341 = vrot.lane.b32.xlu0 %v1296, 64
    %v1342 = vpop.permute.xlu0 %1341
    %1343 = vrot.lane.b32.xlu0 %v1297, 64
    %v1344 = vpop.permute.xlu0 %1343
    %1345 = vrot.lane.b32.xlu0 %v1298, 64
    %v1346 = vpop.permute.xlu0 %1345
    %1347 = vrot.lane.b32.xlu0 %v1299, 64
    %v1348 = vpop.permute.xlu0 %1347
    %1349 = vrot.lane.b32.xlu0 %v1300, 64
    %v1350 = vpop.permute.xlu0 %1349
    %1351 = vrot.lane.b32.xlu0 %v1301, 64
    %v1352 = vpop.permute.xlu0 %1351
    %1353 = vrot.lane.b32.xlu0 %v1302, 64
    %v1354 = vpop.permute.xlu0 %1353
    %1355 = vrot.lane.b32.xlu0 %v1303, 64
    %v1356 = vpop.permute.xlu0 %1355
    %1357 = vrot.lane.b32.xlu0 %v1304, 64
    %v1358 = vpop.permute.xlu0 %1357
    %1359 = vrot.lane.b32.xlu0 %v1305, 64
    %v1360 = vpop.permute.xlu0 %1359
    %1361 = vrot.lane.b32.xlu0 %v1306, 64
    %v1362 = vpop.permute.xlu0 %1361
    %1363 = vrot.lane.b32.xlu0 %v1307, 64
    %v1364 = vpop.permute.xlu0 %1363
    %1365 = vrot.lane.b32.xlu0 %v1308, 64
    %v1366 = vpop.permute.xlu0 %1365
    %1367 = vrot.lane.b32.xlu0 %v1309, 64
    %v1368 = vpop.permute.xlu0 %1367
    %1369 = vrot.lane.b32.xlu0 %v1310, 64
    %v1370 = vpop.permute.xlu0 %1369
    %1371 = vrot.lane.b32.xlu0 %v1311, 64
    %v1372 = vpop.permute.xlu0 %1371
    %1373 = vrot.lane.b32.xlu0 %v1312, 64
    %v1374 = vpop.permute.xlu0 %1373
    %1375 = vrot.lane.b32.xlu0 %v1313, 64
    %v1376 = vpop.permute.xlu0 %1375
    %1377 = vrot.lane.b32.xlu0 %v1314, 64
    %v1378 = vpop.permute.xlu0 %1377
    %1379 = vrot.lane.b32.xlu0 %v1315, 64
    %v1380 = vpop.permute.xlu0 %1379
    %1381 = vrot.lane.b32.xlu0 %v1316, 64
    %v1382 = vpop.permute.xlu0 %1381
    %1383 = vrot.lane.b32.xlu0 %v1317, 64
    %v1384 = vpop.permute.xlu0 %1383
    %1385 = vrot.lane.b32.xlu0 %v1318, 64
    %v1386 = vpop.permute.xlu0 %1385
    %1387 = vrot.lane.b32.xlu0 %v1319, 64
    %v1388 = vpop.permute.xlu0 %1387
    %1389 = vrot.lane.b32.xlu0 %v1320, 64
    %v1390 = vpop.permute.xlu0 %1389
    %1391 = vrot.lane.b32.xlu0 %v1321, 64
    %v1392 = vpop.permute.xlu0 %1391
    %1393 = vrot.lane.b32.xlu0 %v1322, 64
    %v1394 = vpop.permute.xlu0 %1393
    %1395 = vrot.lane.b32.xlu0 %v1323, 64
    %v1396 = vpop.permute.xlu0 %1395
    %1397 = vrot.lane.b32.xlu0 %v1324, 64
    %v1398 = vpop.permute.xlu0 %1397
    %1399 = vrot.lane.b32.xlu0 %v1325, 64
    %v1400 = vpop.permute.xlu0 %1399
    %1401 = vrot.lane.b32.xlu0 %v1326, 64
    %v1402 = vpop.permute.xlu0 %1401
    %1403 = vrot.lane.b32.xlu0 %v1327, 64
    %v1404 = vpop.permute.xlu0 %1403
    %1405 = vrot.lane.b32.xlu0 %v1328, 64
    %v1406 = vpop.permute.xlu0 %1405
    %1407 = vrot.lane.b32.xlu0 %v1329, 64
    %v1408 = vpop.permute.xlu0 %1407
    %1409 = vrot.lane.b32.xlu0 %v1330, 64
    %v1410 = vpop.permute.xlu0 %1409
    %1411 = vrot.lane.b32.xlu0 %v1331, 64
    %v1412 = vpop.permute.xlu0 %1411
    %1413 = vrot.lane.b32.xlu0 %v1332, 64
    %v1414 = vpop.permute.xlu0 %1413
    %1415 = vrot.lane.b32.xlu0 %v1333, 64
    %v1416 = vpop.permute.xlu0 %1415
    %1417 = vrot.lane.b32.xlu0 %v1334, 64
    %v1418 = vpop.permute.xlu0 %1417
    %1419 = vrot.lane.b32.xlu0 %v1335, 64
    %v1420 = vpop.permute.xlu0 %1419
    %1421 = vrot.lane.b32.xlu0 %v1336, 64
    %v1422 = vpop.permute.xlu0 %1421
    %1423 = vrot.lane.b32.xlu0 %v1337, 64
    %v1424 = vpop.permute.xlu0 %1423
    %1425 = vrot.lane.b32.xlu0 %v1338, 64
    %v1426 = vpop.permute.xlu0 %1425
    %1427 = vrot.lane.b32.xlu0 %v1339, 64
    %v1428 = vpop.permute.xlu0 %1427
    %1429 = vrot.lane.b32.xlu0 %v1340, 64
    %v1430 = vpop.permute.xlu0 %1429
    %vm1431 = vcmask 523264
    %v1432 = vsel %vm1431, %v1342, %v1344
    %v1433 = vsel %vm1431, %v1344, %v1346
    %v1434 = vsel %vm1431, %v1346, %v1348
    %v1435 = vsel %vm1431, %v1348, %v1350
    %v1436 = vsel %vm1431, %v1350, %v1352
    %v1437 = vsel %vm1431, %v1352, %v1354
    %v1438 = vsel %vm1431, %v1354, %v1356
    %v1439 = vsel %vm1431, %v1356, %v1358
    %v1440 = vsel %vm1431, %v1358, %v1360
    %v1441 = vsel %vm1431, %v1360, %v1362
    %v1442 = vsel %vm1431, %v1362, %v1364
    %v1443 = vsel %vm1431, %v1364, %v1366
    %v1444 = vsel %vm1431, %v1366, %v1368
    %v1445 = vsel %vm1431, %v1368, %v1370
    %v1446 = vsel %vm1431, %v1370, %v1372
    %v1447 = vsel %vm1431, %v1372, %v1374
    %v1448 = vsel %vm1431, %v1374, %v1376
    %v1449 = vsel %vm1431, %v1376, %v1378
    %v1450 = vsel %vm1431, %v1378, %v1380
    %v1451 = vsel %vm1431, %v1380, %v1382
    %v1452 = vsel %vm1431, %v1382, %v1384
    %v1453 = vsel %vm1431, %v1384, %v1386
    %v1454 = vsel %vm1431, %v1386, %v1388
    %v1455 = vsel %vm1431, %v1388, %v1390
    %v1456 = vsel %vm1431, %v1390, %v1392
    %v1457 = vsel %vm1431, %v1392, %v1394
    %v1458 = vsel %vm1431, %v1394, %v1396
    %v1459 = vsel %vm1431, %v1396, %v1398
    %v1460 = vsel %vm1431, %v1398, %v1400
    %v1461 = vsel %vm1431, %v1400, %v1402
    %v1462 = vsel %vm1431, %v1402, %v1404
    %v1463 = vsel %vm1431, %v1404, %v1406
    %v1464 = vsel %vm1431, %v1406, %v1408
    %v1465 = vsel %vm1431, %v1408, %v1410
    %v1466 = vsel %vm1431, %v1410, %v1412
    %v1467 = vsel %vm1431, %v1412, %v1414
    %v1468 = vsel %vm1431, %v1414, %v1416
    %v1469 = vsel %vm1431, %v1416, %v1418
    %v1470 = vsel %vm1431, %v1418, %v1420
    %v1471 = vsel %vm1431, %v1420, %v1422
    %v1472 = vsel %vm1431, %v1422, %v1424
    %v1473 = vsel %vm1431, %v1424, %v1426
    %v1474 = vsel %vm1431, %v1426, %v1428
    %v1475 = vsel %vm1431, %v1428, %v1430
    %v1520 = vrot.slane %v153, 3
    %v1521 = vrot.slane %v107, 3
    %v1522 = vrot.slane %v154, 3
    %v1523 = vrot.slane %v108, 3
    %v1524 = vrot.slane %v155, 3
    %v1525 = vrot.slane %v109, 3
    %v1526 = vrot.slane %v156, 3
    %v1527 = vrot.slane %v110, 3
    %v1528 = vrot.slane %v157, 3
    %v1529 = vrot.slane %v111, 3
    %v1530 = vrot.slane %v158, 3
    %v1531 = vrot.slane %v112, 3
    %v1532 = vrot.slane %v159, 3
    %v1533 = vrot.slane %v113, 3
    %v1534 = vrot.slane %v160, 3
    %v1535 = vrot.slane %v114, 3
    %v1536 = vrot.slane %v161, 3
    %v1537 = vrot.slane %v115, 3
    %v1538 = vrot.slane %v162, 3
    %v1539 = vrot.slane %v116, 3
    %v1540 = vrot.slane %v163, 3
    %v1541 = vrot.slane %v117, 3
    %v1542 = vrot.slane %v164, 3
    %v1543 = vrot.slane %v118, 3
    %v1544 = vrot.slane %v165, 3
    %v1545 = vrot.slane %v119, 3
    %v1546 = vrot.slane %v166, 3
    %v1547 = vrot.slane %v120, 3
    %v1548 = vrot.slane %v167, 3
    %v1549 = vrot.slane %v121, 3
    %v1550 = vrot.slane %v168, 3
    %v1551 = vrot.slane %v122, 3
    %v1552 = vrot.slane %v169, 3
    %v1553 = vrot.slane %v123, 3
    %v1554 = vrot.slane %v170, 3
    %v1555 = vrot.slane %v124, 3
    %v1556 = vrot.slane %v171, 3
    %v1557 = vrot.slane %v125, 3
    %v1558 = vrot.slane %v172, 3
    %v1559 = vrot.slane %v126, 3
    %v1560 = vrot.slane %v173, 3
    %v1561 = vrot.slane %v127, 3
    %v1562 = vrot.slane %v645, 3
    %v1563 = vrot.slane %v128, 3
    %v1564 = vrot.slane %v1295, 3
    %1565 = vrot.lane.b32.xlu0 %v1520, 56
    %v1566 = vpop.permute.xlu0 %1565
    %1567 = vrot.lane.b32.xlu0 %v1521, 56
    %v1568 = vpop.permute.xlu0 %1567
    %1569 = vrot.lane.b32.xlu0 %v1522, 56
    %v1570 = vpop.permute.xlu0 %1569
    %1571 = vrot.lane.b32.xlu0 %v1523, 56
    %v1572 = vpop.permute.xlu0 %1571
    %1573 = vrot.lane.b32.xlu0 %v1524, 56
    %v1574 = vpop.permute.xlu0 %1573
    %1575 = vrot.lane.b32.xlu0 %v1525, 56
    %v1576 = vpop.permute.xlu0 %1575
    %1577 = vrot.lane.b32.xlu0 %v1526, 56
    %v1578 = vpop.permute.xlu0 %1577
    %1579 = vrot.lane.b32.xlu0 %v1527, 56
    %v1580 = vpop.permute.xlu0 %1579
    %1581 = vrot.lane.b32.xlu0 %v1528, 56
    %v1582 = vpop.permute.xlu0 %1581
    %1583 = vrot.lane.b32.xlu0 %v1529, 56
    %v1584 = vpop.permute.xlu0 %1583
    %1585 = vrot.lane.b32.xlu0 %v1530, 56
    %v1586 = vpop.permute.xlu0 %1585
    %1587 = vrot.lane.b32.xlu0 %v1531, 56
    %v1588 = vpop.permute.xlu0 %1587
    %1589 = vrot.lane.b32.xlu0 %v1532, 56
    %v1590 = vpop.permute.xlu0 %1589
    %1591 = vrot.lane.b32.xlu0 %v1533, 56
    %v1592 = vpop.permute.xlu0 %1591
    %1593 = vrot.lane.b32.xlu0 %v1534, 56
    %v1594 = vpop.permute.xlu0 %1593
    %1595 = vrot.lane.b32.xlu0 %v1535, 56
    %v1596 = vpop.permute.xlu0 %1595
    %1597 = vrot.lane.b32.xlu0 %v1536, 56
    %v1598 = vpop.permute.xlu0 %1597
    %1599 = vrot.lane.b32.xlu0 %v1537, 56
    %v1600 = vpop.permute.xlu0 %1599
    %1601 = vrot.lane.b32.xlu0 %v1538, 56
    %v1602 = vpop.permute.xlu0 %1601
    %1603 = vrot.lane.b32.xlu0 %v1539, 56
    %v1604 = vpop.permute.xlu0 %1603
    %1605 = vrot.lane.b32.xlu0 %v1540, 56
    %v1606 = vpop.permute.xlu0 %1605
    %1607 = vrot.lane.b32.xlu0 %v1541, 56
    %v1608 = vpop.permute.xlu0 %1607
    %1609 = vrot.lane.b32.xlu0 %v1542, 56
    %v1610 = vpop.permute.xlu0 %1609
    %1611 = vrot.lane.b32.xlu0 %v1543, 56
    %v1612 = vpop.permute.xlu0 %1611
    %1613 = vrot.lane.b32.xlu0 %v1544, 56
    %v1614 = vpop.permute.xlu0 %1613
    %1615 = vrot.lane.b32.xlu0 %v1545, 56
    %v1616 = vpop.permute.xlu0 %1615
    %1617 = vrot.lane.b32.xlu0 %v1546, 56
    %v1618 = vpop.permute.xlu0 %1617
    %1619 = vrot.lane.b32.xlu0 %v1547, 56
    %v1620 = vpop.permute.xlu0 %1619
    %1621 = vrot.lane.b32.xlu0 %v1548, 56
    %v1622 = vpop.permute.xlu0 %1621
    %1623 = vrot.lane.b32.xlu0 %v1549, 56
    %v1624 = vpop.permute.xlu0 %1623
    %1625 = vrot.lane.b32.xlu0 %v1550, 56
    %v1626 = vpop.permute.xlu0 %1625
    %1627 = vrot.lane.b32.xlu0 %v1551, 56
    %v1628 = vpop.permute.xlu0 %1627
    %1629 = vrot.lane.b32.xlu0 %v1552, 56
    %v1630 = vpop.permute.xlu0 %1629
    %1631 = vrot.lane.b32.xlu0 %v1553, 56
    %v1632 = vpop.permute.xlu0 %1631
    %1633 = vrot.lane.b32.xlu0 %v1554, 56
    %v1634 = vpop.permute.xlu0 %1633
    %1635 = vrot.lane.b32.xlu0 %v1555, 56
    %v1636 = vpop.permute.xlu0 %1635
    %1637 = vrot.lane.b32.xlu0 %v1556, 56
    %v1638 = vpop.permute.xlu0 %1637
    %1639 = vrot.lane.b32.xlu0 %v1557, 56
    %v1640 = vpop.permute.xlu0 %1639
    %1641 = vrot.lane.b32.xlu0 %v1558, 56
    %v1642 = vpop.permute.xlu0 %1641
    %1643 = vrot.lane.b32.xlu0 %v1559, 56
    %v1644 = vpop.permute.xlu0 %1643
    %1645 = vrot.lane.b32.xlu0 %v1560, 56
    %v1646 = vpop.permute.xlu0 %1645
    %1647 = vrot.lane.b32.xlu0 %v1561, 56
    %v1648 = vpop.permute.xlu0 %1647
    %1649 = vrot.lane.b32.xlu0 %v1562, 56
    %v1650 = vpop.permute.xlu0 %1649
    %1651 = vrot.lane.b32.xlu0 %v1563, 56
    %v1652 = vpop.permute.xlu0 %1651
    %1653 = vrot.lane.b32.xlu0 %v1564, 56
    %v1654 = vpop.permute.xlu0 %1653
    %vm1655 = vcmask 457728
    %v1656 = vsel %vm1655, %v1566, %v1568
    %v1657 = vsel %vm1655, %v1568, %v1570
    %v1658 = vsel %vm1655, %v1570, %v1572
    %v1659 = vsel %vm1655, %v1572, %v1574
    %v1660 = vsel %vm1655, %v1574, %v1576
    %v1661 = vsel %vm1655, %v1576, %v1578
    %v1662 = vsel %vm1655, %v1578, %v1580
    %v1663 = vsel %vm1655, %v1580, %v1582
    %v1664 = vsel %vm1655, %v1582, %v1584
    %v1665 = vsel %vm1655, %v1584, %v1586
    %v1666 = vsel %vm1655, %v1586, %v1588
    %v1667 = vsel %vm1655, %v1588, %v1590
    %v1668 = vsel %vm1655, %v1590, %v1592
    %v1669 = vsel %vm1655, %v1592, %v1594
    %v1670 = vsel %vm1655, %v1594, %v1596
    %v1671 = vsel %vm1655, %v1596, %v1598
    %v1672 = vsel %vm1655, %v1598, %v1600
    %v1673 = vsel %vm1655, %v1600, %v1602
    %v1674 = vsel %vm1655, %v1602, %v1604
    %v1675 = vsel %vm1655, %v1604, %v1606
    %v1676 = vsel %vm1655, %v1606, %v1608
    %v1677 = vsel %vm1655, %v1608, %v1610
    %v1678 = vsel %vm1655, %v1610, %v1612
    %v1679 = vsel %vm1655, %v1612, %v1614
    %v1680 = vsel %vm1655, %v1614, %v1616
    %v1681 = vsel %vm1655, %v1616, %v1618
    %v1682 = vsel %vm1655, %v1618, %v1620
    %v1683 = vsel %vm1655, %v1620, %v1622
    %v1684 = vsel %vm1655, %v1622, %v1624
    %v1685 = vsel %vm1655, %v1624, %v1626
    %v1686 = vsel %vm1655, %v1626, %v1628
    %v1687 = vsel %vm1655, %v1628, %v1630
    %v1688 = vsel %vm1655, %v1630, %v1632
    %v1689 = vsel %vm1655, %v1632, %v1634
    %v1690 = vsel %vm1655, %v1634, %v1636
    %v1691 = vsel %vm1655, %v1636, %v1638
    %v1692 = vsel %vm1655, %v1638, %v1640
    %v1693 = vsel %vm1655, %v1640, %v1642
    %v1694 = vsel %vm1655, %v1642, %v1644
    %v1695 = vsel %vm1655, %v1644, %v1646
    %v1696 = vsel %vm1655, %v1646, %v1648
    %v1697 = vsel %vm1655, %v1648, %v1650
    %v1698 = vsel %vm1655, %v1650, %v1652
    %v1699 = vsel %vm1655, %v1652, %v1654
    %1744 = vrot.lane.b32.xlu0 %v153, 48
    %v1745 = vpop.permute.xlu0 %1744
    %1746 = vrot.lane.b32.xlu0 %v107, 48
    %v1747 = vpop.permute.xlu0 %1746
    %1748 = vrot.lane.b32.xlu0 %v154, 48
    %v1749 = vpop.permute.xlu0 %1748
    %1750 = vrot.lane.b32.xlu0 %v108, 48
    %v1751 = vpop.permute.xlu0 %1750
    %1752 = vrot.lane.b32.xlu0 %v155, 48
    %v1753 = vpop.permute.xlu0 %1752
    %1754 = vrot.lane.b32.xlu0 %v109, 48
    %v1755 = vpop.permute.xlu0 %1754
    %1756 = vrot.lane.b32.xlu0 %v156, 48
    %v1757 = vpop.permute.xlu0 %1756
    %1758 = vrot.lane.b32.xlu0 %v110, 48
    %v1759 = vpop.permute.xlu0 %1758
    %1760 = vrot.lane.b32.xlu0 %v157, 48
    %v1761 = vpop.permute.xlu0 %1760
    %1762 = vrot.lane.b32.xlu0 %v111, 48
    %v1763 = vpop.permute.xlu0 %1762
    %1764 = vrot.lane.b32.xlu0 %v158, 48
    %v1765 = vpop.permute.xlu0 %1764
    %1766 = vrot.lane.b32.xlu0 %v112, 48
    %v1767 = vpop.permute.xlu0 %1766
    %1768 = vrot.lane.b32.xlu0 %v159, 48
    %v1769 = vpop.permute.xlu0 %1768
    %1770 = vrot.lane.b32.xlu0 %v113, 48
    %v1771 = vpop.permute.xlu0 %1770
    %1772 = vrot.lane.b32.xlu0 %v160, 48
    %v1773 = vpop.permute.xlu0 %1772
    %1774 = vrot.lane.b32.xlu0 %v114, 48
    %v1775 = vpop.permute.xlu0 %1774
    %1776 = vrot.lane.b32.xlu0 %v161, 48
    %v1777 = vpop.permute.xlu0 %1776
    %1778 = vrot.lane.b32.xlu0 %v115, 48
    %v1779 = vpop.permute.xlu0 %1778
    %1780 = vrot.lane.b32.xlu0 %v162, 48
    %v1781 = vpop.permute.xlu0 %1780
    %1782 = vrot.lane.b32.xlu0 %v116, 48
    %v1783 = vpop.permute.xlu0 %1782
    %1784 = vrot.lane.b32.xlu0 %v163, 48
    %v1785 = vpop.permute.xlu0 %1784
    %1786 = vrot.lane.b32.xlu0 %v117, 48
    %v1787 = vpop.permute.xlu0 %1786
    %1788 = vrot.lane.b32.xlu0 %v164, 48
    %v1789 = vpop.permute.xlu0 %1788
    %1790 = vrot.lane.b32.xlu0 %v118, 48
    %v1791 = vpop.permute.xlu0 %1790
    %1792 = vrot.lane.b32.xlu0 %v165, 48
    %v1793 = vpop.permute.xlu0 %1792
    %1794 = vrot.lane.b32.xlu0 %v119, 48
    %v1795 = vpop.permute.xlu0 %1794
    %1796 = vrot.lane.b32.xlu0 %v166, 48
    %v1797 = vpop.permute.xlu0 %1796
    %1798 = vrot.lane.b32.xlu0 %v120, 48
    %v1799 = vpop.permute.xlu0 %1798
    %1800 = vrot.lane.b32.xlu0 %v167, 48
    %v1801 = vpop.permute.xlu0 %1800
    %1802 = vrot.lane.b32.xlu0 %v121, 48
    %v1803 = vpop.permute.xlu0 %1802
    %1804 = vrot.lane.b32.xlu0 %v168, 48
    %v1805 = vpop.permute.xlu0 %1804
    %1806 = vrot.lane.b32.xlu0 %v122, 48
    %v1807 = vpop.permute.xlu0 %1806
    %1808 = vrot.lane.b32.xlu0 %v169, 48
    %v1809 = vpop.permute.xlu0 %1808
    %1810 = vrot.lane.b32.xlu0 %v123, 48
    %v1811 = vpop.permute.xlu0 %1810
    %1812 = vrot.lane.b32.xlu0 %v170, 48
    %v1813 = vpop.permute.xlu0 %1812
    %1814 = vrot.lane.b32.xlu0 %v124, 48
    %v1815 = vpop.permute.xlu0 %1814
    %1816 = vrot.lane.b32.xlu0 %v171, 48
    %v1817 = vpop.permute.xlu0 %1816
    %1818 = vrot.lane.b32.xlu0 %v125, 48
    %v1819 = vpop.permute.xlu0 %1818
    %1820 = vrot.lane.b32.xlu0 %v172, 48
    %v1821 = vpop.permute.xlu0 %1820
    %1822 = vrot.lane.b32.xlu0 %v126, 48
    %v1823 = vpop.permute.xlu0 %1822
    %1824 = vrot.lane.b32.xlu0 %v173, 48
    %v1825 = vpop.permute.xlu0 %1824
    %1826 = vrot.lane.b32.xlu0 %v127, 48
    %v1827 = vpop.permute.xlu0 %1826
    %1828 = vrot.lane.b32.xlu0 %v645, 48
    %v1829 = vpop.permute.xlu0 %1828
    %1830 = vrot.lane.b32.xlu0 %v128, 48
    %v1831 = vpop.permute.xlu0 %1830
    %1832 = vrot.lane.b32.xlu0 %v1295, 48
    %v1833 = vpop.permute.xlu0 %1832
    %vm1834 = vcmask 392192
    %v1835 = vsel %vm1834, %v1745, %v1747
    %v1836 = vsel %vm1834, %v1747, %v1749
    %v1837 = vsel %vm1834, %v1749, %v1751
    %v1838 = vsel %vm1834, %v1751, %v1753
    %v1839 = vsel %vm1834, %v1753, %v1755
    %v1840 = vsel %vm1834, %v1755, %v1757
    %v1841 = vsel %vm1834, %v1757, %v1759
    %v1842 = vsel %vm1834, %v1759, %v1761
    %v1843 = vsel %vm1834, %v1761, %v1763
    %v1844 = vsel %vm1834, %v1763, %v1765
    %v1845 = vsel %vm1834, %v1765, %v1767
    %v1846 = vsel %vm1834, %v1767, %v1769
    %v1847 = vsel %vm1834, %v1769, %v1771
    %v1848 = vsel %vm1834, %v1771, %v1773
    %v1849 = vsel %vm1834, %v1773, %v1775
    %v1850 = vsel %vm1834, %v1775, %v1777
    %v1851 = vsel %vm1834, %v1777, %v1779
    %v1852 = vsel %vm1834, %v1779, %v1781
    %v1853 = vsel %vm1834, %v1781, %v1783
    %v1854 = vsel %vm1834, %v1783, %v1785
    %v1855 = vsel %vm1834, %v1785, %v1787
    %v1856 = vsel %vm1834, %v1787, %v1789
    %v1857 = vsel %vm1834, %v1789, %v1791
    %v1858 = vsel %vm1834, %v1791, %v1793
    %v1859 = vsel %vm1834, %v1793, %v1795
    %v1860 = vsel %vm1834, %v1795, %v1797
    %v1861 = vsel %vm1834, %v1797, %v1799
    %v1862 = vsel %vm1834, %v1799, %v1801
    %v1863 = vsel %vm1834, %v1801, %v1803
    %v1864 = vsel %vm1834, %v1803, %v1805
    %v1865 = vsel %vm1834, %v1805, %v1807
    %v1866 = vsel %vm1834, %v1807, %v1809
    %v1867 = vsel %vm1834, %v1809, %v1811
    %v1868 = vsel %vm1834, %v1811, %v1813
    %v1869 = vsel %vm1834, %v1813, %v1815
    %v1870 = vsel %vm1834, %v1815, %v1817
    %v1871 = vsel %vm1834, %v1817, %v1819
    %v1872 = vsel %vm1834, %v1819, %v1821
    %v1873 = vsel %vm1834, %v1821, %v1823
    %v1874 = vsel %vm1834, %v1823, %v1825
    %v1875 = vsel %vm1834, %v1825, %v1827
    %v1876 = vsel %vm1834, %v1827, %v1829
    %v1877 = vsel %vm1834, %v1829, %v1831
    %v1878 = vsel %vm1834, %v1831, %v1833
    %vm1923 = vcmask 1042432
    %v1924 = vsel %vm1923, %v105, %v332
    %v1925 = vsel %vm1923, %v152, %v333
    %v1926 = vsel %vm1923, %v106, %v334
    %v1927 = vsel %vm1923, %v153, %v335
    %v1928 = vsel %vm1923, %v107, %v336
    %v1929 = vsel %vm1923, %v154, %v337
    %v1930 = vsel %vm1923, %v108, %v338
    %v1931 = vsel %vm1923, %v155, %v339
    %v1932 = vsel %vm1923, %v109, %v340
    %v1933 = vsel %vm1923, %v156, %v341
    %v1934 = vsel %vm1923, %v110, %v342
    %v1935 = vsel %vm1923, %v157, %v343
    %v1936 = vsel %vm1923, %v111, %v344
    %v1937 = vsel %vm1923, %v158, %v345
    %v1938 = vsel %vm1923, %v112, %v346
    %v1939 = vsel %vm1923, %v159, %v347
    %v1940 = vsel %vm1923, %v113, %v348
    %v1941 = vsel %vm1923, %v160, %v349
    %v1942 = vsel %vm1923, %v114, %v350
    %v1943 = vsel %vm1923, %v161, %v351
    %v1944 = vsel %vm1923, %v115, %v352
    %v1945 = vsel %vm1923, %v162, %v353
    %v1946 = vsel %vm1923, %v116, %v354
    %v1947 = vsel %vm1923, %v163, %v355
    %v1948 = vsel %vm1923, %v117, %v356
    %v1949 = vsel %vm1923, %v164, %v357
    %v1950 = vsel %vm1923, %v118, %v358
    %v1951 = vsel %vm1923, %v165, %v359
    %v1952 = vsel %vm1923, %v119, %v360
    %v1953 = vsel %vm1923, %v166, %v361
    %v1954 = vsel %vm1923, %v120, %v362
    %v1955 = vsel %vm1923, %v167, %v363
    %v1956 = vsel %vm1923, %v121, %v364
    %v1957 = vsel %vm1923, %v168, %v365
    %v1958 = vsel %vm1923, %v122, %v366
    %v1959 = vsel %vm1923, %v169, %v367
    %v1960 = vsel %vm1923, %v123, %v368
    %v1961 = vsel %vm1923, %v170, %v369
    %v1962 = vsel %vm1923, %v124, %v370
    %v1963 = vsel %vm1923, %v171, %v371
    %v1964 = vsel %vm1923, %v125, %v372
    %v1965 = vsel %vm1923, %v172, %v373
    %v1966 = vsel %vm1923, %v126, %v374
    %v1967 = vsel %vm1923, %v173, %v375
    %vm1968 = vcmask 1045504
    %v1969 = vsel %vm1968, %v1924, %v556
    %v1970 = vsel %vm1968, %v1925, %v557
    %v1971 = vsel %vm1968, %v1926, %v558
    %v1972 = vsel %vm1968, %v1927, %v559
    %v1973 = vsel %vm1968, %v1928, %v560
    %v1974 = vsel %vm1968, %v1929, %v561
    %v1975 = vsel %vm1968, %v1930, %v562
    %v1976 = vsel %vm1968, %v1931, %v563
    %v1977 = vsel %vm1968, %v1932, %v564
    %v1978 = vsel %vm1968, %v1933, %v565
    %v1979 = vsel %vm1968, %v1934, %v566
    %v1980 = vsel %vm1968, %v1935, %v567
    %v1981 = vsel %vm1968, %v1936, %v568
    %v1982 = vsel %vm1968, %v1937, %v569
    %v1983 = vsel %vm1968, %v1938, %v570
    %v1984 = vsel %vm1968, %v1939, %v571
    %v1985 = vsel %vm1968, %v1940, %v572
    %v1986 = vsel %vm1968, %v1941, %v573
    %v1987 = vsel %vm1968, %v1942, %v574
    %v1988 = vsel %vm1968, %v1943, %v575
    %v1989 = vsel %vm1968, %v1944, %v576
    %v1990 = vsel %vm1968, %v1945, %v577
    %v1991 = vsel %vm1968, %v1946, %v578
    %v1992 = vsel %vm1968, %v1947, %v579
    %v1993 = vsel %vm1968, %v1948, %v580
    %v1994 = vsel %vm1968, %v1949, %v581
    %v1995 = vsel %vm1968, %v1950, %v582
    %v1996 = vsel %vm1968, %v1951, %v583
    %v1997 = vsel %vm1968, %v1952, %v584
    %v1998 = vsel %vm1968, %v1953, %v585
    %v1999 = vsel %vm1968, %v1954, %v586
    %v2000 = vsel %vm1968, %v1955, %v587
    %v2001 = vsel %vm1968, %v1956, %v588
    %v2002 = vsel %vm1968, %v1957, %v589
    %v2003 = vsel %vm1968, %v1958, %v590
    %v2004 = vsel %vm1968, %v1959, %v591
    %v2005 = vsel %vm1968, %v1960, %v592
    %v2006 = vsel %vm1968, %v1961, %v593
    %v2007 = vsel %vm1968, %v1962, %v594
    %v2008 = vsel %vm1968, %v1963, %v595
    %v2009 = vsel %vm1968, %v1964, %v596
    %v2010 = vsel %vm1968, %v1965, %v597
    %v2011 = vsel %vm1968, %v1966, %v598
    %v2012 = vsel %vm1968, %v1967, %v599
    %vm2013 = vcmask 1040384
    %v2014 = vsel %vm2013, %v556, %v782
    %v2015 = vsel %vm2013, %v557, %v783
    %v2016 = vsel %vm2013, %v558, %v784
    %v2017 = vsel %vm2013, %v559, %v785
    %v2018 = vsel %vm2013, %v560, %v786
    %v2019 = vsel %vm2013, %v561, %v787
    %v2020 = vsel %vm2013, %v562, %v788
    %v2021 = vsel %vm2013, %v563, %v789
    %v2022 = vsel %vm2013, %v564, %v790
    %v2023 = vsel %vm2013, %v565, %v791
    %v2024 = vsel %vm2013, %v566, %v792
    %v2025 = vsel %vm2013, %v567, %v793
    %v2026 = vsel %vm2013, %v568, %v794
    %v2027 = vsel %vm2013, %v569, %v795
    %v2028 = vsel %vm2013, %v570, %v796
    %v2029 = vsel %vm2013, %v571, %v797
    %v2030 = vsel %vm2013, %v572, %v798
    %v2031 = vsel %vm2013, %v573, %v799
    %v2032 = vsel %vm2013, %v574, %v800
    %v2033 = vsel %vm2013, %v575, %v801
    %v2034 = vsel %vm2013, %v576, %v802
    %v2035 = vsel %vm2013, %v577, %v803
    %v2036 = vsel %vm2013, %v578, %v804
    %v2037 = vsel %vm2013, %v579, %v805
    %v2038 = vsel %vm2013, %v580, %v806
    %v2039 = vsel %vm2013, %v581, %v807
    %v2040 = vsel %vm2013, %v582, %v808
    %v2041 = vsel %vm2013, %v583, %v809
    %v2042 = vsel %vm2013, %v584, %v810
    %v2043 = vsel %vm2013, %v585, %v811
    %v2044 = vsel %vm2013, %v586, %v812
    %v2045 = vsel %vm2013, %v587, %v813
    %v2046 = vsel %vm2013, %v588, %v814
    %v2047 = vsel %vm2013, %v589, %v815
    %v2048 = vsel %vm2013, %v590, %v816
    %v2049 = vsel %vm2013, %v591, %v817
    %v2050 = vsel %vm2013, %v592, %v818
    %v2051 = vsel %vm2013, %v593, %v819
    %v2052 = vsel %vm2013, %v594, %v820
    %v2053 = vsel %vm2013, %v595, %v821
    %v2054 = vsel %vm2013, %v596, %v822
    %v2055 = vsel %vm2013, %v597, %v823
    %v2056 = vsel %vm2013, %v598, %v824
    %v2057 = vsel %vm2013, %v599, %v825
    %vm2058 = vcmask 1043456
    %v2059 = vsel %vm2058, %v2014, %v983
    %v2060 = vsel %vm2058, %v2015, %v984
    %v2061 = vsel %vm2058, %v2016, %v985
    %v2062 = vsel %vm2058, %v2017, %v986
    %v2063 = vsel %vm2058, %v2018, %v987
    %v2064 = vsel %vm2058, %v2019, %v988
    %v2065 = vsel %vm2058, %v2020, %v989
    %v2066 = vsel %vm2058, %v2021, %v990
    %v2067 = vsel %vm2058, %v2022, %v991
    %v2068 = vsel %vm2058, %v2023, %v992
    %v2069 = vsel %vm2058, %v2024, %v993
    %v2070 = vsel %vm2058, %v2025, %v994
    %v2071 = vsel %vm2058, %v2026, %v995
    %v2072 = vsel %vm2058, %v2027, %v996
    %v2073 = vsel %vm2058, %v2028, %v997
    %v2074 = vsel %vm2058, %v2029, %v998
    %v2075 = vsel %vm2058, %v2030, %v999
    %v2076 = vsel %vm2058, %v2031, %v1000
    %v2077 = vsel %vm2058, %v2032, %v1001
    %v2078 = vsel %vm2058, %v2033, %v1002
    %v2079 = vsel %vm2058, %v2034, %v1003
    %v2080 = vsel %vm2058, %v2035, %v1004
    %v2081 = vsel %vm2058, %v2036, %v1005
    %v2082 = vsel %vm2058, %v2037, %v1006
    %v2083 = vsel %vm2058, %v2038, %v1007
    %v2084 = vsel %vm2058, %v2039, %v1008
    %v2085 = vsel %vm2058, %v2040, %v1009
    %v2086 = vsel %vm2058, %v2041, %v1010
    %v2087 = vsel %vm2058, %v2042, %v1011
    %v2088 = vsel %vm2058, %v2043, %v1012
    %v2089 = vsel %vm2058, %v2044, %v1013
    %v2090 = vsel %vm2058, %v2045, %v1014
    %v2091 = vsel %vm2058, %v2046, %v1015
    %v2092 = vsel %vm2058, %v2047, %v1016
    %v2093 = vsel %vm2058, %v2048, %v1017
    %v2094 = vsel %vm2058, %v2049, %v1018
    %v2095 = vsel %vm2058, %v2050, %v1019
    %v2096 = vsel %vm2058, %v2051, %v1020
    %v2097 = vsel %vm2058, %v2052, %v1021
    %v2098 = vsel %vm2058, %v2053, %v1022
    %v2099 = vsel %vm2058, %v2054, %v1023
    %v2100 = vsel %vm2058, %v2055, %v1024
    %v2101 = vsel %vm2058, %v2056, %v1025
    %v2102 = vsel %vm2058, %v2057, %v1026
    %vm2103 = vcmask 1046528
    %v2104 = vsel %vm2103, %v2059, %v1207
    %v2105 = vsel %vm2103, %v2060, %v1208
    %v2106 = vsel %vm2103, %v2061, %v1209
    %v2107 = vsel %vm2103, %v2062, %v1210
    %v2108 = vsel %vm2103, %v2063, %v1211
    %v2109 = vsel %vm2103, %v2064, %v1212
    %v2110 = vsel %vm2103, %v2065, %v1213
    %v2111 = vsel %vm2103, %v2066, %v1214
    %v2112 = vsel %vm2103, %v2067, %v1215
    %v2113 = vsel %vm2103, %v2068, %v1216
    %v2114 = vsel %vm2103, %v2069, %v1217
    %v2115 = vsel %vm2103, %v2070, %v1218
    %v2116 = vsel %vm2103, %v2071, %v1219
    %v2117 = vsel %vm2103, %v2072, %v1220
    %v2118 = vsel %vm2103, %v2073, %v1221
    %v2119 = vsel %vm2103, %v2074, %v1222
    %v2120 = vsel %vm2103, %v2075, %v1223
    %v2121 = vsel %vm2103, %v2076, %v1224
    %v2122 = vsel %vm2103, %v2077, %v1225
    %v2123 = vsel %vm2103, %v2078, %v1226
    %v2124 = vsel %vm2103, %v2079, %v1227
    %v2125 = vsel %vm2103, %v2080, %v1228
    %v2126 = vsel %vm2103, %v2081, %v1229
    %v2127 = vsel %vm2103, %v2082, %v1230
    %v2128 = vsel %vm2103, %v2083, %v1231
    %v2129 = vsel %vm2103, %v2084, %v1232
    %v2130 = vsel %vm2103, %v2085, %v1233
    %v2131 = vsel %vm2103, %v2086, %v1234
    %v2132 = vsel %vm2103, %v2087, %v1235
    %v2133 = vsel %vm2103, %v2088, %v1236
    %v2134 = vsel %vm2103, %v2089, %v1237
    %v2135 = vsel %vm2103, %v2090, %v1238
    %v2136 = vsel %vm2103, %v2091, %v1239
    %v2137 = vsel %vm2103, %v2092, %v1240
    %v2138 = vsel %vm2103, %v2093, %v1241
    %v2139 = vsel %vm2103, %v2094, %v1242
    %v2140 = vsel %vm2103, %v2095, %v1243
    %v2141 = vsel %vm2103, %v2096, %v1244
    %v2142 = vsel %vm2103, %v2097, %v1245
    %v2143 = vsel %vm2103, %v2098, %v1246
    %v2144 = vsel %vm2103, %v2099, %v1247
    %v2145 = vsel %vm2103, %v2100, %v1248
    %v2146 = vsel %vm2103, %v2101, %v1249
    %v2147 = vsel %vm2103, %v2102, %v1250
    %vm2148 = vcmask 1041408
    %v2149 = vsel %vm2148, %v1207, %v1432
    %v2150 = vsel %vm2148, %v1208, %v1433
    %v2151 = vsel %vm2148, %v1209, %v1434
    %v2152 = vsel %vm2148, %v1210, %v1435
    %v2153 = vsel %vm2148, %v1211, %v1436
    %v2154 = vsel %vm2148, %v1212, %v1437
    %v2155 = vsel %vm2148, %v1213, %v1438
    %v2156 = vsel %vm2148, %v1214, %v1439
    %v2157 = vsel %vm2148, %v1215, %v1440
    %v2158 = vsel %vm2148, %v1216, %v1441
    %v2159 = vsel %vm2148, %v1217, %v1442
    %v2160 = vsel %vm2148, %v1218, %v1443
    %v2161 = vsel %vm2148, %v1219, %v1444
    %v2162 = vsel %vm2148, %v1220, %v1445
    %v2163 = vsel %vm2148, %v1221, %v1446
    %v2164 = vsel %vm2148, %v1222, %v1447
    %v2165 = vsel %vm2148, %v1223, %v1448
    %v2166 = vsel %vm2148, %v1224, %v1449
    %v2167 = vsel %vm2148, %v1225, %v1450
    %v2168 = vsel %vm2148, %v1226, %v1451
    %v2169 = vsel %vm2148, %v1227, %v1452
    %v2170 = vsel %vm2148, %v1228, %v1453
    %v2171 = vsel %vm2148, %v1229, %v1454
    %v2172 = vsel %vm2148, %v1230, %v1455
    %v2173 = vsel %vm2148, %v1231, %v1456
    %v2174 = vsel %vm2148, %v1232, %v1457
    %v2175 = vsel %vm2148, %v1233, %v1458
    %v2176 = vsel %vm2148, %v1234, %v1459
    %v2177 = vsel %vm2148, %v1235, %v1460
    %v2178 = vsel %vm2148, %v1236, %v1461
    %v2179 = vsel %vm2148, %v1237, %v1462
    %v2180 = vsel %vm2148, %v1238, %v1463
    %v2181 = vsel %vm2148, %v1239, %v1464
    %v2182 = vsel %vm2148, %v1240, %v1465
    %v2183 = vsel %vm2148, %v1241, %v1466
    %v2184 = vsel %vm2148, %v1242, %v1467
    %v2185 = vsel %vm2148, %v1243, %v1468
    %v2186 = vsel %vm2148, %v1244, %v1469
    %v2187 = vsel %vm2148, %v1245, %v1470
    %v2188 = vsel %vm2148, %v1246, %v1471
    %v2189 = vsel %vm2148, %v1247, %v1472
    %v2190 = vsel %vm2148, %v1248, %v1473
    %v2191 = vsel %vm2148, %v1249, %v1474
    %v2192 = vsel %vm2148, %v1250, %v1475
    %vm2193 = vcmask 1044480
    %v2194 = vsel %vm2193, %v2149, %v1656
    %v2195 = vsel %vm2193, %v2150, %v1657
    %v2196 = vsel %vm2193, %v2151, %v1658
    %v2197 = vsel %vm2193, %v2152, %v1659
    %v2198 = vsel %vm2193, %v2153, %v1660
    %v2199 = vsel %vm2193, %v2154, %v1661
    %v2200 = vsel %vm2193, %v2155, %v1662
    %v2201 = vsel %vm2193, %v2156, %v1663
    %v2202 = vsel %vm2193, %v2157, %v1664
    %v2203 = vsel %vm2193, %v2158, %v1665
    %v2204 = vsel %vm2193, %v2159, %v1666
    %v2205 = vsel %vm2193, %v2160, %v1667
    %v2206 = vsel %vm2193, %v2161, %v1668
    %v2207 = vsel %vm2193, %v2162, %v1669
    %v2208 = vsel %vm2193, %v2163, %v1670
    %v2209 = vsel %vm2193, %v2164, %v1671
    %v2210 = vsel %vm2193, %v2165, %v1672
    %v2211 = vsel %vm2193, %v2166, %v1673
    %v2212 = vsel %vm2193, %v2167, %v1674
    %v2213 = vsel %vm2193, %v2168, %v1675
    %v2214 = vsel %vm2193, %v2169, %v1676
    %v2215 = vsel %vm2193, %v2170, %v1677
    %v2216 = vsel %vm2193, %v2171, %v1678
    %v2217 = vsel %vm2193, %v2172, %v1679
    %v2218 = vsel %vm2193, %v2173, %v1680
    %v2219 = vsel %vm2193, %v2174, %v1681
    %v2220 = vsel %vm2193, %v2175, %v1682
    %v2221 = vsel %vm2193, %v2176, %v1683
    %v2222 = vsel %vm2193, %v2177, %v1684
    %v2223 = vsel %vm2193, %v2178, %v1685
    %v2224 = vsel %vm2193, %v2179, %v1686
    %v2225 = vsel %vm2193, %v2180, %v1687
    %v2226 = vsel %vm2193, %v2181, %v1688
    %v2227 = vsel %vm2193, %v2182, %v1689
    %v2228 = vsel %vm2193, %v2183, %v1690
    %v2229 = vsel %vm2193, %v2184, %v1691
    %v2230 = vsel %vm2193, %v2185, %v1692
    %v2231 = vsel %vm2193, %v2186, %v1693
    %v2232 = vsel %vm2193, %v2187, %v1694
    %v2233 = vsel %vm2193, %v2188, %v1695
    %v2234 = vsel %vm2193, %v2189, %v1696
    %v2235 = vsel %vm2193, %v2190, %v1697
    %v2236 = vsel %vm2193, %v2191, %v1698
    %v2237 = vsel %vm2193, %v2192, %v1699
    %v2238 = vld [vmem:[%s1] sm:$0xf]
    %v2239 = vpack.c.bf16 %v2104, %v1969
    %v2240 = vpack.c.bf16 %v2105, %v1970
    %v2241 = vpack.c.bf16 %v2106, %v1971
    %v2242 = vpack.c.bf16 %v2107, %v1972
    %v2243 = vpack.c.bf16 %v2108, %v1973
    %v2244 = vpack.c.bf16 %v2109, %v1974
    %v2245 = vpack.c.bf16 %v2110, %v1975
    %v2246 = vpack.c.bf16 %v2111, %v1976
    %v2247 = vpack.c.bf16 %v2112, %v1977
    %v2248 = vpack.c.bf16 %v2113, %v1978
    %v2249 = vpack.c.bf16 %v2114, %v1979
    %v2250 = vpack.c.bf16 %v2115, %v1980
    %v2251 = vpack.c.bf16 %v2116, %v1981
    %v2252 = vpack.c.bf16 %v2117, %v1982
    %v2253 = vpack.c.bf16 %v2118, %v1983
    %v2254 = vpack.c.bf16 %v2119, %v1984
    %v2255 = vpack.c.bf16 %v2120, %v1985
    %v2256 = vpack.c.bf16 %v2121, %v1986
    %v2257 = vpack.c.bf16 %v2122, %v1987
    %v2258 = vpack.c.bf16 %v2123, %v1988
    %v2259 = vpack.c.bf16 %v2124, %v1989
    %v2260 = vpack.c.bf16 %v2125, %v1990
    %v2261 = vpack.c.bf16 %v2126, %v1991
    %v2262 = vpack.c.bf16 %v2127, %v1992
    %v2263 = vpack.c.bf16 %v2128, %v1993
    %v2264 = vpack.c.bf16 %v2129, %v1994
    %v2265 = vpack.c.bf16 %v2130, %v1995
    %v2266 = vpack.c.bf16 %v2131, %v1996
    %v2267 = vpack.c.bf16 %v2132, %v1997
    %v2268 = vpack.c.bf16 %v2133, %v1998
    %v2269 = vpack.c.bf16 %v2134, %v1999
    %v2270 = vpack.c.bf16 %v2135, %v2000
    %v2271 = vpack.c.bf16 %v2136, %v2001
    %v2272 = vpack.c.bf16 %v2137, %v2002
    %v2273 = vpack.c.bf16 %v2138, %v2003
    %v2274 = vpack.c.bf16 %v2139, %v2004
    %v2275 = vpack.c.bf16 %v2140, %v2005
    %v2276 = vpack.c.bf16 %v2141, %v2006
    %v2277 = vpack.c.bf16 %v2142, %v2007
    %v2278 = vpack.c.bf16 %v2143, %v2008
    %v2279 = vpack.c.bf16 %v2144, %v2009
    %v2280 = vpack.c.bf16 %v2145, %v2010
    %v2281 = vpack.c.bf16 %v2146, %v2011
    %v2282 = vpack.c.bf16 %v2147, %v2012
    %v2283 = vpack.c.bf16 %v1835, %v2194
    %v2284 = vpack.c.bf16 %v1836, %v2195
    %v2285 = vpack.c.bf16 %v1837, %v2196
    %v2286 = vpack.c.bf16 %v1838, %v2197
    %v2287 = vpack.c.bf16 %v1839, %v2198
    %v2288 = vpack.c.bf16 %v1840, %v2199
    %v2289 = vpack.c.bf16 %v1841, %v2200
    %v2290 = vpack.c.bf16 %v1842, %v2201
    %v2291 = vpack.c.bf16 %v1843, %v2202
    %v2292 = vpack.c.bf16 %v1844, %v2203
    %v2293 = vpack.c.bf16 %v1845, %v2204
    %v2294 = vpack.c.bf16 %v1846, %v2205
    %v2295 = vpack.c.bf16 %v1847, %v2206
    %v2296 = vpack.c.bf16 %v1848, %v2207
    %v2297 = vpack.c.bf16 %v1849, %v2208
    %v2298 = vpack.c.bf16 %v1850, %v2209
    %v2299 = vpack.c.bf16 %v1851, %v2210
    %v2300 = vpack.c.bf16 %v1852, %v2211
    %v2301 = vpack.c.bf16 %v1853, %v2212
    %v2302 = vpack.c.bf16 %v1854, %v2213
    %v2303 = vpack.c.bf16 %v1855, %v2214
    %v2304 = vpack.c.bf16 %v1856, %v2215
    %v2305 = vpack.c.bf16 %v1857, %v2216
    %v2306 = vpack.c.bf16 %v1858, %v2217
    %v2307 = vpack.c.bf16 %v1859, %v2218
    %v2308 = vpack.c.bf16 %v1860, %v2219
    %v2309 = vpack.c.bf16 %v1861, %v2220
    %v2310 = vpack.c.bf16 %v1862, %v2221
    %v2311 = vpack.c.bf16 %v1863, %v2222
    %v2312 = vpack.c.bf16 %v1864, %v2223
    %v2313 = vpack.c.bf16 %v1865, %v2224
    %v2314 = vpack.c.bf16 %v1866, %v2225
    %v2315 = vpack.c.bf16 %v1867, %v2226
    %v2316 = vpack.c.bf16 %v1868, %v2227
    %v2317 = vpack.c.bf16 %v1869, %v2228
    %v2318 = vpack.c.bf16 %v1870, %v2229
    %v2319 = vpack.c.bf16 %v1871, %v2230
    %v2320 = vpack.c.bf16 %v1872, %v2231
    %v2321 = vpack.c.bf16 %v1873, %v2232
    %v2322 = vpack.c.bf16 %v1874, %v2233
    %v2323 = vpack.c.bf16 %v1875, %v2234
    %v2324 = vpack.c.bf16 %v1876, %v2235
    %v2325 = vpack.c.bf16 %v1877, %v2236
    %v2326 = vpack.c.bf16 %v1878, %v2237
    %v2327 = vld [vmem:[%s2] sm:$0xff]
    %2329 = vset.pattern.permute.xlu0 0
    %2330 = vperm.xlu0 %2329, %v2327
    %v2331 = vpop.permute.xlu0 %2330
    %vm2333 = vcmask 220160
    %v2335 = vsel %vm2333, %v2238, 0
    %v2337 = vsel %vm2193, 4294967295, 65535
    %v2338 = vsel %vm1968, %v2337, 0
    %v2340 = vand.u32 %v2283, %v2338
    %v2343 = vand.u32 %v2284, %v2338
    %v2346 = vand.u32 %v2285, %v2338
    %v2349 = vand.u32 %v2286, %v2338
    %v2352 = vand.u32 %v2287, %v2338
    %v2355 = vand.u32 %v2288, %v2338
    %v2358 = vand.u32 %v2289, %v2338
    %v2361 = vand.u32 %v2290, %v2338
    %v2364 = vand.u32 %v2291, %v2338
    %v2367 = vand.u32 %v2292, %v2338
    %v2370 = vand.u32 %v2293, %v2338
    %v2373 = vand.u32 %v2294, %v2338
    %v2376 = vand.u32 %v2295, %v2338
    %v2379 = vand.u32 %v2296, %v2338
    %v2382 = vand.u32 %v2297, %v2338
    %v2385 = vand.u32 %v2298, %v2338
    %v2388 = vand.u32 %v2299, %v2338
    %v2391 = vand.u32 %v2300, %v2338
    %v2394 = vand.u32 %v2301, %v2338
    %v2397 = vand.u32 %v2302, %v2338
    %v2400 = vand.u32 %v2303, %v2338
    %v2403 = vand.u32 %v2304, %v2338
    %v2406 = vand.u32 %v2305, %v2338
    %v2409 = vand.u32 %v2306, %v2338
    %v2412 = vand.u32 %v2307, %v2338
    %v2415 = vand.u32 %v2308, %v2338
    %v2418 = vand.u32 %v2309, %v2338
    %v2421 = vand.u32 %v2310, %v2338
    %v2424 = vand.u32 %v2311, %v2338
    %v2427 = vand.u32 %v2312, %v2338
    %v2430 = vand.u32 %v2313, %v2338
    %v2433 = vand.u32 %v2314, %v2338
    %v2436 = vand.u32 %v2315, %v2338
    %v2439 = vand.u32 %v2316, %v2338
    %v2442 = vand.u32 %v2317, %v2338
    %v2445 = vand.u32 %v2318, %v2338
    %v2448 = vand.u32 %v2319, %v2338
    %v2451 = vand.u32 %v2320, %v2338
    %v2454 = vand.u32 %v2321, %v2338
    %v2457 = vand.u32 %v2322, %v2338
    %v2460 = vand.u32 %v2323, %v2338
    %v2463 = vand.u32 %v2324, %v2338
    %v2466 = vand.u32 %v2325, %v2338
    %v2469 = vand.u32 %v2326, %v2338
    %2471 = vmatprep.subr.bf16.mxu0 0
    %2472 = vmatpush1.bf16.msra.mxu0 0
    %2473 = vmatprep.subr.bf16.mxu0 0
    %2474 = vmatpush1.bf16.msra.mxu0 0
    %2475 = vmatprep.subr.bf16.mxu0 0
    %2476 = vmatpush1.bf16.msra.mxu0 0
    %2477 = vmatprep.subr.bf16.mxu0 0
    %2478 = vmatpush1.bf16.msra.mxu0 0
    %2479 = vmatprep.subr.bf16.mxu0 0
    %2480 = vmatpush1.bf16.msra.mxu0 0
    %2481 = vmatprep.subr.bf16.mxu0 0
    %2482 = vmatpush1.bf16.msra.mxu0 0
    %2483 = vmatprep.subr.bf16.mxu0 %v2343
    %2484 = vmatpush1.bf16.msra.mxu0 %v2340
    %2485 = vmatprep.subr.bf16.mxu0 %v2240
    %2486 = vmatpush1.bf16.msra.mxu0 %v2239
    %2487 = vmatprep.subr.bf16.mxu0 0
    %2488 = vmatpush2.bf16.msra.mxu0 0
    %2489 = vmatprep.subr.bf16.mxu0 0
    %2490 = vmatpush2.bf16.msra.mxu0 0
    %2491 = vmatprep.subr.bf16.mxu0 0
    %2492 = vmatpush2.bf16.msra.mxu0 0
    %2493 = vmatprep.subr.bf16.mxu0 0
    %2494 = vmatpush2.bf16.msra.mxu0 0
    %2495 = vmatprep.subr.bf16.mxu0 0
    %2496 = vmatpush2.bf16.msra.mxu0 0
    %2497 = vmatprep.subr.bf16.mxu0 0
    %2498 = vmatpush2.bf16.msra.mxu0 0
    %2499 = vmatprep.subr.bf16.mxu0 0
    %2500 = vmatpush2.bf16.msra.mxu0 0
    %2501 = vmatprep.subr.bf16.mxu0 0
    %2502 = vmatpush2.bf16.msra.mxu0 0
    %2503 = vmatprep.mubr.bf16.mxu0 0
    %2504 = vmatmul.mubr.bf16.gmra.mxu0 %v2335
    %v2505 = vpop.f32.mrf.mxu0
    %v2506 = vadd.f32 %v2331, %v2505
    %v2507 = vpop.f32.mrf.mxu0
    %v2508 = vadd.f32 %v2331, %v2507
    %v2509 = vpop.f32.mrf.mxu0
    %v2510 = vpop.f32.mrf.mxu0
    %2511 = vdwg.mxu0
    %2512 = vmatprep.subr.bf16.mxu0 0
    %2513 = vmatpush1.bf16.msra.mxu0 0
    %2514 = vmatprep.subr.bf16.mxu0 0
    %2515 = vmatpush1.bf16.msra.mxu0 0
    %2516 = vmatprep.subr.bf16.mxu0 0
    %2517 = vmatpush1.bf16.msra.mxu0 0
    %2518 = vmatprep.subr.bf16.mxu0 0
    %2519 = vmatpush1.bf16.msra.mxu0 0
    %2520 = vmatprep.subr.bf16.mxu0 0
    %2521 = vmatpush1.bf16.msra.mxu0 0
    %2522 = vmatprep.subr.bf16.mxu0 0
    %2523 = vmatpush1.bf16.msra.mxu0 0
    %2524 = vmatprep.subr.bf16.mxu0 %v2349
    %2525 = vmatpush1.bf16.msra.mxu0 %v2346
    %2526 = vmatprep.subr.bf16.mxu0 %v2242
    %2527 = vmatpush1.bf16.msra.mxu0 %v2241
    %2528 = vmatprep.subr.bf16.mxu0 0
    %2529 = vmatpush2.bf16.msra.mxu0 0
    %2530 = vmatprep.subr.bf16.mxu0 0
    %2531 = vmatpush2.bf16.msra.mxu0 0
    %2532 = vmatprep.subr.bf16.mxu0 0
    %2533 = vmatpush2.bf16.msra.mxu0 0
    %2534 = vmatprep.subr.bf16.mxu0 0
    %2535 = vmatpush2.bf16.msra.mxu0 0
    %2536 = vmatprep.subr.bf16.mxu0 0
    %2537 = vmatpush2.bf16.msra.mxu0 0
    %2538 = vmatprep.subr.bf16.mxu0 0
    %2539 = vmatpush2.bf16.msra.mxu0 0
    %2540 = vmatprep.subr.bf16.mxu0 0
    %2541 = vmatpush2.bf16.msra.mxu0 0
    %2542 = vmatprep.subr.bf16.mxu0 0
    %2543 = vmatpush2.bf16.msra.mxu0 0
    %2544 = vmatprep.mubr.bf16.mxu0 0
    %2545 = vmatmul.mubr.bf16.gmra.mxu0 %v2335
    %v2546 = vpop.f32.mrf.mxu0
    %v2547 = vadd.f32 %v2331, %v2546
    %v2548 = vpop.f32.mrf.mxu0
    %v2549 = vadd.f32 %v2331, %v2548
    %v2550 = vpop.f32.mrf.mxu0
    %v2551 = vpop.f32.mrf.mxu0
    %2552 = vdwg.mxu0
    %2553 = vmatprep.subr.bf16.mxu0 0
    %2554 = vmatpush1.bf16.msra.mxu0 0
    %2555 = vmatprep.subr.bf16.mxu0 0
    %2556 = vmatpush1.bf16.msra.mxu0 0
    %2557 = vmatprep.subr.bf16.mxu0 0
    %2558 = vmatpush1.bf16.msra.mxu0 0
    %2559 = vmatprep.subr.bf16.mxu0 0
    %2560 = vmatpush1.bf16.msra.mxu0 0
    %2561 = vmatprep.subr.bf16.mxu0 0
    %2562 = vmatpush1.bf16.msra.mxu0 0
    %2563 = vmatprep.subr.bf16.mxu0 0
    %2564 = vmatpush1.bf16.msra.mxu0 0
    %2565 = vmatprep.subr.bf16.mxu0 %v2355
    %2566 = vmatpush1.bf16.msra.mxu0 %v2352
    %2567 = vmatprep.subr.bf16.mxu0 %v2244
    %2568 = vmatpush1.bf16.msra.mxu0 %v2243
    %2569 = vmatprep.subr.bf16.mxu0 0
    %2570 = vmatpush2.bf16.msra.mxu0 0
    %2571 = vmatprep.subr.bf16.mxu0 0
    %2572 = vmatpush2.bf16.msra.mxu0 0
    %2573 = vmatprep.subr.bf16.mxu0 0
    %2574 = vmatpush2.bf16.msra.mxu0 0
    %2575 = vmatprep.subr.bf16.mxu0 0
    %2576 = vmatpush2.bf16.msra.mxu0 0
    %2577 = vmatprep.subr.bf16.mxu0 0
    %2578 = vmatpush2.bf16.msra.mxu0 0
    %2579 = vmatprep.subr.bf16.mxu0 0
    %2580 = vmatpush2.bf16.msra.mxu0 0
    %2581 = vmatprep.subr.bf16.mxu0 0
    %2582 = vmatpush2.bf16.msra.mxu0 0
    %2583 = vmatprep.subr.bf16.mxu0 0
    %2584 = vmatpush2.bf16.msra.mxu0 0
    %2585 = vmatprep.mubr.bf16.mxu0 0
    %2586 = vmatmul.mubr.bf16.gmra.mxu0 %v2335
    %v2587 = vpop.f32.mrf.mxu0
    %v2588 = vadd.f32 %v2331, %v2587
    %v2589 = vpop.f32.mrf.mxu0
    %v2590 = vadd.f32 %v2331, %v2589
    %v2591 = vpop.f32.mrf.mxu0
    %v2592 = vpop.f32.mrf.mxu0
    %2593 = vdwg.mxu0
    %2594 = vmatprep.subr.bf16.mxu0 0
    %2595 = vmatpush1.bf16.msra.mxu0 0
    %2596 = vmatprep.subr.bf16.mxu0 0
    %2597 = vmatpush1.bf16.msra.mxu0 0
    %2598 = vmatprep.subr.bf16.mxu0 0
    %2599 = vmatpush1.bf16.msra.mxu0 0
    %2600 = vmatprep.subr.bf16.mxu0 0
    %2601 = vmatpush1.bf16.msra.mxu0 0
    %2602 = vmatprep.subr.bf16.mxu0 0
    %2603 = vmatpush1.bf16.msra.mxu0 0
    %2604 = vmatprep.subr.bf16.mxu0 0
    %2605 = vmatpush1.bf16.msra.mxu0 0
    %2606 = vmatprep.subr.bf16.mxu0 %v2361
    %2607 = vmatpush1.bf16.msra.mxu0 %v2358
    %2608 = vmatprep.subr.bf16.mxu0 %v2246
    %2609 = vmatpush1.bf16.msra.mxu0 %v2245
    %2610 = vmatprep.subr.bf16.mxu0 0
    %2611 = vmatpush2.bf16.msra.mxu0 0
    %2612 = vmatprep.subr.bf16.mxu0 0
    %2613 = vmatpush2.bf16.msra.mxu0 0
    %2614 = vmatprep.subr.bf16.mxu0 0
    %2615 = vmatpush2.bf16.msra.mxu0 0
    %2616 = vmatprep.subr.bf16.mxu0 0
    %2617 = vmatpush2.bf16.msra.mxu0 0
    %2618 = vmatprep.subr.bf16.mxu0 0
    %2619 = vmatpush2.bf16.msra.mxu0 0
    %2620 = vmatprep.subr.bf16.mxu0 0
    %2621 = vmatpush2.bf16.msra.mxu0 0
    %2622 = vmatprep.subr.bf16.mxu0 0
    %2623 = vmatpush2.bf16.msra.mxu0 0
    %2624 = vmatprep.subr.bf16.mxu0 0
    %2625 = vmatpush2.bf16.msra.mxu0 0
    %2626 = vmatprep.mubr.bf16.mxu0 0
    %2627 = vmatmul.mubr.bf16.gmra.mxu0 %v2335
    %v2628 = vpop.f32.mrf.mxu0
    %v2629 = vadd.f32 %v2331, %v2628
    %v2630 = vpop.f32.mrf.mxu0
    %v2631 = vadd.f32 %v2331, %v2630
    %v2632 = vpop.f32.mrf.mxu0
    %v2633 = vpop.f32.mrf.mxu0
    %2634 = vdwg.mxu0
    %2635 = vmatprep.subr.bf16.mxu0 0
    %2636 = vmatpush1.bf16.msra.mxu0 0
    %2637 = vmatprep.subr.bf16.mxu0 0
    %2638 = vmatpush1.bf16.msra.mxu0 0
    %2639 = vmatprep.subr.bf16.mxu0 0
    %2640 = vmatpush1.bf16.msra.mxu0 0
    %2641 = vmatprep.subr.bf16.mxu0 0
    %2642 = vmatpush1.bf16.msra.mxu0 0
    %2643 = vmatprep.subr.bf16.mxu0 0
    %2644 = vmatpush1.bf16.msra.mxu0 0
    %2645 = vmatprep.subr.bf16.mxu0 0
    %2646 = vmatpush1.bf16.msra.mxu0 0
    %2647 = vmatprep.subr.bf16.mxu0 %v2367
    %2648 = vmatpush1.bf16.msra.mxu0 %v2364
    %2649 = vmatprep.subr.bf16.mxu0 %v2248
    %2650 = vmatpush1.bf16.msra.mxu0 %v2247
    %2651 = vmatprep.subr.bf16.mxu0 0
    %2652 = vmatpush2.bf16.msra.mxu0 0
    %2653 = vmatprep.subr.bf16.mxu0 0
    %2654 = vmatpush2.bf16.msra.mxu0 0
    %2655 = vmatprep.subr.bf16.mxu0 0
    %2656 = vmatpush2.bf16.msra.mxu0 0
    %2657 = vmatprep.subr.bf16.mxu0 0
    %2658 = vmatpush2.bf16.msra.mxu0 0
    %2659 = vmatprep.subr.bf16.mxu0 0
    %2660 = vmatpush2.bf16.msra.mxu0 0
    %2661 = vmatprep.subr.bf16.mxu0 0
    %2662 = vmatpush2.bf16.msra.mxu0 0
    %2663 = vmatprep.subr.bf16.mxu0 0
    %2664 = vmatpush2.bf16.msra.mxu0 0
    %2665 = vmatprep.subr.bf16.mxu0 0
    %2666 = vmatpush2.bf16.msra.mxu0 0
    %2667 = vmatprep.mubr.bf16.mxu0 0
    %2668 = vmatmul.mubr.bf16.gmra.mxu0 %v2335
    %v2669 = vpop.f32.mrf.mxu0
    %v2670 = vadd.f32 %v2331, %v2669
    %v2671 = vpop.f32.mrf.mxu0
    %v2672 = vadd.f32 %v2331, %v2671
    %v2673 = vpop.f32.mrf.mxu0
    %v2674 = vpop.f32.mrf.mxu0
    %2675 = vdwg.mxu0
    %2676 = vmatprep.subr.bf16.mxu0 0
    %2677 = vmatpush1.bf16.msra.mxu0 0
    %2678 = vmatprep.subr.bf16.mxu0 0
    %2679 = vmatpush1.bf16.msra.mxu0 0
    %2680 = vmatprep.subr.bf16.mxu0 0
    %2681 = vmatpush1.bf16.msra.mxu0 0
    %2682 = vmatprep.subr.bf16.mxu0 0
    %2683 = vmatpush1.bf16.msra.mxu0 0
    %2684 = vmatprep.subr.bf16.mxu0 0
    %2685 = vmatpush1.bf16.msra.mxu0 0
    %2686 = vmatprep.subr.bf16.mxu0 0
    %2687 = vmatpush1.bf16.msra.mxu0 0
    %2688 = vmatprep.subr.bf16.mxu0 %v2373
    %2689 = vmatpush1.bf16.msra.mxu0 %v2370
    %2690 = vmatprep.subr.bf16.mxu0 %v2250
    %2691 = vmatpush1.bf16.msra.mxu0 %v2249
    %2692 = vmatprep.subr.bf16.mxu0 0
    %2693 = vmatpush2.bf16.msra.mxu0 0
    %2694 = vmatprep.subr.bf16.mxu0 0
    %2695 = vmatpush2.bf16.msra.mxu0 0
    %2696 = vmatprep.subr.bf16.mxu0 0
    %2697 = vmatpush2.bf16.msra.mxu0 0
    %2698 = vmatprep.subr.bf16.mxu0 0
    %2699 = vmatpush2.bf16.msra.mxu0 0
    %2700 = vmatprep.subr.bf16.mxu0 0
    %2701 = vmatpush2.bf16.msra.mxu0 0
    %2702 = vmatprep.subr.bf16.mxu0 0
    %2703 = vmatpush2.bf16.msra.mxu0 0
    %2704 = vmatprep.subr.bf16.mxu0 0
    %2705 = vmatpush2.bf16.msra.mxu0 0
    %2706 = vmatprep.subr.bf16.mxu0 0
    %2707 = vmatpush2.bf16.msra.mxu0 0
    %2708 = vmatprep.mubr.bf16.mxu0 0
    %2709 = vmatmul.mubr.bf16.gmra.mxu0 %v2335
    %v2710 = vpop.f32.mrf.mxu0
    %v2711 = vadd.f32 %v2331, %v2710
    %v2712 = vpop.f32.mrf.mxu0
    %v2713 = vadd.f32 %v2331, %v2712
    %v2714 = vpop.f32.mrf.mxu0
    %v2715 = vpop.f32.mrf.mxu0
    %2716 = vdwg.mxu0
    %2717 = vmatprep.subr.bf16.mxu0 0
    %2718 = vmatpush1.bf16.msra.mxu0 0
    %2719 = vmatprep.subr.bf16.mxu0 0
    %2720 = vmatpush1.bf16.msra.mxu0 0
    %2721 = vmatprep.subr.bf16.mxu0 0
    %2722 = vmatpush1.bf16.msra.mxu0 0
    %2723 = vmatprep.subr.bf16.mxu0 0
    %2724 = vmatpush1.bf16.msra.mxu0 0
    %2725 = vmatprep.subr.bf16.mxu0 0
    %2726 = vmatpush1.bf16.msra.mxu0 0
    %2727 = vmatprep.subr.bf16.mxu0 0
    %2728 = vmatpush1.bf16.msra.mxu0 0
    %2729 = vmatprep.subr.bf16.mxu0 %v2379
    %2730 = vmatpush1.bf16.msra.mxu0 %v2376
    %2731 = vmatprep.subr.bf16.mxu0 %v2252
    %2732 = vmatpush1.bf16.msra.mxu0 %v2251
    %2733 = vmatprep.subr.bf16.mxu0 0
    %2734 = vmatpush2.bf16.msra.mxu0 0
    %2735 = vmatprep.subr.bf16.mxu0 0
    %2736 = vmatpush2.bf16.msra.mxu0 0
    %2737 = vmatprep.subr.bf16.mxu0 0
    %2738 = vmatpush2.bf16.msra.mxu0 0
    %2739 = vmatprep.subr.bf16.mxu0 0
    %2740 = vmatpush2.bf16.msra.mxu0 0
    %2741 = vmatprep.subr.bf16.mxu0 0
    %2742 = vmatpush2.bf16.msra.mxu0 0
    %2743 = vmatprep.subr.bf16.mxu0 0
    %2744 = vmatpush2.bf16.msra.mxu0 0
    %2745 = vmatprep.subr.bf16.mxu0 0
    %2746 = vmatpush2.bf16.msra.mxu0 0
    %2747 = vmatprep.subr.bf16.mxu0 0
    %2748 = vmatpush2.bf16.msra.mxu0 0
    %2749 = vmatprep.mubr.bf16.mxu0 0
    %2750 = vmatmul.mubr.bf16.gmra.mxu0 %v2335
    %v2751 = vpop.f32.mrf.mxu0
    %v2752 = vadd.f32 %v2331, %v2751
    %v2753 = vpop.f32.mrf.mxu0
    %v2754 = vadd.f32 %v2331, %v2753
    %v2755 = vpop.f32.mrf.mxu0
    %v2756 = vpop.f32.mrf.mxu0
    %2757 = vdwg.mxu0
    %2758 = vmatprep.subr.bf16.mxu0 0
    %2759 = vmatpush1.bf16.msra.mxu0 0
    %2760 = vmatprep.subr.bf16.mxu0 0
    %2761 = vmatpush1.bf16.msra.mxu0 0
    %2762 = vmatprep.subr.bf16.mxu0 0
    %2763 = vmatpush1.bf16.msra.mxu0 0
    %2764 = vmatprep.subr.bf16.mxu0 0
    %2765 = vmatpush1.bf16.msra.mxu0 0
    %2766 = vmatprep.subr.bf16.mxu0 0
    %2767 = vmatpush1.bf16.msra.mxu0 0
    %2768 = vmatprep.subr.bf16.mxu0 0
    %2769 = vmatpush1.bf16.msra.mxu0 0
    %2770 = vmatprep.subr.bf16.mxu0 %v2385
    %2771 = vmatpush1.bf16.msra.mxu0 %v2382
    %2772 = vmatprep.subr.bf16.mxu0 %v2254
    %2773 = vmatpush1.bf16.msra.mxu0 %v2253
    %2774 = vmatprep.subr.bf16.mxu0 0
    %2775 = vmatpush2.bf16.msra.mxu0 0
    %2776 = vmatprep.subr.bf16.mxu0 0
    %2777 = vmatpush2.bf16.msra.mxu0 0
    %2778 = vmatprep.subr.bf16.mxu0 0
    %2779 = vmatpush2.bf16.msra.mxu0 0
    %2780 = vmatprep.subr.bf16.mxu0 0
    %2781 = vmatpush2.bf16.msra.mxu0 0
    %2782 = vmatprep.subr.bf16.mxu0 0
    %2783 = vmatpush2.bf16.msra.mxu0 0
    %2784 = vmatprep.subr.bf16.mxu0 0
    %2785 = vmatpush2.bf16.msra.mxu0 0
    %2786 = vmatprep.subr.bf16.mxu0 0
    %2787 = vmatpush2.bf16.msra.mxu0 0
    %2788 = vmatprep.subr.bf16.mxu0 0
    %2789 = vmatpush2.bf16.msra.mxu0 0
    %2790 = vmatprep.mubr.bf16.mxu0 0
    %2791 = vmatmul.mubr.bf16.gmra.mxu0 %v2335
    %v2792 = vpop.f32.mrf.mxu0
    %v2793 = vadd.f32 %v2331, %v2792
    %v2794 = vpop.f32.mrf.mxu0
    %v2795 = vadd.f32 %v2331, %v2794
    %v2796 = vpop.f32.mrf.mxu0
    %v2797 = vpop.f32.mrf.mxu0
    %2798 = vdwg.mxu0
    %2799 = vmatprep.subr.bf16.mxu0 0
    %2800 = vmatpush1.bf16.msra.mxu0 0
    %2801 = vmatprep.subr.bf16.mxu0 0
    %2802 = vmatpush1.bf16.msra.mxu0 0
    %2803 = vmatprep.subr.bf16.mxu0 0
    %2804 = vmatpush1.bf16.msra.mxu0 0
    %2805 = vmatprep.subr.bf16.mxu0 0
    %2806 = vmatpush1.bf16.msra.mxu0 0
    %2807 = vmatprep.subr.bf16.mxu0 0
    %2808 = vmatpush1.bf16.msra.mxu0 0
    %2809 = vmatprep.subr.bf16.mxu0 0
    %2810 = vmatpush1.bf16.msra.mxu0 0
    %2811 = vmatprep.subr.bf16.mxu0 %v2391
    %2812 = vmatpush1.bf16.msra.mxu0 %v2388
    %2813 = vmatprep.subr.bf16.mxu0 %v2256
    %2814 = vmatpush1.bf16.msra.mxu0 %v2255
    %2815 = vmatprep.subr.bf16.mxu0 0
    %2816 = vmatpush2.bf16.msra.mxu0 0
    %2817 = vmatprep.subr.bf16.mxu0 0
    %2818 = vmatpush2.bf16.msra.mxu0 0
    %2819 = vmatprep.subr.bf16.mxu0 0
    %2820 = vmatpush2.bf16.msra.mxu0 0
    %2821 = vmatprep.subr.bf16.mxu0 0
    %2822 = vmatpush2.bf16.msra.mxu0 0
    %2823 = vmatprep.subr.bf16.mxu0 0
    %2824 = vmatpush2.bf16.msra.mxu0 0
    %2825 = vmatprep.subr.bf16.mxu0 0
    %2826 = vmatpush2.bf16.msra.mxu0 0
    %2827 = vmatprep.subr.bf16.mxu0 0
    %2828 = vmatpush2.bf16.msra.mxu0 0
    %2829 = vmatprep.subr.bf16.mxu0 0
    %2830 = vmatpush2.bf16.msra.mxu0 0
    %2831 = vmatprep.mubr.bf16.mxu0 0
    %2832 = vmatmul.mubr.bf16.gmra.mxu0 %v2335
    %v2833 = vpop.f32.mrf.mxu0
    %v2834 = vadd.f32 %v2331, %v2833
    %v2835 = vpop.f32.mrf.mxu0
    %v2836 = vadd.f32 %v2331, %v2835
    %v2837 = vpop.f32.mrf.mxu0
    %v2838 = vpop.f32.mrf.mxu0
    %2839 = vdwg.mxu0
    %2840 = vmatprep.subr.bf16.mxu0 0
    %2841 = vmatpush1.bf16.msra.mxu0 0
    %2842 = vmatprep.subr.bf16.mxu0 0
    %2843 = vmatpush1.bf16.msra.mxu0 0
    %2844 = vmatprep.subr.bf16.mxu0 0
    %2845 = vmatpush1.bf16.msra.mxu0 0
    %2846 = vmatprep.subr.bf16.mxu0 0
    %2847 = vmatpush1.bf16.msra.mxu0 0
    %2848 = vmatprep.subr.bf16.mxu0 0
    %2849 = vmatpush1.bf16.msra.mxu0 0
    %2850 = vmatprep.subr.bf16.mxu0 0
    %2851 = vmatpush1.bf16.msra.mxu0 0
    %2852 = vmatprep.subr.bf16.mxu0 %v2397
    %2853 = vmatpush1.bf16.msra.mxu0 %v2394
    %2854 = vmatprep.subr.bf16.mxu0 %v2258
    %2855 = vmatpush1.bf16.msra.mxu0 %v2257
    %2856 = vmatprep.subr.bf16.mxu0 0
    %2857 = vmatpush2.bf16.msra.mxu0 0
    %2858 = vmatprep.subr.bf16.mxu0 0
    %2859 = vmatpush2.bf16.msra.mxu0 0
    %2860 = vmatprep.subr.bf16.mxu0 0
    %2861 = vmatpush2.bf16.msra.mxu0 0
    %2862 = vmatprep.subr.bf16.mxu0 0
    %2863 = vmatpush2.bf16.msra.mxu0 0
    %2864 = vmatprep.subr.bf16.mxu0 0
    %2865 = vmatpush2.bf16.msra.mxu0 0
    %2866 = vmatprep.subr.bf16.mxu0 0
    %2867 = vmatpush2.bf16.msra.mxu0 0
    %2868 = vmatprep.subr.bf16.mxu0 0
    %2869 = vmatpush2.bf16.msra.mxu0 0
    %2870 = vmatprep.subr.bf16.mxu0 0
    %2871 = vmatpush2.bf16.msra.mxu0 0
    %2872 = vmatprep.mubr.bf16.mxu0 0
    %2873 = vmatmul.mubr.bf16.gmra.mxu0 %v2335
    %v2874 = vpop.f32.mrf.mxu0
    %v2875 = vadd.f32 %v2331, %v2874
    %v2876 = vpop.f32.mrf.mxu0
    %v2877 = vadd.f32 %v2331, %v2876
    %v2878 = vpop.f32.mrf.mxu0
    %v2879 = vpop.f32.mrf.mxu0
    %2880 = vdwg.mxu0
    %2881 = vmatprep.subr.bf16.mxu0 0
    %2882 = vmatpush1.bf16.msra.mxu0 0
    %2883 = vmatprep.subr.bf16.mxu0 0
    %2884 = vmatpush1.bf16.msra.mxu0 0
    %2885 = vmatprep.subr.bf16.mxu0 0
    %2886 = vmatpush1.bf16.msra.mxu0 0
    %2887 = vmatprep.subr.bf16.mxu0 0
    %2888 = vmatpush1.bf16.msra.mxu0 0
    %2889 = vmatprep.subr.bf16.mxu0 0
    %2890 = vmatpush1.bf16.msra.mxu0 0
    %2891 = vmatprep.subr.bf16.mxu0 0
    %2892 = vmatpush1.bf16.msra.mxu0 0
    %2893 = vmatprep.subr.bf16.mxu0 %v2403
    %2894 = vmatpush1.bf16.msra.mxu0 %v2400
    %2895 = vmatprep.subr.bf16.mxu0 %v2260
    %2896 = vmatpush1.bf16.msra.mxu0 %v2259
    %2897 = vmatprep.subr.bf16.mxu0 0
    %2898 = vmatpush2.bf16.msra.mxu0 0
    %2899 = vmatprep.subr.bf16.mxu0 0
    %2900 = vmatpush2.bf16.msra.mxu0 0
    %2901 = vmatprep.subr.bf16.mxu0 0
    %2902 = vmatpush2.bf16.msra.mxu0 0
    %2903 = vmatprep.subr.bf16.mxu0 0
    %2904 = vmatpush2.bf16.msra.mxu0 0
    %2905 = vmatprep.subr.bf16.mxu0 0
    %2906 = vmatpush2.bf16.msra.mxu0 0
    %2907 = vmatprep.subr.bf16.mxu0 0
    %2908 = vmatpush2.bf16.msra.mxu0 0
    %2909 = vmatprep.subr.bf16.mxu0 0
    %2910 = vmatpush2.bf16.msra.mxu0 0
    %2911 = vmatprep.subr.bf16.mxu0 0
    %2912 = vmatpush2.bf16.msra.mxu0 0
    %2913 = vmatprep.mubr.bf16.mxu0 0
    %2914 = vmatmul.mubr.bf16.gmra.mxu0 %v2335
    %v2915 = vpop.f32.mrf.mxu0
    %v2916 = vadd.f32 %v2331, %v2915
    %v2917 = vpop.f32.mrf.mxu0
    %v2918 = vadd.f32 %v2331, %v2917
    %v2919 = vpop.f32.mrf.mxu0
    %v2920 = vpop.f32.mrf.mxu0
    %2921 = vdwg.mxu0
    %2922 = vmatprep.subr.bf16.mxu0 0
    %2923 = vmatpush1.bf16.msra.mxu0 0
    %2924 = vmatprep.subr.bf16.mxu0 0
    %2925 = vmatpush1.bf16.msra.mxu0 0
    %2926 = vmatprep.subr.bf16.mxu0 0
    %2927 = vmatpush1.bf16.msra.mxu0 0
    %2928 = vmatprep.subr.bf16.mxu0 0
    %2929 = vmatpush1.bf16.msra.mxu0 0
    %2930 = vmatprep.subr.bf16.mxu0 0
    %2931 = vmatpush1.bf16.msra.mxu0 0
    %2932 = vmatprep.subr.bf16.mxu0 0
    %2933 = vmatpush1.bf16.msra.mxu0 0
    %2934 = vmatprep.subr.bf16.mxu0 %v2409
    %2935 = vmatpush1.bf16.msra.mxu0 %v2406
    %2936 = vmatprep.subr.bf16.mxu0 %v2262
    %2937 = vmatpush1.bf16.msra.mxu0 %v2261
    %2938 = vmatprep.subr.bf16.mxu0 0
    %2939 = vmatpush2.bf16.msra.mxu0 0
    %2940 = vmatprep.subr.bf16.mxu0 0
    %2941 = vmatpush2.bf16.msra.mxu0 0
    %2942 = vmatprep.subr.bf16.mxu0 0
    %2943 = vmatpush2.bf16.msra.mxu0 0
    %2944 = vmatprep.subr.bf16.mxu0 0
    %2945 = vmatpush2.bf16.msra.mxu0 0
    %2946 = vmatprep.subr.bf16.mxu0 0
    %2947 = vmatpush2.bf16.msra.mxu0 0
    %2948 = vmatprep.subr.bf16.mxu0 0
    %2949 = vmatpush2.bf16.msra.mxu0 0
    %2950 = vmatprep.subr.bf16.mxu0 0
    %2951 = vmatpush2.bf16.msra.mxu0 0
    %2952 = vmatprep.subr.bf16.mxu0 0
    %2953 = vmatpush2.bf16.msra.mxu0 0
    %2954 = vmatprep.mubr.bf16.mxu0 0
    %2955 = vmatmul.mubr.bf16.gmra.mxu0 %v2335
    %v2956 = vpop.f32.mrf.mxu0
    %v2957 = vadd.f32 %v2331, %v2956
    %v2958 = vpop.f32.mrf.mxu0
    %v2959 = vadd.f32 %v2331, %v2958
    %v2960 = vpop.f32.mrf.mxu0
    %v2961 = vpop.f32.mrf.mxu0
    %2962 = vdwg.mxu0
    %2963 = vmatprep.subr.bf16.mxu0 0
    %2964 = vmatpush1.bf16.msra.mxu0 0
    %2965 = vmatprep.subr.bf16.mxu0 0
    %2966 = vmatpush1.bf16.msra.mxu0 0
    %2967 = vmatprep.subr.bf16.mxu0 0
    %2968 = vmatpush1.bf16.msra.mxu0 0
    %2969 = vmatprep.subr.bf16.mxu0 0
    %2970 = vmatpush1.bf16.msra.mxu0 0
    %2971 = vmatprep.subr.bf16.mxu0 0
    %2972 = vmatpush1.bf16.msra.mxu0 0
    %2973 = vmatprep.subr.bf16.mxu0 0
    %2974 = vmatpush1.bf16.msra.mxu0 0
    %2975 = vmatprep.subr.bf16.mxu0 %v2415
    %2976 = vmatpush1.bf16.msra.mxu0 %v2412
    %2977 = vmatprep.subr.bf16.mxu0 %v2264
    %2978 = vmatpush1.bf16.msra.mxu0 %v2263
    %2979 = vmatprep.subr.bf16.mxu0 0
    %2980 = vmatpush2.bf16.msra.mxu0 0
    %2981 = vmatprep.subr.bf16.mxu0 0
    %2982 = vmatpush2.bf16.msra.mxu0 0
    %2983 = vmatprep.subr.bf16.mxu0 0
    %2984 = vmatpush2.bf16.msra.mxu0 0
    %2985 = vmatprep.subr.bf16.mxu0 0
    %2986 = vmatpush2.bf16.msra.mxu0 0
    %2987 = vmatprep.subr.bf16.mxu0 0
    %2988 = vmatpush2.bf16.msra.mxu0 0
    %2989 = vmatprep.subr.bf16.mxu0 0
    %2990 = vmatpush2.bf16.msra.mxu0 0
    %2991 = vmatprep.subr.bf16.mxu0 0
    %2992 = vmatpush2.bf16.msra.mxu0 0
    %2993 = vmatprep.subr.bf16.mxu0 0
    %2994 = vmatpush2.bf16.msra.mxu0 0
    %2995 = vmatprep.mubr.bf16.mxu0 0
    %2996 = vmatmul.mubr.bf16.gmra.mxu0 %v2335
    %v2997 = vpop.f32.mrf.mxu0
    %v2998 = vadd.f32 %v2331, %v2997
    %v2999 = vpop.f32.mrf.mxu0
    %v3000 = vadd.f32 %v2331, %v2999
    %v3001 = vpop.f32.mrf.mxu0
    %v3002 = vpop.f32.mrf.mxu0
    %3003 = vdwg.mxu0
    %3004 = vmatprep.subr.bf16.mxu0 0
    %3005 = vmatpush1.bf16.msra.mxu0 0
    %3006 = vmatprep.subr.bf16.mxu0 0
    %3007 = vmatpush1.bf16.msra.mxu0 0
    %3008 = vmatprep.subr.bf16.mxu0 0
    %3009 = vmatpush1.bf16.msra.mxu0 0
    %3010 = vmatprep.subr.bf16.mxu0 0
    %3011 = vmatpush1.bf16.msra.mxu0 0
    %3012 = vmatprep.subr.bf16.mxu0 0
    %3013 = vmatpush1.bf16.msra.mxu0 0
    %3014 = vmatprep.subr.bf16.mxu0 0
    %3015 = vmatpush1.bf16.msra.mxu0 0
    %3016 = vmatprep.subr.bf16.mxu0 %v2421
    %3017 = vmatpush1.bf16.msra.mxu0 %v2418
    %3018 = vmatprep.subr.bf16.mxu0 %v2266
    %3019 = vmatpush1.bf16.msra.mxu0 %v2265
    %3020 = vmatprep.subr.bf16.mxu0 0
    %3021 = vmatpush2.bf16.msra.mxu0 0
    %3022 = vmatprep.subr.bf16.mxu0 0
    %3023 = vmatpush2.bf16.msra.mxu0 0
    %3024 = vmatprep.subr.bf16.mxu0 0
    %3025 = vmatpush2.bf16.msra.mxu0 0
    %3026 = vmatprep.subr.bf16.mxu0 0
    %3027 = vmatpush2.bf16.msra.mxu0 0
    %3028 = vmatprep.subr.bf16.mxu0 0
    %3029 = vmatpush2.bf16.msra.mxu0 0
    %3030 = vmatprep.subr.bf16.mxu0 0
    %3031 = vmatpush2.bf16.msra.mxu0 0
    %3032 = vmatprep.subr.bf16.mxu0 0
    %3033 = vmatpush2.bf16.msra.mxu0 0
    %3034 = vmatprep.subr.bf16.mxu0 0
    %3035 = vmatpush2.bf16.msra.mxu0 0
    %3036 = vmatprep.mubr.bf16.mxu0 0
    %3037 = vmatmul.mubr.bf16.gmra.mxu0 %v2335
    %v3038 = vpop.f32.mrf.mxu0
    %v3039 = vadd.f32 %v2331, %v3038
    %v3040 = vpop.f32.mrf.mxu0
    %v3041 = vadd.f32 %v2331, %v3040
    %v3042 = vpop.f32.mrf.mxu0
    %v3043 = vpop.f32.mrf.mxu0
    %3044 = vdwg.mxu0
    %3045 = vmatprep.subr.bf16.mxu0 0
    %3046 = vmatpush1.bf16.msra.mxu0 0
    %3047 = vmatprep.subr.bf16.mxu0 0
    %3048 = vmatpush1.bf16.msra.mxu0 0
    %3049 = vmatprep.subr.bf16.mxu0 0
    %3050 = vmatpush1.bf16.msra.mxu0 0
    %3051 = vmatprep.subr.bf16.mxu0 0
    %3052 = vmatpush1.bf16.msra.mxu0 0
    %3053 = vmatprep.subr.bf16.mxu0 0
    %3054 = vmatpush1.bf16.msra.mxu0 0
    %3055 = vmatprep.subr.bf16.mxu0 0
    %3056 = vmatpush1.bf16.msra.mxu0 0
    %3057 = vmatprep.subr.bf16.mxu0 %v2427
    %3058 = vmatpush1.bf16.msra.mxu0 %v2424
    %3059 = vmatprep.subr.bf16.mxu0 %v2268
    %3060 = vmatpush1.bf16.msra.mxu0 %v2267
    %3061 = vmatprep.subr.bf16.mxu0 0
    %3062 = vmatpush2.bf16.msra.mxu0 0
    %3063 = vmatprep.subr.bf16.mxu0 0
    %3064 = vmatpush2.bf16.msra.mxu0 0
    %3065 = vmatprep.subr.bf16.mxu0 0
    %3066 = vmatpush2.bf16.msra.mxu0 0
    %3067 = vmatprep.subr.bf16.mxu0 0
    %3068 = vmatpush2.bf16.msra.mxu0 0
    %3069 = vmatprep.subr.bf16.mxu0 0
    %3070 = vmatpush2.bf16.msra.mxu0 0
    %3071 = vmatprep.subr.bf16.mxu0 0
    %3072 = vmatpush2.bf16.msra.mxu0 0
    %3073 = vmatprep.subr.bf16.mxu0 0
    %3074 = vmatpush2.bf16.msra.mxu0 0
    %3075 = vmatprep.subr.bf16.mxu0 0
    %3076 = vmatpush2.bf16.msra.mxu0 0
    %3077 = vmatprep.mubr.bf16.mxu0 0
    %3078 = vmatmul.mubr.bf16.gmra.mxu0 %v2335
    %v3079 = vpop.f32.mrf.mxu0
    %v3080 = vadd.f32 %v2331, %v3079
    %v3081 = vpop.f32.mrf.mxu0
    %v3082 = vadd.f32 %v2331, %v3081
    %v3083 = vpop.f32.mrf.mxu0
    %v3084 = vpop.f32.mrf.mxu0
    %3085 = vdwg.mxu0
    %3086 = vmatprep.subr.bf16.mxu0 0
    %3087 = vmatpush1.bf16.msra.mxu0 0
    %3088 = vmatprep.subr.bf16.mxu0 0
    %3089 = vmatpush1.bf16.msra.mxu0 0
    %3090 = vmatprep.subr.bf16.mxu0 0
    %3091 = vmatpush1.bf16.msra.mxu0 0
    %3092 = vmatprep.subr.bf16.mxu0 0
    %3093 = vmatpush1.bf16.msra.mxu0 0
    %3094 = vmatprep.subr.bf16.mxu0 0
    %3095 = vmatpush1.bf16.msra.mxu0 0
    %3096 = vmatprep.subr.bf16.mxu0 0
    %3097 = vmatpush1.bf16.msra.mxu0 0
    %3098 = vmatprep.subr.bf16.mxu0 %v2433
    %3099 = vmatpush1.bf16.msra.mxu0 %v2430
    %3100 = vmatprep.subr.bf16.mxu0 %v2270
    %3101 = vmatpush1.bf16.msra.mxu0 %v2269
    %3102 = vmatprep.subr.bf16.mxu0 0
    %3103 = vmatpush2.bf16.msra.mxu0 0
    %3104 = vmatprep.subr.bf16.mxu0 0
    %3105 = vmatpush2.bf16.msra.mxu0 0
    %3106 = vmatprep.subr.bf16.mxu0 0
    %3107 = vmatpush2.bf16.msra.mxu0 0
    %3108 = vmatprep.subr.bf16.mxu0 0
    %3109 = vmatpush2.bf16.msra.mxu0 0
    %3110 = vmatprep.subr.bf16.mxu0 0
    %3111 = vmatpush2.bf16.msra.mxu0 0
    %3112 = vmatprep.subr.bf16.mxu0 0
    %3113 = vmatpush2.bf16.msra.mxu0 0
    %3114 = vmatprep.subr.bf16.mxu0 0
    %3115 = vmatpush2.bf16.msra.mxu0 0
    %3116 = vmatprep.subr.bf16.mxu0 0
    %3117 = vmatpush2.bf16.msra.mxu0 0
    %3118 = vmatprep.mubr.bf16.mxu0 0
    %3119 = vmatmul.mubr.bf16.gmra.mxu0 %v2335
    %v3120 = vpop.f32.mrf.mxu0
    %v3121 = vadd.f32 %v2331, %v3120
    %v3122 = vpop.f32.mrf.mxu0
    %v3123 = vadd.f32 %v2331, %v3122
    %v3124 = vpop.f32.mrf.mxu0
    %v3125 = vpop.f32.mrf.mxu0
    %3126 = vdwg.mxu0
    %3127 = vmatprep.subr.bf16.mxu0 0
    %3128 = vmatpush1.bf16.msra.mxu0 0
    %3129 = vmatprep.subr.bf16.mxu0 0
    %3130 = vmatpush1.bf16.msra.mxu0 0
    %3131 = vmatprep.subr.bf16.mxu0 0
    %3132 = vmatpush1.bf16.msra.mxu0 0
    %3133 = vmatprep.subr.bf16.mxu0 0
    %3134 = vmatpush1.bf16.msra.mxu0 0
    %3135 = vmatprep.subr.bf16.mxu0 0
    %3136 = vmatpush1.bf16.msra.mxu0 0
    %3137 = vmatprep.subr.bf16.mxu0 0
    %3138 = vmatpush1.bf16.msra.mxu0 0
    %3139 = vmatprep.subr.bf16.mxu0 %v2439
    %3140 = vmatpush1.bf16.msra.mxu0 %v2436
    %3141 = vmatprep.subr.bf16.mxu0 %v2272
    %3142 = vmatpush1.bf16.msra.mxu0 %v2271
    %3143 = vmatprep.subr.bf16.mxu0 0
    %3144 = vmatpush2.bf16.msra.mxu0 0
    %3145 = vmatprep.subr.bf16.mxu0 0
    %3146 = vmatpush2.bf16.msra.mxu0 0
    %3147 = vmatprep.subr.bf16.mxu0 0
    %3148 = vmatpush2.bf16.msra.mxu0 0
    %3149 = vmatprep.subr.bf16.mxu0 0
    %3150 = vmatpush2.bf16.msra.mxu0 0
    %3151 = vmatprep.subr.bf16.mxu0 0
    %3152 = vmatpush2.bf16.msra.mxu0 0
    %3153 = vmatprep.subr.bf16.mxu0 0
    %3154 = vmatpush2.bf16.msra.mxu0 0
    %3155 = vmatprep.subr.bf16.mxu0 0
    %3156 = vmatpush2.bf16.msra.mxu0 0
    %3157 = vmatprep.subr.bf16.mxu0 0
    %3158 = vmatpush2.bf16.msra.mxu0 0
    %3159 = vmatprep.mubr.bf16.mxu0 0
    %3160 = vmatmul.mubr.bf16.gmra.mxu0 %v2335
    %v3161 = vpop.f32.mrf.mxu0
    %v3162 = vadd.f32 %v2331, %v3161
    %v3163 = vpop.f32.mrf.mxu0
    %v3164 = vadd.f32 %v2331, %v3163
    %v3165 = vpop.f32.mrf.mxu0
    %v3166 = vpop.f32.mrf.mxu0
    %3167 = vdwg.mxu0
    %3168 = vmatprep.subr.bf16.mxu0 0
    %3169 = vmatpush1.bf16.msra.mxu0 0
    %3170 = vmatprep.subr.bf16.mxu0 0
    %3171 = vmatpush1.bf16.msra.mxu0 0
    %3172 = vmatprep.subr.bf16.mxu0 0
    %3173 = vmatpush1.bf16.msra.mxu0 0
    %3174 = vmatprep.subr.bf16.mxu0 0
    %3175 = vmatpush1.bf16.msra.mxu0 0
    %3176 = vmatprep.subr.bf16.mxu0 0
    %3177 = vmatpush1.bf16.msra.mxu0 0
    %3178 = vmatprep.subr.bf16.mxu0 0
    %3179 = vmatpush1.bf16.msra.mxu0 0
    %3180 = vmatprep.subr.bf16.mxu0 %v2445
    %3181 = vmatpush1.bf16.msra.mxu0 %v2442
    %3182 = vmatprep.subr.bf16.mxu0 %v2274
    %3183 = vmatpush1.bf16.msra.mxu0 %v2273
    %3184 = vmatprep.subr.bf16.mxu0 0
    %3185 = vmatpush2.bf16.msra.mxu0 0
    %3186 = vmatprep.subr.bf16.mxu0 0
    %3187 = vmatpush2.bf16.msra.mxu0 0
    %3188 = vmatprep.subr.bf16.mxu0 0
    %3189 = vmatpush2.bf16.msra.mxu0 0
    %3190 = vmatprep.subr.bf16.mxu0 0
    %3191 = vmatpush2.bf16.msra.mxu0 0
    %3192 = vmatprep.subr.bf16.mxu0 0
    %3193 = vmatpush2.bf16.msra.mxu0 0
    %3194 = vmatprep.subr.bf16.mxu0 0
    %3195 = vmatpush2.bf16.msra.mxu0 0
    %3196 = vmatprep.subr.bf16.mxu0 0
    %3197 = vmatpush2.bf16.msra.mxu0 0
    %3198 = vmatprep.subr.bf16.mxu0 0
    %3199 = vmatpush2.bf16.msra.mxu0 0
    %3200 = vmatprep.mubr.bf16.mxu0 0
    %3201 = vmatmul.mubr.bf16.gmra.mxu0 %v2335
    %v3202 = vpop.f32.mrf.mxu0
    %v3203 = vadd.f32 %v2331, %v3202
    %v3204 = vpop.f32.mrf.mxu0
    %v3205 = vadd.f32 %v2331, %v3204
    %v3206 = vpop.f32.mrf.mxu0
    %v3207 = vpop.f32.mrf.mxu0
    %3208 = vdwg.mxu0
    %3209 = vmatprep.subr.bf16.mxu0 0
    %3210 = vmatpush1.bf16.msra.mxu0 0
    %3211 = vmatprep.subr.bf16.mxu0 0
    %3212 = vmatpush1.bf16.msra.mxu0 0
    %3213 = vmatprep.subr.bf16.mxu0 0
    %3214 = vmatpush1.bf16.msra.mxu0 0
    %3215 = vmatprep.subr.bf16.mxu0 0
    %3216 = vmatpush1.bf16.msra.mxu0 0
    %3217 = vmatprep.subr.bf16.mxu0 0
    %3218 = vmatpush1.bf16.msra.mxu0 0
    %3219 = vmatprep.subr.bf16.mxu0 0
    %3220 = vmatpush1.bf16.msra.mxu0 0
    %3221 = vmatprep.subr.bf16.mxu0 %v2451
    %3222 = vmatpush1.bf16.msra.mxu0 %v2448
    %3223 = vmatprep.subr.bf16.mxu0 %v2276
    %3224 = vmatpush1.bf16.msra.mxu0 %v2275
    %3225 = vmatprep.subr.bf16.mxu0 0
    %3226 = vmatpush2.bf16.msra.mxu0 0
    %3227 = vmatprep.subr.bf16.mxu0 0
    %3228 = vmatpush2.bf16.msra.mxu0 0
    %3229 = vmatprep.subr.bf16.mxu0 0
    %3230 = vmatpush2.bf16.msra.mxu0 0
    %3231 = vmatprep.subr.bf16.mxu0 0
    %3232 = vmatpush2.bf16.msra.mxu0 0
    %3233 = vmatprep.subr.bf16.mxu0 0
    %3234 = vmatpush2.bf16.msra.mxu0 0
    %3235 = vmatprep.subr.bf16.mxu0 0
    %3236 = vmatpush2.bf16.msra.mxu0 0
    %3237 = vmatprep.subr.bf16.mxu0 0
    %3238 = vmatpush2.bf16.msra.mxu0 0
    %3239 = vmatprep.subr.bf16.mxu0 0
    %3240 = vmatpush2.bf16.msra.mxu0 0
    %3241 = vmatprep.mubr.bf16.mxu0 0
    %3242 = vmatmul.mubr.bf16.gmra.mxu0 %v2335
    %v3243 = vpop.f32.mrf.mxu0
    %v3244 = vadd.f32 %v2331, %v3243
    %v3245 = vpop.f32.mrf.mxu0
    %v3246 = vadd.f32 %v2331, %v3245
    %v3247 = vpop.f32.mrf.mxu0
    %v3248 = vpop.f32.mrf.mxu0
    %3249 = vdwg.mxu0
    %3250 = vmatprep.subr.bf16.mxu0 0
    %3251 = vmatpush1.bf16.msra.mxu0 0
    %3252 = vmatprep.subr.bf16.mxu0 0
    %3253 = vmatpush1.bf16.msra.mxu0 0
    %3254 = vmatprep.subr.bf16.mxu0 0
    %3255 = vmatpush1.bf16.msra.mxu0 0
    %3256 = vmatprep.subr.bf16.mxu0 0
    %3257 = vmatpush1.bf16.msra.mxu0 0
    %3258 = vmatprep.subr.bf16.mxu0 0
    %3259 = vmatpush1.bf16.msra.mxu0 0
    %3260 = vmatprep.subr.bf16.mxu0 0
    %3261 = vmatpush1.bf16.msra.mxu0 0
    %3262 = vmatprep.subr.bf16.mxu0 %v2457
    %3263 = vmatpush1.bf16.msra.mxu0 %v2454
    %3264 = vmatprep.subr.bf16.mxu0 %v2278
    %3265 = vmatpush1.bf16.msra.mxu0 %v2277
    %3266 = vmatprep.subr.bf16.mxu0 0
    %3267 = vmatpush2.bf16.msra.mxu0 0
    %3268 = vmatprep.subr.bf16.mxu0 0
    %3269 = vmatpush2.bf16.msra.mxu0 0
    %3270 = vmatprep.subr.bf16.mxu0 0
    %3271 = vmatpush2.bf16.msra.mxu0 0
    %3272 = vmatprep.subr.bf16.mxu0 0
    %3273 = vmatpush2.bf16.msra.mxu0 0
    %3274 = vmatprep.subr.bf16.mxu0 0
    %3275 = vmatpush2.bf16.msra.mxu0 0
    %3276 = vmatprep.subr.bf16.mxu0 0
    %3277 = vmatpush2.bf16.msra.mxu0 0
    %3278 = vmatprep.subr.bf16.mxu0 0
    %3279 = vmatpush2.bf16.msra.mxu0 0
    %3280 = vmatprep.subr.bf16.mxu0 0
    %3281 = vmatpush2.bf16.msra.mxu0 0
    %3282 = vmatprep.mubr.bf16.mxu0 0
    %3283 = vmatmul.mubr.bf16.gmra.mxu0 %v2335
    %v3284 = vpop.f32.mrf.mxu0
    %v3285 = vadd.f32 %v2331, %v3284
    %v3286 = vpop.f32.mrf.mxu0
    %v3287 = vadd.f32 %v2331, %v3286
    %v3288 = vpop.f32.mrf.mxu0
    %v3289 = vpop.f32.mrf.mxu0
    %3290 = vdwg.mxu0
    %3291 = vmatprep.subr.bf16.mxu0 0
    %3292 = vmatpush1.bf16.msra.mxu0 0
    %3293 = vmatprep.subr.bf16.mxu0 0
    %3294 = vmatpush1.bf16.msra.mxu0 0
    %3295 = vmatprep.subr.bf16.mxu0 0
    %3296 = vmatpush1.bf16.msra.mxu0 0
    %3297 = vmatprep.subr.bf16.mxu0 0
    %3298 = vmatpush1.bf16.msra.mxu0 0
    %3299 = vmatprep.subr.bf16.mxu0 0
    %3300 = vmatpush1.bf16.msra.mxu0 0
    %3301 = vmatprep.subr.bf16.mxu0 0
    %3302 = vmatpush1.bf16.msra.mxu0 0
    %3303 = vmatprep.subr.bf16.mxu0 %v2463
    %3304 = vmatpush1.bf16.msra.mxu0 %v2460
    %3305 = vmatprep.subr.bf16.mxu0 %v2280
    %3306 = vmatpush1.bf16.msra.mxu0 %v2279
    %3307 = vmatprep.subr.bf16.mxu0 0
    %3308 = vmatpush2.bf16.msra.mxu0 0
    %3309 = vmatprep.subr.bf16.mxu0 0
    %3310 = vmatpush2.bf16.msra.mxu0 0
    %3311 = vmatprep.subr.bf16.mxu0 0
    %3312 = vmatpush2.bf16.msra.mxu0 0
    %3313 = vmatprep.subr.bf16.mxu0 0
    %3314 = vmatpush2.bf16.msra.mxu0 0
    %3315 = vmatprep.subr.bf16.mxu0 0
    %3316 = vmatpush2.bf16.msra.mxu0 0
    %3317 = vmatprep.subr.bf16.mxu0 0
    %3318 = vmatpush2.bf16.msra.mxu0 0
    %3319 = vmatprep.subr.bf16.mxu0 0
    %3320 = vmatpush2.bf16.msra.mxu0 0
    %3321 = vmatprep.subr.bf16.mxu0 0
    %3322 = vmatpush2.bf16.msra.mxu0 0
    %3323 = vmatprep.mubr.bf16.mxu0 0
    %3324 = vmatmul.mubr.bf16.gmra.mxu0 %v2335
    %v3325 = vpop.f32.mrf.mxu0
    %v3326 = vadd.f32 %v2331, %v3325
    %v3327 = vpop.f32.mrf.mxu0
    %v3328 = vadd.f32 %v2331, %v3327
    %v3329 = vpop.f32.mrf.mxu0
    %v3330 = vpop.f32.mrf.mxu0
    %3331 = vdwg.mxu0
    %3332 = vmatprep.subr.bf16.mxu0 0
    %3333 = vmatpush1.bf16.msra.mxu0 0
    %3334 = vmatprep.subr.bf16.mxu0 0
    %3335 = vmatpush1.bf16.msra.mxu0 0
    %3336 = vmatprep.subr.bf16.mxu0 0
    %3337 = vmatpush1.bf16.msra.mxu0 0
    %3338 = vmatprep.subr.bf16.mxu0 0
    %3339 = vmatpush1.bf16.msra.mxu0 0
    %3340 = vmatprep.subr.bf16.mxu0 0
    %3341 = vmatpush1.bf16.msra.mxu0 0
    %3342 = vmatprep.subr.bf16.mxu0 0
    %3343 = vmatpush1.bf16.msra.mxu0 0
    %3344 = vmatprep.subr.bf16.mxu0 %v2469
    %3345 = vmatpush1.bf16.msra.mxu0 %v2466
    %3346 = vmatprep.subr.bf16.mxu0 %v2282
    %3347 = vmatpush1.bf16.msra.mxu0 %v2281
    %3348 = vmatprep.subr.bf16.mxu0 0
    %3349 = vmatpush2.bf16.msra.mxu0 0
    %3350 = vmatprep.subr.bf16.mxu0 0
    %3351 = vmatpush2.bf16.msra.mxu0 0
    %3352 = vmatprep.subr.bf16.mxu0 0
    %3353 = vmatpush2.bf16.msra.mxu0 0
    %3354 = vmatprep.subr.bf16.mxu0 0
    %3355 = vmatpush2.bf16.msra.mxu0 0
    %3356 = vmatprep.subr.bf16.mxu0 0
    %3357 = vmatpush2.bf16.msra.mxu0 0
    %3358 = vmatprep.subr.bf16.mxu0 0
    %3359 = vmatpush2.bf16.msra.mxu0 0
    %3360 = vmatprep.subr.bf16.mxu0 0
    %3361 = vmatpush2.bf16.msra.mxu0 0
    %3362 = vmatprep.subr.bf16.mxu0 0
    %3363 = vmatpush2.bf16.msra.mxu0 0
    %3364 = vmatprep.mubr.bf16.mxu0 0
    %3365 = vmatmul.mubr.bf16.gmra.mxu0 %v2335
    %v3366 = vpop.f32.mrf.mxu0
    %v3367 = vadd.f32 %v2331, %v3366
    %v3368 = vpop.f32.mrf.mxu0
    %v3369 = vpop.f32.mrf.mxu0
    %v3370 = vpop.f32.mrf.mxu0
    %3371 = vdwg.mxu0
    %v3372 = vmax.f32 %v2506, 0.0
    %v3373 = vmax.f32 %v2508, 0.0
    %v3374 = vmax.f32 %v2547, 0.0
    %v3375 = vmax.f32 %v2549, 0.0
    %v3376 = vmax.f32 %v2588, 0.0
    %v3377 = vmax.f32 %v2590, 0.0
    %v3378 = vmax.f32 %v2629, 0.0
    %v3379 = vmax.f32 %v2631, 0.0
    %v3380 = vmax.f32 %v2670, 0.0
    %v3381 = vmax.f32 %v2672, 0.0
    %v3382 = vmax.f32 %v2711, 0.0
    %v3383 = vmax.f32 %v2713, 0.0
    %v3384 = vmax.f32 %v2752, 0.0
    %v3385 = vmax.f32 %v2754, 0.0
    %v3386 = vmax.f32 %v2793, 0.0
    %v3387 = vmax.f32 %v2795, 0.0
    %v3388 = vmax.f32 %v2834, 0.0
    %v3389 = vmax.f32 %v2836, 0.0
    %v3390 = vmax.f32 %v2875, 0.0
    %v3391 = vmax.f32 %v2877, 0.0
    %v3392 = vmax.f32 %v2916, 0.0
    %v3393 = vmax.f32 %v2918, 0.0
    %v3394 = vmax.f32 %v2957, 0.0
    %v3395 = vmax.f32 %v2959, 0.0
    %v3396 = vmax.f32 %v2998, 0.0
    %v3397 = vmax.f32 %v3000, 0.0
    %v3398 = vmax.f32 %v3039, 0.0
    %v3399 = vmax.f32 %v3041, 0.0
    %v3400 = vmax.f32 %v3080, 0.0
    %v3401 = vmax.f32 %v3082, 0.0
    %v3402 = vmax.f32 %v3121, 0.0
    %v3403 = vmax.f32 %v3123, 0.0
    %v3404 = vmax.f32 %v3162, 0.0
    %v3405 = vmax.f32 %v3164, 0.0
    %v3406 = vmax.f32 %v3203, 0.0
    %v3407 = vmax.f32 %v3205, 0.0
    %v3408 = vmax.f32 %v3244, 0.0
    %v3409 = vmax.f32 %v3246, 0.0
    %v3410 = vmax.f32 %v3285, 0.0
    %v3411 = vmax.f32 %v3287, 0.0
    %v3412 = vmax.f32 %v3326, 0.0
    %v3413 = vmax.f32 %v3328, 0.0
    %v3414 = vmax.f32 %v3367, 0.0
    %3441 = vrot.lane.b32.xlu0 %v3372, 120
    %v3442 = vpop.permute.xlu0 %3441
    %3443 = vrot.lane.b32.xlu0 %v3373, 120
    %v3444 = vpop.permute.xlu0 %3443
    %3445 = vrot.lane.b32.xlu0 %v3374, 120
    %v3446 = vpop.permute.xlu0 %3445
    %3447 = vrot.lane.b32.xlu0 %v3377, 120
    %v3448 = vpop.permute.xlu0 %3447
    %3449 = vrot.lane.b32.xlu0 %v3378, 120
    %v3450 = vpop.permute.xlu0 %3449
    %3451 = vrot.lane.b32.xlu0 %v3379, 120
    %v3452 = vpop.permute.xlu0 %3451
    %3453 = vrot.lane.b32.xlu0 %v3382, 120
    %v3454 = vpop.permute.xlu0 %3453
    %3455 = vrot.lane.b32.xlu0 %v3383, 120
    %v3456 = vpop.permute.xlu0 %3455
    %3457 = vrot.lane.b32.xlu0 %v3384, 120
    %v3458 = vpop.permute.xlu0 %3457
    %3459 = vrot.lane.b32.xlu0 %v3387, 120
    %v3460 = vpop.permute.xlu0 %3459
    %3461 = vrot.lane.b32.xlu0 %v3388, 120
    %v3462 = vpop.permute.xlu0 %3461
    %3463 = vrot.lane.b32.xlu0 %v3389, 120
    %v3464 = vpop.permute.xlu0 %3463
    %3465 = vrot.lane.b32.xlu0 %v3390, 120
    %v3466 = vpop.permute.xlu0 %3465
    %3467 = vrot.lane.b32.xlu0 %v3393, 120
    %v3468 = vpop.permute.xlu0 %3467
    %3469 = vrot.lane.b32.xlu0 %v3394, 120
    %v3470 = vpop.permute.xlu0 %3469
    %3471 = vrot.lane.b32.xlu0 %v3395, 120
    %v3472 = vpop.permute.xlu0 %3471
    %3473 = vrot.lane.b32.xlu0 %v3398, 120
    %v3474 = vpop.permute.xlu0 %3473
    %3475 = vrot.lane.b32.xlu0 %v3399, 120
    %v3476 = vpop.permute.xlu0 %3475
    %3477 = vrot.lane.b32.xlu0 %v3400, 120
    %v3478 = vpop.permute.xlu0 %3477
    %3479 = vrot.lane.b32.xlu0 %v3403, 120
    %v3480 = vpop.permute.xlu0 %3479
    %3481 = vrot.lane.b32.xlu0 %v3404, 120
    %v3482 = vpop.permute.xlu0 %3481
    %3483 = vrot.lane.b32.xlu0 %v3405, 120
    %v3484 = vpop.permute.xlu0 %3483
    %3485 = vrot.lane.b32.xlu0 %v3408, 120
    %v3486 = vpop.permute.xlu0 %3485
    %3487 = vrot.lane.b32.xlu0 %v3409, 120
    %v3488 = vpop.permute.xlu0 %3487
    %3489 = vrot.lane.b32.xlu0 %v3410, 120
    %v3490 = vpop.permute.xlu0 %3489
    %3491 = vrot.lane.b32.xlu0 %v3411, 120
    %v3492 = vpop.permute.xlu0 %3491
    %v3493 = vsel %vm331, %v3442, %v3444
    %v3494 = vsel %vm331, %v3444, %v3446
    %v3495 = vsel %vm331, %v3448, %v3450
    %v3496 = vsel %vm331, %v3450, %v3452
    %v3497 = vsel %vm331, %v3454, %v3456
    %v3498 = vsel %vm331, %v3456, %v3458
    %v3499 = vsel %vm331, %v3460, %v3462
    %v3500 = vsel %vm331, %v3462, %v3464
    %v3501 = vsel %vm331, %v3464, %v3466
    %v3502 = vsel %vm331, %v3468, %v3470
    %v3503 = vsel %vm331, %v3470, %v3472
    %v3504 = vsel %vm331, %v3474, %v3476
    %v3505 = vsel %vm331, %v3476, %v3478
    %v3506 = vsel %vm331, %v3480, %v3482
    %v3507 = vsel %vm331, %v3482, %v3484
    %v3508 = vsel %vm331, %v3486, %v3488
    %v3509 = vsel %vm331, %v3488, %v3490
    %v3510 = vsel %vm331, %v3490, %v3492
    %v3529 = vmax.f32 %v3372, %v3493
    %v3530 = vmax.f32 %v3373, %v3494
    %v3531 = vmax.f32 %v3377, %v3495
    %v3532 = vmax.f32 %v3378, %v3496
    %v3533 = vmax.f32 %v3382, %v3497
    %v3534 = vmax.f32 %v3383, %v3498
    %v3535 = vmax.f32 %v3387, %v3499
    %v3536 = vmax.f32 %v3388, %v3500
    %v3537 = vmax.f32 %v3389, %v3501
    %v3538 = vmax.f32 %v3393, %v3502
    %v3539 = vmax.f32 %v3394, %v3503
    %v3540 = vmax.f32 %v3398, %v3504
    %v3541 = vmax.f32 %v3399, %v3505
    %v3542 = vmax.f32 %v3403, %v3506
    %v3543 = vmax.f32 %v3404, %v3507
    %v3544 = vmax.f32 %v3408, %v3508
    %v3545 = vmax.f32 %v3409, %v3509
    %v3546 = vmax.f32 %v3410, %v3510
    %3547 = vrot.lane.b32.xlu0 %v3372, 112
    %v3548 = vpop.permute.xlu0 %3547
    %3549 = vrot.lane.b32.xlu0 %v3373, 112
    %v3550 = vpop.permute.xlu0 %3549
    %3551 = vrot.lane.b32.xlu0 %v3374, 112
    %v3552 = vpop.permute.xlu0 %3551
    %3553 = vrot.lane.b32.xlu0 %v3377, 112
    %v3554 = vpop.permute.xlu0 %3553
    %3555 = vrot.lane.b32.xlu0 %v3378, 112
    %v3556 = vpop.permute.xlu0 %3555
    %3557 = vrot.lane.b32.xlu0 %v3379, 112
    %v3558 = vpop.permute.xlu0 %3557
    %3559 = vrot.lane.b32.xlu0 %v3382, 112
    %v3560 = vpop.permute.xlu0 %3559
    %3561 = vrot.lane.b32.xlu0 %v3383, 112
    %v3562 = vpop.permute.xlu0 %3561
    %3563 = vrot.lane.b32.xlu0 %v3384, 112
    %v3564 = vpop.permute.xlu0 %3563
    %3565 = vrot.lane.b32.xlu0 %v3387, 112
    %v3566 = vpop.permute.xlu0 %3565
    %3567 = vrot.lane.b32.xlu0 %v3388, 112
    %v3568 = vpop.permute.xlu0 %3567
    %3569 = vrot.lane.b32.xlu0 %v3389, 112
    %v3570 = vpop.permute.xlu0 %3569
    %3571 = vrot.lane.b32.xlu0 %v3390, 112
    %v3572 = vpop.permute.xlu0 %3571
    %3573 = vrot.lane.b32.xlu0 %v3393, 112
    %v3574 = vpop.permute.xlu0 %3573
    %3575 = vrot.lane.b32.xlu0 %v3394, 112
    %v3576 = vpop.permute.xlu0 %3575
    %3577 = vrot.lane.b32.xlu0 %v3395, 112
    %v3578 = vpop.permute.xlu0 %3577
    %3579 = vrot.lane.b32.xlu0 %v3398, 112
    %v3580 = vpop.permute.xlu0 %3579
    %3581 = vrot.lane.b32.xlu0 %v3399, 112
    %v3582 = vpop.permute.xlu0 %3581
    %3583 = vrot.lane.b32.xlu0 %v3400, 112
    %v3584 = vpop.permute.xlu0 %3583
    %3585 = vrot.lane.b32.xlu0 %v3403, 112
    %v3586 = vpop.permute.xlu0 %3585
    %3587 = vrot.lane.b32.xlu0 %v3404, 112
    %v3588 = vpop.permute.xlu0 %3587
    %3589 = vrot.lane.b32.xlu0 %v3405, 112
    %v3590 = vpop.permute.xlu0 %3589
    %3591 = vrot.lane.b32.xlu0 %v3408, 112
    %v3592 = vpop.permute.xlu0 %3591
    %3593 = vrot.lane.b32.xlu0 %v3409, 112
    %v3594 = vpop.permute.xlu0 %3593
    %3595 = vrot.lane.b32.xlu0 %v3410, 112
    %v3596 = vpop.permute.xlu0 %3595
    %3597 = vrot.lane.b32.xlu0 %v3411, 112
    %v3598 = vpop.permute.xlu0 %3597
    %v3599 = vsel %vm555, %v3548, %v3550
    %v3600 = vsel %vm555, %v3550, %v3552
    %v3601 = vsel %vm555, %v3554, %v3556
    %v3602 = vsel %vm555, %v3556, %v3558
    %v3603 = vsel %vm555, %v3560, %v3562
    %v3604 = vsel %vm555, %v3562, %v3564
    %v3605 = vsel %vm555, %v3566, %v3568
    %v3606 = vsel %vm555, %v3568, %v3570
    %v3607 = vsel %vm555, %v3570, %v3572
    %v3608 = vsel %vm555, %v3574, %v3576
    %v3609 = vsel %vm555, %v3576, %v3578
    %v3610 = vsel %vm555, %v3580, %v3582
    %v3611 = vsel %vm555, %v3582, %v3584
    %v3612 = vsel %vm555, %v3586, %v3588
    %v3613 = vsel %vm555, %v3588, %v3590
    %v3614 = vsel %vm555, %v3592, %v3594
    %v3615 = vsel %vm555, %v3594, %v3596
    %v3616 = vsel %vm555, %v3596, %v3598
    %v3635 = vmax.f32 %v3529, %v3599
    %v3636 = vmax.f32 %v3530, %v3600
    %v3637 = vmax.f32 %v3531, %v3601
    %v3638 = vmax.f32 %v3532, %v3602
    %v3639 = vmax.f32 %v3533, %v3603
    %v3640 = vmax.f32 %v3534, %v3604
    %v3641 = vmax.f32 %v3535, %v3605
    %v3642 = vmax.f32 %v3536, %v3606
    %v3643 = vmax.f32 %v3537, %v3607
    %v3644 = vmax.f32 %v3538, %v3608
    %v3645 = vmax.f32 %v3539, %v3609
    %v3646 = vmax.f32 %v3540, %v3610
    %v3647 = vmax.f32 %v3541, %v3611
    %v3648 = vmax.f32 %v3542, %v3612
    %v3649 = vmax.f32 %v3543, %v3613
    %v3650 = vmax.f32 %v3544, %v3614
    %v3651 = vmax.f32 %v3545, %v3615
    %v3652 = vmax.f32 %v3546, %v3616
    %3661 = vrot.lane.b32.xlu0 %v3373, 32
    %v3662 = vpop.permute.xlu0 %3661
    %3663 = vrot.lane.b32.xlu0 %v3374, 32
    %v3664 = vpop.permute.xlu0 %3663
    %3665 = vrot.lane.b32.xlu0 %v3375, 32
    %v3666 = vpop.permute.xlu0 %3665
    %3667 = vrot.lane.b32.xlu0 %v3378, 32
    %v3668 = vpop.permute.xlu0 %3667
    %3669 = vrot.lane.b32.xlu0 %v3379, 32
    %v3670 = vpop.permute.xlu0 %3669
    %3671 = vrot.lane.b32.xlu0 %v3380, 32
    %v3672 = vpop.permute.xlu0 %3671
    %3673 = vrot.lane.b32.xlu0 %v3383, 32
    %v3674 = vpop.permute.xlu0 %3673
    %3675 = vrot.lane.b32.xlu0 %v3384, 32
    %v3676 = vpop.permute.xlu0 %3675
    %3677 = vrot.lane.b32.xlu0 %v3385, 32
    %v3678 = vpop.permute.xlu0 %3677
    %3679 = vrot.lane.b32.xlu0 %v3388, 32
    %v3680 = vpop.permute.xlu0 %3679
    %3681 = vrot.lane.b32.xlu0 %v3389, 32
    %v3682 = vpop.permute.xlu0 %3681
    %3683 = vrot.lane.b32.xlu0 %v3390, 32
    %v3684 = vpop.permute.xlu0 %3683
    %3685 = vrot.lane.b32.xlu0 %v3391, 32
    %v3686 = vpop.permute.xlu0 %3685
    %3687 = vrot.lane.b32.xlu0 %v3394, 32
    %v3688 = vpop.permute.xlu0 %3687
    %3689 = vrot.lane.b32.xlu0 %v3395, 32
    %v3690 = vpop.permute.xlu0 %3689
    %3691 = vrot.lane.b32.xlu0 %v3396, 32
    %v3692 = vpop.permute.xlu0 %3691
    %3693 = vrot.lane.b32.xlu0 %v3399, 32
    %v3694 = vpop.permute.xlu0 %3693
    %3695 = vrot.lane.b32.xlu0 %v3400, 32
    %v3696 = vpop.permute.xlu0 %3695
    %3697 = vrot.lane.b32.xlu0 %v3401, 32
    %v3698 = vpop.permute.xlu0 %3697
    %3699 = vrot.lane.b32.xlu0 %v3404, 32
    %v3700 = vpop.permute.xlu0 %3699
    %3701 = vrot.lane.b32.xlu0 %v3405, 32
    %v3702 = vpop.permute.xlu0 %3701
    %3703 = vrot.lane.b32.xlu0 %v3406, 32
    %v3704 = vpop.permute.xlu0 %3703
    %3705 = vrot.lane.b32.xlu0 %v3409, 32
    %v3706 = vpop.permute.xlu0 %3705
    %3707 = vrot.lane.b32.xlu0 %v3410, 32
    %v3708 = vpop.permute.xlu0 %3707
    %3709 = vrot.lane.b32.xlu0 %v3411, 32
    %v3710 = vpop.permute.xlu0 %3709
    %3711 = vrot.lane.b32.xlu0 %v3412, 32
    %v3712 = vpop.permute.xlu0 %3711
    %v3713 = vsel %vm781, %v3662, %v3664
    %v3714 = vsel %vm781, %v3664, %v3666
    %v3715 = vsel %vm781, %v3668, %v3670
    %v3716 = vsel %vm781, %v3670, %v3672
    %v3717 = vsel %vm781, %v3674, %v3676
    %v3718 = vsel %vm781, %v3676, %v3678
    %v3719 = vsel %vm781, %v3680, %v3682
    %v3720 = vsel %vm781, %v3682, %v3684
    %v3721 = vsel %vm781, %v3684, %v3686
    %v3722 = vsel %vm781, %v3688, %v3690
    %v3723 = vsel %vm781, %v3690, %v3692
    %v3724 = vsel %vm781, %v3694, %v3696
    %v3725 = vsel %vm781, %v3696, %v3698
    %v3726 = vsel %vm781, %v3700, %v3702
    %v3727 = vsel %vm781, %v3702, %v3704
    %v3728 = vsel %vm781, %v3706, %v3708
    %v3729 = vsel %vm781, %v3708, %v3710
    %v3730 = vsel %vm781, %v3710, %v3712
    %v3749 = vmax.f32 %v3635, %v3713
    %v3750 = vmax.f32 %v3636, %v3714
    %v3751 = vmax.f32 %v3637, %v3715
    %v3752 = vmax.f32 %v3638, %v3716
    %v3753 = vmax.f32 %v3639, %v3717
    %v3754 = vmax.f32 %v3640, %v3718
    %v3755 = vmax.f32 %v3641, %v3719
    %v3756 = vmax.f32 %v3642, %v3720
    %v3757 = vmax.f32 %v3643, %v3721
    %v3758 = vmax.f32 %v3644, %v3722
    %v3759 = vmax.f32 %v3645, %v3723
    %v3760 = vmax.f32 %v3646, %v3724
    %v3761 = vmax.f32 %v3647, %v3725
    %v3762 = vmax.f32 %v3648, %v3726
    %v3763 = vmax.f32 %v3649, %v3727
    %v3764 = vmax.f32 %v3650, %v3728
    %v3765 = vmax.f32 %v3651, %v3729
    %v3766 = vmax.f32 %v3652, %v3730
    %3767 = vrot.lane.b32.xlu0 %v3373, 24
    %v3768 = vpop.permute.xlu0 %3767
    %3769 = vrot.lane.b32.xlu0 %v3374, 24
    %v3770 = vpop.permute.xlu0 %3769
    %3771 = vrot.lane.b32.xlu0 %v3375, 24
    %v3772 = vpop.permute.xlu0 %3771
    %3773 = vrot.lane.b32.xlu0 %v3378, 24
    %v3774 = vpop.permute.xlu0 %3773
    %3775 = vrot.lane.b32.xlu0 %v3379, 24
    %v3776 = vpop.permute.xlu0 %3775
    %3777 = vrot.lane.b32.xlu0 %v3380, 24
    %v3778 = vpop.permute.xlu0 %3777
    %3779 = vrot.lane.b32.xlu0 %v3383, 24
    %v3780 = vpop.permute.xlu0 %3779
    %3781 = vrot.lane.b32.xlu0 %v3384, 24
    %v3782 = vpop.permute.xlu0 %3781
    %3783 = vrot.lane.b32.xlu0 %v3385, 24
    %v3784 = vpop.permute.xlu0 %3783
    %3785 = vrot.lane.b32.xlu0 %v3388, 24
    %v3786 = vpop.permute.xlu0 %3785
    %3787 = vrot.lane.b32.xlu0 %v3389, 24
    %v3788 = vpop.permute.xlu0 %3787
    %3789 = vrot.lane.b32.xlu0 %v3390, 24
    %v3790 = vpop.permute.xlu0 %3789
    %3791 = vrot.lane.b32.xlu0 %v3391, 24
    %v3792 = vpop.permute.xlu0 %3791
    %3793 = vrot.lane.b32.xlu0 %v3394, 24
    %v3794 = vpop.permute.xlu0 %3793
    %3795 = vrot.lane.b32.xlu0 %v3395, 24
    %v3796 = vpop.permute.xlu0 %3795
    %3797 = vrot.lane.b32.xlu0 %v3396, 24
    %v3798 = vpop.permute.xlu0 %3797
    %3799 = vrot.lane.b32.xlu0 %v3399, 24
    %v3800 = vpop.permute.xlu0 %3799
    %3801 = vrot.lane.b32.xlu0 %v3400, 24
    %v3802 = vpop.permute.xlu0 %3801
    %3803 = vrot.lane.b32.xlu0 %v3401, 24
    %v3804 = vpop.permute.xlu0 %3803
    %3805 = vrot.lane.b32.xlu0 %v3404, 24
    %v3806 = vpop.permute.xlu0 %3805
    %3807 = vrot.lane.b32.xlu0 %v3405, 24
    %v3808 = vpop.permute.xlu0 %3807
    %3809 = vrot.lane.b32.xlu0 %v3406, 24
    %v3810 = vpop.permute.xlu0 %3809
    %3811 = vrot.lane.b32.xlu0 %v3409, 24
    %v3812 = vpop.permute.xlu0 %3811
    %3813 = vrot.lane.b32.xlu0 %v3410, 24
    %v3814 = vpop.permute.xlu0 %3813
    %3815 = vrot.lane.b32.xlu0 %v3411, 24
    %v3816 = vpop.permute.xlu0 %3815
    %3817 = vrot.lane.b32.xlu0 %v3412, 24
    %v3818 = vpop.permute.xlu0 %3817
    %v3819 = vsel %vm982, %v3768, %v3770
    %v3820 = vsel %vm982, %v3770, %v3772
    %v3821 = vsel %vm982, %v3774, %v3776
    %v3822 = vsel %vm982, %v3776, %v3778
    %v3823 = vsel %vm982, %v3780, %v3782
    %v3824 = vsel %vm982, %v3782, %v3784
    %v3825 = vsel %vm982, %v3786, %v3788
    %v3826 = vsel %vm982, %v3788, %v3790
    %v3827 = vsel %vm982, %v3790, %v3792
    %v3828 = vsel %vm982, %v3794, %v3796
    %v3829 = vsel %vm982, %v3796, %v3798
    %v3830 = vsel %vm982, %v3800, %v3802
    %v3831 = vsel %vm982, %v3802, %v3804
    %v3832 = vsel %vm982, %v3806, %v3808
    %v3833 = vsel %vm982, %v3808, %v3810
    %v3834 = vsel %vm982, %v3812, %v3814
    %v3835 = vsel %vm982, %v3814, %v3816
    %v3836 = vsel %vm982, %v3816, %v3818
    %v3855 = vmax.f32 %v3749, %v3819
    %v3856 = vmax.f32 %v3750, %v3820
    %v3857 = vmax.f32 %v3751, %v3821
    %v3858 = vmax.f32 %v3752, %v3822
    %v3859 = vmax.f32 %v3753, %v3823
    %v3860 = vmax.f32 %v3754, %v3824
    %v3861 = vmax.f32 %v3755, %v3825
    %v3862 = vmax.f32 %v3756, %v3826
    %v3863 = vmax.f32 %v3757, %v3827
    %v3864 = vmax.f32 %v3758, %v3828
    %v3865 = vmax.f32 %v3759, %v3829
    %v3866 = vmax.f32 %v3760, %v3830
    %v3867 = vmax.f32 %v3761, %v3831
    %v3868 = vmax.f32 %v3762, %v3832
    %v3869 = vmax.f32 %v3763, %v3833
    %v3870 = vmax.f32 %v3764, %v3834
    %v3871 = vmax.f32 %v3765, %v3835
    %v3872 = vmax.f32 %v3766, %v3836
    %3873 = vrot.lane.b32.xlu0 %v3373, 16
    %v3874 = vpop.permute.xlu0 %3873
    %3875 = vrot.lane.b32.xlu0 %v3374, 16
    %v3876 = vpop.permute.xlu0 %3875
    %3877 = vrot.lane.b32.xlu0 %v3375, 16
    %v3878 = vpop.permute.xlu0 %3877
    %3879 = vrot.lane.b32.xlu0 %v3378, 16
    %v3880 = vpop.permute.xlu0 %3879
    %3881 = vrot.lane.b32.xlu0 %v3379, 16
    %v3882 = vpop.permute.xlu0 %3881
    %3883 = vrot.lane.b32.xlu0 %v3380, 16
    %v3884 = vpop.permute.xlu0 %3883
    %3885 = vrot.lane.b32.xlu0 %v3383, 16
    %v3886 = vpop.permute.xlu0 %3885
    %3887 = vrot.lane.b32.xlu0 %v3384, 16
    %v3888 = vpop.permute.xlu0 %3887
    %3889 = vrot.lane.b32.xlu0 %v3385, 16
    %v3890 = vpop.permute.xlu0 %3889
    %3891 = vrot.lane.b32.xlu0 %v3388, 16
    %v3892 = vpop.permute.xlu0 %3891
    %3893 = vrot.lane.b32.xlu0 %v3389, 16
    %v3894 = vpop.permute.xlu0 %3893
    %3895 = vrot.lane.b32.xlu0 %v3390, 16
    %v3896 = vpop.permute.xlu0 %3895
    %3897 = vrot.lane.b32.xlu0 %v3391, 16
    %v3898 = vpop.permute.xlu0 %3897
    %3899 = vrot.lane.b32.xlu0 %v3394, 16
    %v3900 = vpop.permute.xlu0 %3899
    %3901 = vrot.lane.b32.xlu0 %v3395, 16
    %v3902 = vpop.permute.xlu0 %3901
    %3903 = vrot.lane.b32.xlu0 %v3396, 16
    %v3904 = vpop.permute.xlu0 %3903
    %3905 = vrot.lane.b32.xlu0 %v3399, 16
    %v3906 = vpop.permute.xlu0 %3905
    %3907 = vrot.lane.b32.xlu0 %v3400, 16
    %v3908 = vpop.permute.xlu0 %3907
    %3909 = vrot.lane.b32.xlu0 %v3401, 16
    %v3910 = vpop.permute.xlu0 %3909
    %3911 = vrot.lane.b32.xlu0 %v3404, 16
    %v3912 = vpop.permute.xlu0 %3911
    %3913 = vrot.lane.b32.xlu0 %v3405, 16
    %v3914 = vpop.permute.xlu0 %3913
    %3915 = vrot.lane.b32.xlu0 %v3406, 16
    %v3916 = vpop.permute.xlu0 %3915
    %3917 = vrot.lane.b32.xlu0 %v3409, 16
    %v3918 = vpop.permute.xlu0 %3917
    %3919 = vrot.lane.b32.xlu0 %v3410, 16
    %v3920 = vpop.permute.xlu0 %3919
    %3921 = vrot.lane.b32.xlu0 %v3411, 16
    %v3922 = vpop.permute.xlu0 %3921
    %3923 = vrot.lane.b32.xlu0 %v3412, 16
    %v3924 = vpop.permute.xlu0 %3923
    %v3925 = vsel %vm1206, %v3874, %v3876
    %v3926 = vsel %vm1206, %v3876, %v3878
    %v3927 = vsel %vm1206, %v3880, %v3882
    %v3928 = vsel %vm1206, %v3882, %v3884
    %v3929 = vsel %vm1206, %v3886, %v3888
    %v3930 = vsel %vm1206, %v3888, %v3890
    %v3931 = vsel %vm1206, %v3892, %v3894
    %v3932 = vsel %vm1206, %v3894, %v3896
    %v3933 = vsel %vm1206, %v3896, %v3898
    %v3934 = vsel %vm1206, %v3900, %v3902
    %v3935 = vsel %vm1206, %v3902, %v3904
    %v3936 = vsel %vm1206, %v3906, %v3908
    %v3937 = vsel %vm1206, %v3908, %v3910
    %v3938 = vsel %vm1206, %v3912, %v3914
    %v3939 = vsel %vm1206, %v3914, %v3916
    %v3940 = vsel %vm1206, %v3918, %v3920
    %v3941 = vsel %vm1206, %v3920, %v3922
    %v3942 = vsel %vm1206, %v3922, %v3924
    %v3961 = vmax.f32 %v3855, %v3925
    %v3962 = vmax.f32 %v3856, %v3926
    %v3963 = vmax.f32 %v3857, %v3927
    %v3964 = vmax.f32 %v3858, %v3928
    %v3965 = vmax.f32 %v3859, %v3929
    %v3966 = vmax.f32 %v3860, %v3930
    %v3967 = vmax.f32 %v3861, %v3931
    %v3968 = vmax.f32 %v3862, %v3932
    %v3969 = vmax.f32 %v3863, %v3933
    %v3970 = vmax.f32 %v3864, %v3934
    %v3971 = vmax.f32 %v3865, %v3935
    %v3972 = vmax.f32 %v3866, %v3936
    %v3973 = vmax.f32 %v3867, %v3937
    %v3974 = vmax.f32 %v3868, %v3938
    %v3975 = vmax.f32 %v3869, %v3939
    %v3976 = vmax.f32 %v3870, %v3940
    %v3977 = vmax.f32 %v3871, %v3941
    %v3978 = vmax.f32 %v3872, %v3942
    %3988 = vrot.lane.b32.xlu0 %v3375, 64
    %v3989 = vpop.permute.xlu0 %3988
    %3990 = vrot.lane.b32.xlu0 %v3376, 64
    %v3991 = vpop.permute.xlu0 %3990
    %3992 = vrot.lane.b32.xlu0 %v3377, 64
    %v3993 = vpop.permute.xlu0 %3992
    %3994 = vrot.lane.b32.xlu0 %v3380, 64
    %v3995 = vpop.permute.xlu0 %3994
    %3996 = vrot.lane.b32.xlu0 %v3381, 64
    %v3997 = vpop.permute.xlu0 %3996
    %3998 = vrot.lane.b32.xlu0 %v3382, 64
    %v3999 = vpop.permute.xlu0 %3998
    %4000 = vrot.lane.b32.xlu0 %v3385, 64
    %v4001 = vpop.permute.xlu0 %4000
    %4002 = vrot.lane.b32.xlu0 %v3386, 64
    %v4003 = vpop.permute.xlu0 %4002
    %4004 = vrot.lane.b32.xlu0 %v3387, 64
    %v4005 = vpop.permute.xlu0 %4004
    %4006 = vrot.lane.b32.xlu0 %v3390, 64
    %v4007 = vpop.permute.xlu0 %4006
    %4008 = vrot.lane.b32.xlu0 %v3391, 64
    %v4009 = vpop.permute.xlu0 %4008
    %4010 = vrot.lane.b32.xlu0 %v3392, 64
    %v4011 = vpop.permute.xlu0 %4010
    %4012 = vrot.lane.b32.xlu0 %v3393, 64
    %v4013 = vpop.permute.xlu0 %4012
    %4014 = vrot.lane.b32.xlu0 %v3396, 64
    %v4015 = vpop.permute.xlu0 %4014
    %4016 = vrot.lane.b32.xlu0 %v3397, 64
    %v4017 = vpop.permute.xlu0 %4016
    %4018 = vrot.lane.b32.xlu0 %v3398, 64
    %v4019 = vpop.permute.xlu0 %4018
    %4020 = vrot.lane.b32.xlu0 %v3401, 64
    %v4021 = vpop.permute.xlu0 %4020
    %4022 = vrot.lane.b32.xlu0 %v3402, 64
    %v4023 = vpop.permute.xlu0 %4022
    %4024 = vrot.lane.b32.xlu0 %v3403, 64
    %v4025 = vpop.permute.xlu0 %4024
    %4026 = vrot.lane.b32.xlu0 %v3406, 64
    %v4027 = vpop.permute.xlu0 %4026
    %4028 = vrot.lane.b32.xlu0 %v3407, 64
    %v4029 = vpop.permute.xlu0 %4028
    %4030 = vrot.lane.b32.xlu0 %v3408, 64
    %v4031 = vpop.permute.xlu0 %4030
    %4032 = vrot.lane.b32.xlu0 %v3411, 64
    %v4033 = vpop.permute.xlu0 %4032
    %4034 = vrot.lane.b32.xlu0 %v3412, 64
    %v4035 = vpop.permute.xlu0 %4034
    %4036 = vrot.lane.b32.xlu0 %v3413, 64
    %v4037 = vpop.permute.xlu0 %4036
    %4038 = vrot.lane.b32.xlu0 %v3414, 64
    %v4039 = vpop.permute.xlu0 %4038
    %v4040 = vsel %vm1431, %v3989, %v3991
    %v4041 = vsel %vm1431, %v3991, %v3993
    %v4042 = vsel %vm1431, %v3995, %v3997
    %v4043 = vsel %vm1431, %v3997, %v3999
    %v4044 = vsel %vm1431, %v4001, %v4003
    %v4045 = vsel %vm1431, %v4003, %v4005
    %v4046 = vsel %vm1431, %v4007, %v4009
    %v4047 = vsel %vm1431, %v4009, %v4011
    %v4048 = vsel %vm1431, %v4011, %v4013
    %v4049 = vsel %vm1431, %v4015, %v4017
    %v4050 = vsel %vm1431, %v4017, %v4019
    %v4051 = vsel %vm1431, %v4021, %v4023
    %v4052 = vsel %vm1431, %v4023, %v4025
    %v4053 = vsel %vm1431, %v4027, %v4029
    %v4054 = vsel %vm1431, %v4029, %v4031
    %v4055 = vsel %vm1431, %v4033, %v4035
    %v4056 = vsel %vm1431, %v4035, %v4037
    %v4057 = vsel %vm1431, %v4037, %v4039
    %v4076 = vmax.f32 %v3961, %v4040
    %v4077 = vmax.f32 %v3962, %v4041
    %v4078 = vmax.f32 %v3963, %v4042
    %v4079 = vmax.f32 %v3964, %v4043
    %v4080 = vmax.f32 %v3965, %v4044
    %v4081 = vmax.f32 %v3966, %v4045
    %v4082 = vmax.f32 %v3967, %v4046
    %v4083 = vmax.f32 %v3968, %v4047
    %v4084 = vmax.f32 %v3969, %v4048
    %v4085 = vmax.f32 %v3970, %v4049
    %v4086 = vmax.f32 %v3971, %v4050
    %v4087 = vmax.f32 %v3972, %v4051
    %v4088 = vmax.f32 %v3973, %v4052
    %v4089 = vmax.f32 %v3974, %v4053
    %v4090 = vmax.f32 %v3975, %v4054
    %v4091 = vmax.f32 %v3976, %v4055
    %v4092 = vmax.f32 %v3977, %v4056
    %v4093 = vmax.f32 %v3978, %v4057
    %4094 = vrot.lane.b32.xlu0 %v3375, 56
    %v4095 = vpop.permute.xlu0 %4094
    %4096 = vrot.lane.b32.xlu0 %v3376, 56
    %v4097 = vpop.permute.xlu0 %4096
    %4098 = vrot.lane.b32.xlu0 %v3377, 56
    %v4099 = vpop.permute.xlu0 %4098
    %4100 = vrot.lane.b32.xlu0 %v3380, 56
    %v4101 = vpop.permute.xlu0 %4100
    %4102 = vrot.lane.b32.xlu0 %v3381, 56
    %v4103 = vpop.permute.xlu0 %4102
    %4104 = vrot.lane.b32.xlu0 %v3382, 56
    %v4105 = vpop.permute.xlu0 %4104
    %4106 = vrot.lane.b32.xlu0 %v3385, 56
    %v4107 = vpop.permute.xlu0 %4106
    %4108 = vrot.lane.b32.xlu0 %v3386, 56
    %v4109 = vpop.permute.xlu0 %4108
    %4110 = vrot.lane.b32.xlu0 %v3387, 56
    %v4111 = vpop.permute.xlu0 %4110
    %4112 = vrot.lane.b32.xlu0 %v3390, 56
    %v4113 = vpop.permute.xlu0 %4112
    %4114 = vrot.lane.b32.xlu0 %v3391, 56
    %v4115 = vpop.permute.xlu0 %4114
    %4116 = vrot.lane.b32.xlu0 %v3392, 56
    %v4117 = vpop.permute.xlu0 %4116
    %4118 = vrot.lane.b32.xlu0 %v3393, 56
    %v4119 = vpop.permute.xlu0 %4118
    %4120 = vrot.lane.b32.xlu0 %v3396, 56
    %v4121 = vpop.permute.xlu0 %4120
    %4122 = vrot.lane.b32.xlu0 %v3397, 56
    %v4123 = vpop.permute.xlu0 %4122
    %4124 = vrot.lane.b32.xlu0 %v3398, 56
    %v4125 = vpop.permute.xlu0 %4124
    %4126 = vrot.lane.b32.xlu0 %v3401, 56
    %v4127 = vpop.permute.xlu0 %4126
    %4128 = vrot.lane.b32.xlu0 %v3402, 56
    %v4129 = vpop.permute.xlu0 %4128
    %4130 = vrot.lane.b32.xlu0 %v3403, 56
    %v4131 = vpop.permute.xlu0 %4130
    %4132 = vrot.lane.b32.xlu0 %v3406, 56
    %v4133 = vpop.permute.xlu0 %4132
    %4134 = vrot.lane.b32.xlu0 %v3407, 56
    %v4135 = vpop.permute.xlu0 %4134
    %4136 = vrot.lane.b32.xlu0 %v3408, 56
    %v4137 = vpop.permute.xlu0 %4136
    %4138 = vrot.lane.b32.xlu0 %v3411, 56
    %v4139 = vpop.permute.xlu0 %4138
    %4140 = vrot.lane.b32.xlu0 %v3412, 56
    %v4141 = vpop.permute.xlu0 %4140
    %4142 = vrot.lane.b32.xlu0 %v3413, 56
    %v4143 = vpop.permute.xlu0 %4142
    %4144 = vrot.lane.b32.xlu0 %v3414, 56
    %v4145 = vpop.permute.xlu0 %4144
    %v4146 = vsel %vm1655, %v4095, %v4097
    %v4147 = vsel %vm1655, %v4097, %v4099
    %v4148 = vsel %vm1655, %v4101, %v4103
    %v4149 = vsel %vm1655, %v4103, %v4105
    %v4150 = vsel %vm1655, %v4107, %v4109
    %v4151 = vsel %vm1655, %v4109, %v4111
    %v4152 = vsel %vm1655, %v4113, %v4115
    %v4153 = vsel %vm1655, %v4115, %v4117
    %v4154 = vsel %vm1655, %v4117, %v4119
    %v4155 = vsel %vm1655, %v4121, %v4123
    %v4156 = vsel %vm1655, %v4123, %v4125
    %v4157 = vsel %vm1655, %v4127, %v4129
    %v4158 = vsel %vm1655, %v4129, %v4131
    %v4159 = vsel %vm1655, %v4133, %v4135
    %v4160 = vsel %vm1655, %v4135, %v4137
    %v4161 = vsel %vm1655, %v4139, %v4141
    %v4162 = vsel %vm1655, %v4141, %v4143
    %v4163 = vsel %vm1655, %v4143, %v4145
    %v4182 = vmax.f32 %v4076, %v4146
    %v4183 = vmax.f32 %v4077, %v4147
    %v4184 = vmax.f32 %v4078, %v4148
    %v4185 = vmax.f32 %v4079, %v4149
    %v4186 = vmax.f32 %v4080, %v4150
    %v4187 = vmax.f32 %v4081, %v4151
    %v4188 = vmax.f32 %v4082, %v4152
    %v4189 = vmax.f32 %v4083, %v4153
    %v4190 = vmax.f32 %v4084, %v4154
    %v4191 = vmax.f32 %v4085, %v4155
    %v4192 = vmax.f32 %v4086, %v4156
    %v4193 = vmax.f32 %v4087, %v4157
    %v4194 = vmax.f32 %v4088, %v4158
    %v4195 = vmax.f32 %v4089, %v4159
    %v4196 = vmax.f32 %v4090, %v4160
    %v4197 = vmax.f32 %v4091, %v4161
    %v4198 = vmax.f32 %v4092, %v4162
    %v4199 = vmax.f32 %v4093, %v4163
    %4200 = vrot.lane.b32.xlu0 %v3375, 48
    %v4201 = vpop.permute.xlu0 %4200
    %4202 = vrot.lane.b32.xlu0 %v3376, 48
    %v4203 = vpop.permute.xlu0 %4202
    %4204 = vrot.lane.b32.xlu0 %v3377, 48
    %v4205 = vpop.permute.xlu0 %4204
    %4206 = vrot.lane.b32.xlu0 %v3380, 48
    %v4207 = vpop.permute.xlu0 %4206
    %4208 = vrot.lane.b32.xlu0 %v3381, 48
    %v4209 = vpop.permute.xlu0 %4208
    %4210 = vrot.lane.b32.xlu0 %v3382, 48
    %v4211 = vpop.permute.xlu0 %4210
    %4212 = vrot.lane.b32.xlu0 %v3385, 48
    %v4213 = vpop.permute.xlu0 %4212
    %4214 = vrot.lane.b32.xlu0 %v3386, 48
    %v4215 = vpop.permute.xlu0 %4214
    %4216 = vrot.lane.b32.xlu0 %v3387, 48
    %v4217 = vpop.permute.xlu0 %4216
    %4218 = vrot.lane.b32.xlu0 %v3390, 48
    %v4219 = vpop.permute.xlu0 %4218
    %4220 = vrot.lane.b32.xlu0 %v3391, 48
    %v4221 = vpop.permute.xlu0 %4220
    %4222 = vrot.lane.b32.xlu0 %v3392, 48
    %v4223 = vpop.permute.xlu0 %4222
    %4224 = vrot.lane.b32.xlu0 %v3393, 48
    %v4225 = vpop.permute.xlu0 %4224
    %4226 = vrot.lane.b32.xlu0 %v3396, 48
    %v4227 = vpop.permute.xlu0 %4226
    %4228 = vrot.lane.b32.xlu0 %v3397, 48
    %v4229 = vpop.permute.xlu0 %4228
    %4230 = vrot.lane.b32.xlu0 %v3398, 48
    %v4231 = vpop.permute.xlu0 %4230
    %4232 = vrot.lane.b32.xlu0 %v3401, 48
    %v4233 = vpop.permute.xlu0 %4232
    %4234 = vrot.lane.b32.xlu0 %v3402, 48
    %v4235 = vpop.permute.xlu0 %4234
    %4236 = vrot.lane.b32.xlu0 %v3403, 48
    %v4237 = vpop.permute.xlu0 %4236
    %4238 = vrot.lane.b32.xlu0 %v3406, 48
    %v4239 = vpop.permute.xlu0 %4238
    %4240 = vrot.lane.b32.xlu0 %v3407, 48
    %v4241 = vpop.permute.xlu0 %4240
    %4242 = vrot.lane.b32.xlu0 %v3408, 48
    %v4243 = vpop.permute.xlu0 %4242
    %4244 = vrot.lane.b32.xlu0 %v3411, 48
    %v4245 = vpop.permute.xlu0 %4244
    %4246 = vrot.lane.b32.xlu0 %v3412, 48
    %v4247 = vpop.permute.xlu0 %4246
    %4248 = vrot.lane.b32.xlu0 %v3413, 48
    %v4249 = vpop.permute.xlu0 %4248
    %4250 = vrot.lane.b32.xlu0 %v3414, 48
    %v4251 = vpop.permute.xlu0 %4250
    %v4252 = vsel %vm1834, %v4201, %v4203
    %v4253 = vsel %vm1834, %v4203, %v4205
    %v4254 = vsel %vm1834, %v4207, %v4209
    %v4255 = vsel %vm1834, %v4209, %v4211
    %v4256 = vsel %vm1834, %v4213, %v4215
    %v4257 = vsel %vm1834, %v4215, %v4217
    %v4258 = vsel %vm1834, %v4219, %v4221
    %v4259 = vsel %vm1834, %v4221, %v4223
    %v4260 = vsel %vm1834, %v4223, %v4225
    %v4261 = vsel %vm1834, %v4227, %v4229
    %v4262 = vsel %vm1834, %v4229, %v4231
    %v4263 = vsel %vm1834, %v4233, %v4235
    %v4264 = vsel %vm1834, %v4235, %v4237
    %v4265 = vsel %vm1834, %v4239, %v4241
    %v4266 = vsel %vm1834, %v4241, %v4243
    %v4267 = vsel %vm1834, %v4245, %v4247
    %v4268 = vsel %vm1834, %v4247, %v4249
    %v4269 = vsel %vm1834, %v4249, %v4251
    %v4288 = vmax.f32 %v4182, %v4252
    %v4289 = vmax.f32 %v4183, %v4253
    %v4290 = vmax.f32 %v4184, %v4254
    %v4291 = vmax.f32 %v4185, %v4255
    %v4292 = vmax.f32 %v4186, %v4256
    %v4293 = vmax.f32 %v4187, %v4257
    %v4294 = vmax.f32 %v4188, %v4258
    %v4295 = vmax.f32 %v4189, %v4259
    %v4296 = vmax.f32 %v4190, %v4260
    %v4297 = vmax.f32 %v4191, %v4261
    %v4298 = vmax.f32 %v4192, %v4262
    %v4299 = vmax.f32 %v4193, %v4263
    %v4300 = vmax.f32 %v4194, %v4264
    %v4301 = vmax.f32 %v4195, %v4265
    %v4302 = vmax.f32 %v4196, %v4266
    %v4303 = vmax.f32 %v4197, %v4267
    %v4304 = vmax.f32 %v4198, %v4268
    %v4305 = vmax.f32 %v4199, %v4269
    %4307 = vrot.lane.b32.xlu0 %v4288, 112
    %v4308 = vpop.permute.xlu0 %4307
    %4310 = vrot.lane.b32.xlu0 %v4288, 96
    %v4311 = vpop.permute.xlu0 %4310
    %4313 = vrot.lane.b32.xlu0 %v4288, 80
    %v4314 = vpop.permute.xlu0 %4313
    %4316 = vrot.lane.b32.xlu0 %v4288, 64
    %v4317 = vpop.permute.xlu0 %4316
    %4319 = vrot.lane.b32.xlu0 %v4288, 48
    %v4320 = vpop.permute.xlu0 %4319
    %4323 = vrot.lane.b32.xlu0 %v4289, 32
    %v4324 = vpop.permute.xlu0 %4323
    %4326 = vrot.lane.b32.xlu0 %v4289, 16
    %v4327 = vpop.permute.xlu0 %4326
    %4330 = vrot.lane.b32.xlu0 %v4290, 32
    %v4331 = vpop.permute.xlu0 %4330
    %4333 = vrot.lane.b32.xlu0 %v4290, 16
    %v4334 = vpop.permute.xlu0 %4333
    %4336 = vrot.lane.b32.xlu0 %v4290, 112
    %v4337 = vpop.permute.xlu0 %4336
    %4340 = vrot.lane.b32.xlu0 %v4291, 96
    %v4341 = vpop.permute.xlu0 %4340
    %4343 = vrot.lane.b32.xlu0 %v4291, 80
    %v4344 = vpop.permute.xlu0 %4343
    %4346 = vrot.lane.b32.xlu0 %v4291, 64
    %v4347 = vpop.permute.xlu0 %4346
    %4349 = vrot.lane.b32.xlu0 %v4291, 48
    %v4350 = vpop.permute.xlu0 %4349
    %vm4352 = vcmask 64512
    %v4353 = vsel %vm4352, %v4288, %v4308
    %v4354 = vsel %vm1206, %v4353, %v4311
    %v4355 = vsel %vm982, %v4354, %v4314
    %v4356 = vsel %vm781, %v4355, %v4317
    %vm4357 = vcmask 326656
    %v4358 = vsel %vm4357, %v4356, %v4320
    %v4359 = vsel %vm1834, %v4358, %v4324
    %v4360 = vsel %vm1655, %v4359, %v4327
    %v4361 = vsel %vm1431, %v4360, %v4331
    %vm4362 = vcmask 588800
    %v4363 = vsel %vm4362, %v4361, %v4334
    %vm4364 = vcmask 654336
    %v4365 = vsel %vm4364, %v4363, %v4290
    %vm4366 = vcmask 719872
    %v4367 = vsel %vm4366, %v4365, %v4337
    %vm4368 = vcmask 785408
    %v4369 = vsel %vm4368, %v4367, %v4341
    %vm4370 = vcmask 850944
    %v4371 = vsel %vm4370, %v4369, %v4344
    %v4372 = vsel %vm555, %v4371, %v4347
    %v4373 = vsel %vm331, %v4372, %v4350
    %4375 = vrot.lane.b32.xlu0 %v4292, 64
    %v4376 = vpop.permute.xlu0 %4375
    %4378 = vrot.lane.b32.xlu0 %v4292, 48
    %v4379 = vpop.permute.xlu0 %4378
    %4381 = vrot.lane.b32.xlu0 %v4292, 32
    %v4382 = vpop.permute.xlu0 %4381
    %4385 = vrot.lane.b32.xlu0 %v4293, 16
    %v4386 = vpop.permute.xlu0 %4385
    %4388 = vrot.lane.b32.xlu0 %v4293, 112
    %v4389 = vpop.permute.xlu0 %4388
    %4391 = vrot.lane.b32.xlu0 %v4293, 96
    %v4392 = vpop.permute.xlu0 %4391
    %4394 = vrot.lane.b32.xlu0 %v4293, 80
    %v4395 = vpop.permute.xlu0 %4394
    %4398 = vrot.lane.b32.xlu0 %v4294, 96
    %v4399 = vpop.permute.xlu0 %4398
    %4401 = vrot.lane.b32.xlu0 %v4294, 80
    %v4402 = vpop.permute.xlu0 %4401
    %4405 = vrot.lane.b32.xlu0 %v4295, 64
    %v4406 = vpop.permute.xlu0 %4405
    %4408 = vrot.lane.b32.xlu0 %v4295, 48
    %v4409 = vpop.permute.xlu0 %4408
    %4411 = vrot.lane.b32.xlu0 %v4295, 32
    %v4412 = vpop.permute.xlu0 %4411
    %4414 = vrot.lane.b32.xlu0 %v4295, 16
    %v4415 = vpop.permute.xlu0 %4414
    %4418 = vrot.lane.b32.xlu0 %v4296, 112
    %v4419 = vpop.permute.xlu0 %4418
    %v4421 = vsel %vm4352, %v4376, %v4379
    %v4422 = vsel %vm1206, %v4421, %v4382
    %v4423 = vsel %vm982, %v4422, %v4386
    %v4424 = vsel %vm781, %v4423, %v4293
    %v4425 = vsel %vm4357, %v4424, %v4389
    %v4426 = vsel %vm1834, %v4425, %v4392
    %v4427 = vsel %vm1655, %v4426, %v4395
    %v4428 = vsel %vm1431, %v4427, %v4399
    %v4429 = vsel %vm4362, %v4428, %v4402
    %v4430 = vsel %vm4364, %v4429, %v4406
    %v4431 = vsel %vm4366, %v4430, %v4409
    %v4432 = vsel %vm4368, %v4431, %v4412
    %v4433 = vsel %vm4370, %v4432, %v4415
    %v4434 = vsel %vm555, %v4433, %v4295
    %v4435 = vsel %vm331, %v4434, %v4419
    %4437 = vrot.lane.b32.xlu0 %v4297, 112
    %v4438 = vpop.permute.xlu0 %4437
    %4440 = vrot.lane.b32.xlu0 %v4297, 96
    %v4441 = vpop.permute.xlu0 %4440
    %4443 = vrot.lane.b32.xlu0 %v4297, 80
    %v4444 = vpop.permute.xlu0 %4443
    %4446 = vrot.lane.b32.xlu0 %v4297, 64
    %v4447 = vpop.permute.xlu0 %4446
    %4449 = vrot.lane.b32.xlu0 %v4297, 48
    %v4450 = vpop.permute.xlu0 %4449
    %4453 = vrot.lane.b32.xlu0 %v4298, 32
    %v4454 = vpop.permute.xlu0 %4453
    %4456 = vrot.lane.b32.xlu0 %v4298, 16
    %v4457 = vpop.permute.xlu0 %4456
    %4460 = vrot.lane.b32.xlu0 %v4299, 32
    %v4461 = vpop.permute.xlu0 %4460
    %4463 = vrot.lane.b32.xlu0 %v4299, 16
    %v4464 = vpop.permute.xlu0 %4463
    %4466 = vrot.lane.b32.xlu0 %v4299, 112
    %v4467 = vpop.permute.xlu0 %4466
    %4470 = vrot.lane.b32.xlu0 %v4300, 96
    %v4471 = vpop.permute.xlu0 %4470
    %4473 = vrot.lane.b32.xlu0 %v4300, 80
    %v4474 = vpop.permute.xlu0 %4473
    %4476 = vrot.lane.b32.xlu0 %v4300, 64
    %v4477 = vpop.permute.xlu0 %4476
    %4479 = vrot.lane.b32.xlu0 %v4300, 48
    %v4480 = vpop.permute.xlu0 %4479
    %v4482 = vsel %vm4352, %v4297, %v4438
    %v4483 = vsel %vm1206, %v4482, %v4441
    %v4484 = vsel %vm982, %v4483, %v4444
    %v4485 = vsel %vm781, %v4484, %v4447
    %v4486 = vsel %vm4357, %v4485, %v4450
    %v4487 = vsel %vm1834, %v4486, %v4454
    %v4488 = vsel %vm1655, %v4487, %v4457
    %v4489 = vsel %vm1431, %v4488, %v4461
    %v4490 = vsel %vm4362, %v4489, %v4464
    %v4491 = vsel %vm4364, %v4490, %v4299
    %v4492 = vsel %vm4366, %v4491, %v4467
    %v4493 = vsel %vm4368, %v4492, %v4471
    %v4494 = vsel %vm4370, %v4493, %v4474
    %v4495 = vsel %vm555, %v4494, %v4477
    %v4496 = vsel %vm331, %v4495, %v4480
    %4498 = vrot.lane.b32.xlu0 %v4301, 64
    %v4499 = vpop.permute.xlu0 %4498
    %4501 = vrot.lane.b32.xlu0 %v4301, 48
    %v4502 = vpop.permute.xlu0 %4501
    %4504 = vrot.lane.b32.xlu0 %v4301, 32
    %v4505 = vpop.permute.xlu0 %4504
    %4508 = vrot.lane.b32.xlu0 %v4302, 16
    %v4509 = vpop.permute.xlu0 %4508
    %4511 = vrot.lane.b32.xlu0 %v4302, 112
    %v4512 = vpop.permute.xlu0 %4511
    %4514 = vrot.lane.b32.xlu0 %v4302, 96
    %v4515 = vpop.permute.xlu0 %4514
    %4517 = vrot.lane.b32.xlu0 %v4302, 80
    %v4518 = vpop.permute.xlu0 %4517
    %4521 = vrot.lane.b32.xlu0 %v4303, 96
    %v4522 = vpop.permute.xlu0 %4521
    %4524 = vrot.lane.b32.xlu0 %v4303, 80
    %v4525 = vpop.permute.xlu0 %4524
    %4528 = vrot.lane.b32.xlu0 %v4304, 64
    %v4529 = vpop.permute.xlu0 %4528
    %4531 = vrot.lane.b32.xlu0 %v4304, 48
    %v4532 = vpop.permute.xlu0 %4531
    %4534 = vrot.lane.b32.xlu0 %v4304, 32
    %v4535 = vpop.permute.xlu0 %4534
    %4537 = vrot.lane.b32.xlu0 %v4304, 16
    %v4538 = vpop.permute.xlu0 %4537
    %4541 = vrot.lane.b32.xlu0 %v4305, 112
    %v4542 = vpop.permute.xlu0 %4541
    %v4544 = vsel %vm4352, %v4499, %v4502
    %v4545 = vsel %vm1206, %v4544, %v4505
    %v4546 = vsel %vm982, %v4545, %v4509
    %v4547 = vsel %vm781, %v4546, %v4302
    %v4548 = vsel %vm4357, %v4547, %v4512
    %v4549 = vsel %vm1834, %v4548, %v4515
    %v4550 = vsel %vm1655, %v4549, %v4518
    %v4551 = vsel %vm1431, %v4550, %v4522
    %v4552 = vsel %vm4362, %v4551, %v4525
    %v4553 = vsel %vm4364, %v4552, %v4529
    %v4554 = vsel %vm4366, %v4553, %v4532
    %v4555 = vsel %vm4368, %v4554, %v4535
    %v4556 = vsel %vm4370, %v4555, %v4538
    %v4557 = vsel %vm555, %v4556, %v4304
    %v4558 = vsel %vm331, %v4557, %v4542
    %4562 = vrot.lane.b32.xlu0 %v4373, 120
    %v4563 = vpop.permute.xlu0 %4562
    %4564 = vrot.lane.b32.xlu0 %v4435, 120
    %v4565 = vpop.permute.xlu0 %4564
    %4566 = vrot.lane.b32.xlu0 %v4496, 120
    %v4567 = vpop.permute.xlu0 %4566
    %v4568 = vsel %vm331, %v4563, %v4565
    %v4569 = vsel %vm331, %v4565, %v4567
    %4573 = vrot.lane.b32.xlu0 %v4373, 112
    %v4574 = vpop.permute.xlu0 %4573
    %4575 = vrot.lane.b32.xlu0 %v4435, 112
    %v4576 = vpop.permute.xlu0 %4575
    %4577 = vrot.lane.b32.xlu0 %v4496, 112
    %v4578 = vpop.permute.xlu0 %4577
    %v4579 = vsel %vm555, %v4574, %v4576
    %v4580 = vsel %vm555, %v4576, %v4578
    %4585 = vrot.lane.b32.xlu0 %v4373, 64
    %v4586 = vpop.permute.xlu0 %4585
    %4587 = vrot.lane.b32.xlu0 %v4435, 64
    %v4588 = vpop.permute.xlu0 %4587
    %4589 = vrot.lane.b32.xlu0 %v4496, 64
    %v4590 = vpop.permute.xlu0 %4589
    %4591 = vrot.lane.b32.xlu0 %v4558, 64
    %v4592 = vpop.permute.xlu0 %4591
    %v4593 = vsel %vm1431, %v4586, %v4588
    %v4594 = vsel %vm1431, %v4588, %v4590
    %v4595 = vsel %vm1431, %v4590, %v4592
    %4599 = vrot.lane.b32.xlu0 %v4373, 56
    %v4600 = vpop.permute.xlu0 %4599
    %4601 = vrot.lane.b32.xlu0 %v4435, 56
    %v4602 = vpop.permute.xlu0 %4601
    %4603 = vrot.lane.b32.xlu0 %v4496, 56
    %v4604 = vpop.permute.xlu0 %4603
    %4605 = vrot.lane.b32.xlu0 %v4558, 56
    %v4606 = vpop.permute.xlu0 %4605
    %v4607 = vsel %vm1655, %v4600, %v4602
    %v4608 = vsel %vm1655, %v4602, %v4604
    %v4609 = vsel %vm1655, %v4604, %v4606
    %4613 = vrot.lane.b32.xlu0 %v4373, 48
    %v4614 = vpop.permute.xlu0 %4613
    %4615 = vrot.lane.b32.xlu0 %v4435, 48
    %v4616 = vpop.permute.xlu0 %4615
    %4617 = vrot.lane.b32.xlu0 %v4496, 48
    %v4618 = vpop.permute.xlu0 %4617
    %4619 = vrot.lane.b32.xlu0 %v4558, 48
    %v4620 = vpop.permute.xlu0 %4619
    %v4621 = vsel %vm1834, %v4614, %v4616
    %v4622 = vsel %vm1834, %v4616, %v4618
    %v4623 = vsel %vm1834, %v4618, %v4620
    %4627 = vrot.lane.b32.xlu0 %v4558, 120
    %v4628 = vpop.permute.xlu0 %4627
    %v4629 = vsel %vm331, %v4567, %v4628
    %4632 = vrot.lane.b32.xlu0 %v4558, 112
    %v4633 = vpop.permute.xlu0 %4632
    %v4634 = vsel %vm555, %v4578, %v4633
    %v4637 = vld [vmem:[%s3] sm:$0xf]
    %v4638 = vld [vmem:[%s3 + $0x4] sm:$0xf]
    %v4639 = vpack.c.bf16 %v4568, %v4373
    %v4640 = vpack.c.bf16 %v4569, %v4435
    %v4641 = vpack.c.bf16 %v4567, %v4496
    %v4642 = vpack.c.bf16 %v4593, %v4579
    %v4643 = vpack.c.bf16 %v4594, %v4580
    %v4644 = vpack.c.bf16 %v4595, %v4578
    %v4645 = vpack.c.bf16 %v4621, %v4607
    %v4646 = vpack.c.bf16 %v4622, %v4608
    %v4647 = vpack.c.bf16 %v4623, %v4609
    %v4648 = vpack.c.bf16 %v4629, %v4496
    %v4649 = vpack.c.bf16 %v4628, %v4558
    %v4650 = vpack.c.bf16 %v4580, %v4580
    %v4651 = vpack.c.bf16 %v4634, %v4634
    %v4652 = vpack.c.bf16 %v4633, %v4633
    %v4653 = vld [vmem:[%s4] sm:$0xff]
    %v4654 = vld [vmem:[%s4 + $0x8] sm:$0xff]
    %4656 = vset.pattern.permute.xlu0 0
    %4657 = vperm.xlu0 %4656, %v4653
    %v4658 = vpop.permute.xlu0 %4657
    %4661 = vset.pattern.permute.xlu0 0
    %4662 = vperm.xlu0 %4661, %v4654
    %v4663 = vpop.permute.xlu0 %4662
    %v4667 = vunpack.c.l.b16 %v4637
    %v4668 = vunpack.c.l.b16 %v4638
    %v4669 = vpack.c.b16 %v4668, %v4667
    %v4671 = vsel %vm4362, %v4669, 0
    %v4674 = vsel %vm2058, %v4650, 0
    %v4677 = vsel %vm2058, %v4651, 0
    %v4680 = vsel %vm2058, %v4652, 0
    %4682 = vmatprep.subr.bf16.mxu0 0
    %4683 = vmatpush1.bf16.msra.mxu0 0
    %4684 = vmatprep.subr.bf16.mxu0 0
    %4685 = vmatpush1.bf16.msra.mxu0 0
    %4686 = vmatprep.subr.bf16.mxu0 0
    %4687 = vmatpush1.bf16.msra.mxu0 0
    %4688 = vmatprep.subr.bf16.mxu0 %v4677
    %4689 = vmatpush1.bf16.msra.mxu0 %v4674
    %4690 = vmatprep.subr.bf16.mxu0 %v4648
    %4691 = vmatpush1.bf16.msra.mxu0 %v4640
    %4692 = vmatprep.subr.bf16.mxu0 %v4646
    %4693 = vmatpush1.bf16.msra.mxu0 %v4645
    %4694 = vmatprep.subr.bf16.mxu0 %v4643
    %4695 = vmatpush1.bf16.msra.mxu0 %v4642
    %4696 = vmatprep.subr.bf16.mxu0 %v4640
    %4697 = vmatpush1.bf16.msra.mxu0 %v4639
    %4698 = vmatprep.subr.bf16.mxu0 0
    %4699 = vmatpush2.bf16.msra.mxu0 0
    %4700 = vmatprep.subr.bf16.mxu0 0
    %4701 = vmatpush2.bf16.msra.mxu0 0
    %4702 = vmatprep.subr.bf16.mxu0 0
    %4703 = vmatpush2.bf16.msra.mxu0 0
    %4704 = vmatprep.subr.bf16.mxu0 0
    %4705 = vmatpush2.bf16.msra.mxu0 0
    %4706 = vmatprep.subr.bf16.mxu0 0
    %4707 = vmatpush2.bf16.msra.mxu0 0
    %4708 = vmatprep.subr.bf16.mxu0 0
    %4709 = vmatpush2.bf16.msra.mxu0 0
    %4710 = vmatprep.subr.bf16.mxu0 0
    %4711 = vmatpush2.bf16.msra.mxu0 0
    %4712 = vmatprep.subr.bf16.mxu0 0
    %4713 = vmatpush2.bf16.msra.mxu0 0
    %4714 = vmatprep.mubr.bf16.mxu0 0
    %4715 = vmatmul.mubr.bf16.gmra.mxu0 %v4671
    %v4716 = vpop.f32.mrf.mxu0
    %v4717 = vadd.f32 %v4658, %v4716
    %v4718 = vpop.f32.mrf.mxu0
    %v4719 = vadd.f32 %v4658, %v4718
    %v4720 = vpop.f32.mrf.mxu0
    %v4721 = vadd.f32 %v4663, %v4720
    %v4722 = vpop.f32.mrf.mxu0
    %v4723 = vadd.f32 %v4663, %v4722
    %4724 = vdwg.mxu0
    %4725 = vmatprep.subr.bf16.mxu0 0
    %4726 = vmatpush1.bf16.msra.mxu0 0
    %4727 = vmatprep.subr.bf16.mxu0 0
    %4728 = vmatpush1.bf16.msra.mxu0 0
    %4729 = vmatprep.subr.bf16.mxu0 0
    %4730 = vmatpush1.bf16.msra.mxu0 0
    %4731 = vmatprep.subr.bf16.mxu0 0
    %4732 = vmatpush1.bf16.msra.mxu0 %v4680
    %4733 = vmatprep.subr.bf16.mxu0 0
    %4734 = vmatpush1.bf16.msra.mxu0 %v4649
    %4735 = vmatprep.subr.bf16.mxu0 0
    %4736 = vmatpush1.bf16.msra.mxu0 %v4647
    %4737 = vmatprep.subr.bf16.mxu0 0
    %4738 = vmatpush1.bf16.msra.mxu0 %v4644
    %4739 = vmatprep.subr.bf16.mxu0 0
    %4740 = vmatpush1.bf16.msra.mxu0 %v4641
    %4741 = vmatprep.subr.bf16.mxu0 0
    %4742 = vmatpush2.bf16.msra.mxu0 0
    %4743 = vmatprep.subr.bf16.mxu0 0
    %4744 = vmatpush2.bf16.msra.mxu0 0
    %4745 = vmatprep.subr.bf16.mxu0 0
    %4746 = vmatpush2.bf16.msra.mxu0 0
    %4747 = vmatprep.subr.bf16.mxu0 0
    %4748 = vmatpush2.bf16.msra.mxu0 0
    %4749 = vmatprep.subr.bf16.mxu0 0
    %4750 = vmatpush2.bf16.msra.mxu0 0
    %4751 = vmatprep.subr.bf16.mxu0 0
    %4752 = vmatpush2.bf16.msra.mxu0 0
    %4753 = vmatprep.subr.bf16.mxu0 0
    %4754 = vmatpush2.bf16.msra.mxu0 0
    %4755 = vmatprep.subr.bf16.mxu0 0
    %4756 = vmatpush2.bf16.msra.mxu0 0
    %4757 = vmatprep.mubr.bf16.mxu0 0
    %4758 = vmatmul.mubr.bf16.gmra.mxu0 %v4671
    %v4759 = vpop.f32.mrf.mxu0
    %v4760 = vadd.f32 %v4658, %v4759
    %v4761 = vpop.f32.mrf.mxu0
    %v4762 = vpop.f32.mrf.mxu0
    %v4763 = vadd.f32 %v4663, %v4762
    %v4764 = vpop.f32.mrf.mxu0
    %4765 = vdwg.mxu0
    %v4766 = vmax.f32 %v4717, 0.0
    %v4767 = vmax.f32 %v4719, 0.0
    %v4768 = vmax.f32 %v4760, 0.0
    %v4769 = vmax.f32 %v4721, 0.0
    %v4770 = vmax.f32 %v4723, 0.0
    %v4771 = vmax.f32 %v4763, 0.0
    %4776 = vrot.lane.b32.xlu0 %v4766, 120
    %v4777 = vpop.permute.xlu0 %4776
    %4778 = vrot.lane.b32.xlu0 %v4767, 120
    %v4779 = vpop.permute.xlu0 %4778
    %4780 = vrot.lane.b32.xlu0 %v4769, 120
    %v4781 = vpop.permute.xlu0 %4780
    %4782 = vrot.lane.b32.xlu0 %v4770, 120
    %v4783 = vpop.permute.xlu0 %4782
    %v4784 = vsel %vm331, %v4777, %v4779
    %v4785 = vsel %vm331, %v4781, %v4783
    %v4790 = vmax.f32 %v4766, %v4784
    %v4791 = vmax.f32 %v4767, %v4779
    %v4792 = vmax.f32 %v4769, %v4785
    %v4793 = vmax.f32 %v4770, %v4783
    %4794 = vrot.lane.b32.xlu0 %v4766, 112
    %v4795 = vpop.permute.xlu0 %4794
    %4796 = vrot.lane.b32.xlu0 %v4767, 112
    %v4797 = vpop.permute.xlu0 %4796
    %4798 = vrot.lane.b32.xlu0 %v4769, 112
    %v4799 = vpop.permute.xlu0 %4798
    %4800 = vrot.lane.b32.xlu0 %v4770, 112
    %v4801 = vpop.permute.xlu0 %4800
    %v4802 = vsel %vm555, %v4795, %v4797
    %v4803 = vsel %vm555, %v4799, %v4801
    %v4808 = vmax.f32 %v4790, %v4802
    %v4809 = vmax.f32 %v4791, %v4797
    %v4810 = vmax.f32 %v4792, %v4803
    %v4811 = vmax.f32 %v4793, %v4801
    %4814 = vrot.lane.b32.xlu0 %v4766, 64
    %v4815 = vpop.permute.xlu0 %4814
    %4816 = vrot.lane.b32.xlu0 %v4767, 64
    %v4817 = vpop.permute.xlu0 %4816
    %4818 = vrot.lane.b32.xlu0 %v4768, 64
    %v4819 = vpop.permute.xlu0 %4818
    %4820 = vrot.lane.b32.xlu0 %v4769, 64
    %v4821 = vpop.permute.xlu0 %4820
    %4822 = vrot.lane.b32.xlu0 %v4770, 64
    %v4823 = vpop.permute.xlu0 %4822
    %4824 = vrot.lane.b32.xlu0 %v4771, 64
    %v4825 = vpop.permute.xlu0 %4824
    %v4826 = vsel %vm1431, %v4815, %v4817
    %v4827 = vsel %vm1431, %v4817, %v4819
    %v4828 = vsel %vm1431, %v4821, %v4823
    %v4829 = vsel %vm1431, %v4823, %v4825
    %v4834 = vmax.f32 %v4808, %v4826
    %v4835 = vmax.f32 %v4809, %v4827
    %v4836 = vmax.f32 %v4810, %v4828
    %v4837 = vmax.f32 %v4811, %v4829
    %4838 = vrot.lane.b32.xlu0 %v4766, 56
    %v4839 = vpop.permute.xlu0 %4838
    %4840 = vrot.lane.b32.xlu0 %v4767, 56
    %v4841 = vpop.permute.xlu0 %4840
    %4842 = vrot.lane.b32.xlu0 %v4768, 56
    %v4843 = vpop.permute.xlu0 %4842
    %4844 = vrot.lane.b32.xlu0 %v4769, 56
    %v4845 = vpop.permute.xlu0 %4844
    %4846 = vrot.lane.b32.xlu0 %v4770, 56
    %v4847 = vpop.permute.xlu0 %4846
    %4848 = vrot.lane.b32.xlu0 %v4771, 56
    %v4849 = vpop.permute.xlu0 %4848
    %v4850 = vsel %vm1655, %v4839, %v4841
    %v4851 = vsel %vm1655, %v4841, %v4843
    %v4852 = vsel %vm1655, %v4845, %v4847
    %v4853 = vsel %vm1655, %v4847, %v4849
    %v4858 = vmax.f32 %v4834, %v4850
    %v4859 = vmax.f32 %v4835, %v4851
    %v4860 = vmax.f32 %v4836, %v4852
    %v4861 = vmax.f32 %v4837, %v4853
    %4862 = vrot.lane.b32.xlu0 %v4766, 48
    %v4863 = vpop.permute.xlu0 %4862
    %4864 = vrot.lane.b32.xlu0 %v4767, 48
    %v4865 = vpop.permute.xlu0 %4864
    %4866 = vrot.lane.b32.xlu0 %v4768, 48
    %v4867 = vpop.permute.xlu0 %4866
    %4868 = vrot.lane.b32.xlu0 %v4769, 48
    %v4869 = vpop.permute.xlu0 %4868
    %4870 = vrot.lane.b32.xlu0 %v4770, 48
    %v4871 = vpop.permute.xlu0 %4870
    %4872 = vrot.lane.b32.xlu0 %v4771, 48
    %v4873 = vpop.permute.xlu0 %4872
    %v4874 = vsel %vm1834, %v4863, %v4865
    %v4875 = vsel %vm1834, %v4865, %v4867
    %v4876 = vsel %vm1834, %v4869, %v4871
    %v4877 = vsel %vm1834, %v4871, %v4873
    %v4882 = vmax.f32 %v4858, %v4874
    %v4883 = vmax.f32 %v4859, %v4875
    %v4884 = vmax.f32 %v4860, %v4876
    %v4885 = vmax.f32 %v4861, %v4877
    %v4886 = vmax.f32 %v4882, %v4767
    %v4887 = vmax.f32 %v4883, %v4768
    %v4888 = vmax.f32 %v4884, %v4770
    %v4889 = vmax.f32 %v4885, %v4771
    %4890 = vrot.lane.b32.xlu0 %v4768, 120
    %v4891 = vpop.permute.xlu0 %4890
    %4892 = vrot.lane.b32.xlu0 %v4771, 120
    %v4893 = vpop.permute.xlu0 %4892
    %v4894 = vsel %vm331, %v4779, %v4891
    %v4895 = vsel %vm331, %v4783, %v4893
    %v4900 = vmax.f32 %v4886, %v4894
    %v4901 = vmax.f32 %v4887, %v4891
    %v4902 = vmax.f32 %v4888, %v4895
    %v4903 = vmax.f32 %v4889, %v4893
    %4904 = vrot.lane.b32.xlu0 %v4768, 112
    %v4905 = vpop.permute.xlu0 %4904
    %4906 = vrot.lane.b32.xlu0 %v4771, 112
    %v4907 = vpop.permute.xlu0 %4906
    %v4908 = vsel %vm555, %v4797, %v4905
    %v4909 = vsel %vm555, %v4801, %v4907
    %v4914 = vmax.f32 %v4900, %v4908
    %v4915 = vmax.f32 %v4901, %v4905
    %v4916 = vmax.f32 %v4902, %v4909
    %v4917 = vmax.f32 %v4903, %v4907
    %4920 = vrot.lane.b32.xlu0 %v4914, 104
    %v4921 = vpop.permute.xlu0 %4920
    %4922 = vrot.lane.b32.xlu0 %v4916, 104
    %v4923 = vpop.permute.xlu0 %4922
    %4928 = vrot.lane.b32.xlu0 %v4915, 64
    %v4929 = vpop.permute.xlu0 %4928
    %4930 = vrot.lane.b32.xlu0 %v4917, 64
    %v4931 = vpop.permute.xlu0 %4930
    %4934 = vrot.lane.b32.xlu0 %v4915, 40
    %v4935 = vpop.permute.xlu0 %4934
    %4936 = vrot.lane.b32.xlu0 %v4917, 40
    %v4937 = vpop.permute.xlu0 %4936
    %4940 = vxpose.xlu0.b32.start [1/16] %v4914, 128
    %4941 = vxpose.xlu0.b32.cont [2/16] %v4916, 128
    %4942 = vxpose.xlu0.b32.cont [3/16] %v4921, 128
    %4943 = vxpose.xlu0.b32.cont [4/16] %v4923, 128
    %4944 = vxpose.xlu0.b32.cont [5/16] %v4929, 128
    %4945 = vxpose.xlu0.b32.cont [6/16] %v4931, 128
    %4946 = vxpose.xlu0.b32.cont [7/16] %v4935, 128
    %4947 = vxpose.xlu0.b32.cont [8/16] %v4937, 128
    %4948 = vxpose.xlu0.b32.cont [9/16] 0.0, 128
    %4949 = vxpose.xlu0.b32.cont [10/16] 0.0, 128
    %4950 = vxpose.xlu0.b32.cont [11/16] 0.0, 128
    %4951 = vxpose.xlu0.b32.cont [12/16] 0.0, 128
    %4952 = vxpose.xlu0.b32.cont [13/16] 0.0, 128
    %4953 = vxpose.xlu0.b32.cont [14/16] 0.0, 128
    %4954 = vxpose.xlu0.b32.cont [15/16] 0.0, 128
    %4955 = vxpose.xlu0.b32.end [16/16] 0.0, 128
    %v4956 = vpop.trf.xlu0
    %v4957 = vpop.trf.xlu0
    %v4958 = vpop.trf.xlu0
    %v4959 = vpop.trf.xlu0
    %v4960 = vpop.trf.xlu0
    %v4961 = vpop.trf.xlu0
    %v4962 = vpop.trf.xlu0
    %v4963 = vpop.trf.xlu0
    %v4964 = vpop.trf.xlu0
    %v4965 = vpop.trf.xlu0
    %v4966 = vpop.trf.xlu0
    %v4967 = vpop.trf.xlu0
    %v4968 = vpop.trf.xlu0
    %v4969 = vpop.trf.xlu0
    %v4970 = vpop.trf.xlu0
    %v4971 = vpop.trf.xlu0
    %v4972 = vpack.c.bf16 %v4956, %v4956
    %v4973 = vld [vmem:[#allocation5] sm:$0xff]
    %v4974 = vld [vmem:[#allocation5 + $0x8] sm:$0xff]
    %v4975 = vld [vmem:[#allocation5 + $0x10] sm:$0xff]
    %v4976 = vld [vmem:[#allocation5 + $0x18] sm:$0xff]
    %v4977 = vld [vmem:[#allocation5 + $0x20] sm:$0xff]
    %v4978 = vld [vmem:[#allocation5 + $0x28] sm:$0xff]
    %v4979 = vld [vmem:[#allocation5 + $0x30] sm:$0xff]
    %v4980 = vld [vmem:[#allocation5 + $0x38] sm:$0xff]
    %v4981 = vld [vmem:[%s6] sm:$0x3]
    %v4983 = vlaneseq
    %v4984 = vshrl.u32 %v4983, 7
    %v4985 = vsub.s32 0, %v4984
    %v4986 = vrot.slane %v4981, %v4985
    %v4987 = vlaneseq
    %v4988 = vshrl.u32 %v4987, 7
    %v4989 = vsub.s32 1, %v4988
    %v4990 = vrot.slane %v4981, %v4989
    %v5001 = vunpack.c.l.b16 %v4973
    %v5002 = vunpack.c.h.b16 %v4973
    %v5003 = vunpack.c.l.b16 %v4974
    %v5004 = vunpack.c.h.b16 %v4974
    %v5005 = vunpack.c.l.b16 %v4975
    %v5006 = vunpack.c.h.b16 %v4975
    %v5007 = vunpack.c.l.b16 %v4976
    %v5008 = vunpack.c.h.b16 %v4976
    %v5009 = vunpack.c.l.b16 %v4977
    %v5010 = vunpack.c.h.b16 %v4977
    %v5011 = vunpack.c.l.b16 %v4978
    %v5012 = vunpack.c.h.b16 %v4978
    %v5013 = vunpack.c.l.b16 %v4979
    %v5014 = vunpack.c.h.b16 %v4979
    %v5015 = vunpack.c.l.b16 %v4980
    %v5016 = vunpack.c.h.b16 %v4980
    %v5017 = vpack.c.b16 %v5003, %v5001
    %v5018 = vpack.c.b16 %v5004, %v5002
    %v5019 = vpack.c.b16 %v5007, %v5005
    %v5020 = vpack.c.b16 %v5008, %v5006
    %v5021 = vpack.c.b16 %v5011, %v5009
    %v5022 = vpack.c.b16 %v5012, %v5010
    %v5023 = vpack.c.b16 %v5015, %v5013
    %v5024 = vpack.c.b16 %v5016, %v5014
    %v5034 = vsel %vm1431, %v4972, 0
    %5036 = vmatprep.subr.bf16.mxu0 0
    %5037 = vmatpush1.bf16.msra.mxu0 0
    %5038 = vmatprep.subr.bf16.mxu0 0
    %5039 = vmatpush1.bf16.msra.mxu0 0
    %5040 = vmatprep.subr.bf16.mxu0 0
    %5041 = vmatpush1.bf16.msra.mxu0 0
    %5042 = vmatprep.subr.bf16.mxu0 0
    %5043 = vmatpush1.bf16.msra.mxu0 0
    %5044 = vmatprep.subr.bf16.mxu0 %v5024
    %5045 = vmatpush1.bf16.msra.mxu0 %v5023
    %5046 = vmatprep.subr.bf16.mxu0 %v5022
    %5047 = vmatpush1.bf16.msra.mxu0 %v5021
    %5048 = vmatprep.subr.bf16.mxu0 %v5020
    %5049 = vmatpush1.bf16.msra.mxu0 %v5019
    %5050 = vmatprep.subr.bf16.mxu0 %v5018
    %5051 = vmatpush1.bf16.msra.mxu0 %v5017
    %5052 = vmatprep.subr.bf16.mxu0 0
    %5053 = vmatpush2.bf16.msra.mxu0 0
    %5054 = vmatprep.subr.bf16.mxu0 0
    %5055 = vmatpush2.bf16.msra.mxu0 0
    %5056 = vmatprep.subr.bf16.mxu0 0
    %5057 = vmatpush2.bf16.msra.mxu0 0
    %5058 = vmatprep.subr.bf16.mxu0 0
    %5059 = vmatpush2.bf16.msra.mxu0 0
    %5060 = vmatprep.subr.bf16.mxu0 0
    %5061 = vmatpush2.bf16.msra.mxu0 0
    %5062 = vmatprep.subr.bf16.mxu0 0
    %5063 = vmatpush2.bf16.msra.mxu0 0
    %5064 = vmatprep.subr.bf16.mxu0 0
    %5065 = vmatpush2.bf16.msra.mxu0 0
    %5066 = vmatprep.subr.bf16.mxu0 0
    %5067 = vmatpush2.bf16.msra.mxu0 0
    %5068 = vmatprep.mubr.bf16.mxu0 0
    %5069 = vmatmul.mubr.bf16.gmra.mxu0 %v5034
    %v5070 = vpop.f32.mrf.mxu0
    %v5071 = vadd.f32 %v4986, %v5070
    %v5072 = vpop.f32.mrf.mxu0
    %v5073 = vadd.f32 %v4990, %v5072
    %v5074 = vpop.f32.mrf.mxu0
    %v5075 = vpop.f32.mrf.mxu0
    %5076 = vdwg.mxu0
    %v5077 = vmax.f32 %v5071, 0.0
    %v5078 = vmax.f32 %v5073, 0.0
    %v5079 = vpack.c.bf16 %v5077, %v5077
    %v5080 = vpack.c.bf16 %v5078, %v5078
    %v5081 = vld [vmem:[#allocation7] sm:$0xf]
    %v5082 = vld [vmem:[#allocation7 + $0x4] sm:$0xf]
    %v5083 = vld [vmem:[#allocation7 + $0x8] sm:$0xf]
    %v5084 = vld [vmem:[#allocation7 + $0xc] sm:$0xf]
    %v5085 = vld [vmem:[#allocation7 + $0x10] sm:$0xf]
    %v5086 = vld [vmem:[#allocation7 + $0x14] sm:$0xf]
    %v5087 = vld [vmem:[#allocation7 + $0x18] sm:$0xf]
    %v5088 = vld [vmem:[#allocation7 + $0x1c] sm:$0xf]
    %v5089 = vld [vmem:[#allocation7 + $0x20] sm:$0xf]
    %v5090 = vld [vmem:[#allocation7 + $0x24] sm:$0xf]
    %v5091 = vld [vmem:[#allocation7 + $0x28] sm:$0xf]
    %v5092 = vld [vmem:[#allocation7 + $0x2c] sm:$0xf]
    %v5093 = vld [vmem:[#allocation7 + $0x30] sm:$0xf]
    %v5094 = vld [vmem:[#allocation7 + $0x34] sm:$0xf]
    %v5095 = vld [vmem:[#allocation7 + $0x38] sm:$0xf]
    %v5096 = vld [vmem:[#allocation7 + $0x3c] sm:$0xf]
    %v5097 = vld [vmem:[#allocation7 + $0x40] sm:$0xf]
    %v5098 = vld [vmem:[#allocation7 + $0x44] sm:$0xf]
    %v5099 = vld [vmem:[#allocation7 + $0x48] sm:$0xf]
    %v5100 = vld [vmem:[#allocation7 + $0x4c] sm:$0xf]
    %v5101 = vld [vmem:[#allocation7 + $0x50] sm:$0xf]
    %v5102 = vld [vmem:[#allocation7 + $0x54] sm:$0xf]
    %v5103 = vld [vmem:[#allocation7 + $0x58] sm:$0xf]
    %v5104 = vld [vmem:[#allocation7 + $0x5c] sm:$0xf]
    %v5105 = vld [vmem:[#allocation7 + $0x60] sm:$0xf]
    %v5106 = vld [vmem:[#allocation7 + $0x64] sm:$0xf]
    %v5107 = vld [vmem:[#allocation7 + $0x68] sm:$0xf]
    %v5108 = vld [vmem:[#allocation7 + $0x6c] sm:$0xf]
    %v5109 = vld [vmem:[#allocation7 + $0x70] sm:$0xf]
    %v5110 = vld [vmem:[#allocation7 + $0x74] sm:$0xf]
    %v5111 = vld [vmem:[#allocation7 + $0x78] sm:$0xf]
    %v5112 = vld [vmem:[#allocation7 + $0x7c] sm:$0xf]
    %v5113 = vld [vmem:[%s8] sm:$0x1]
    %v5115 = vlaneseq
    %v5116 = vshrl.u32 %v5115, 7
    %v5117 = vsub.s32 0, %v5116
    %v5118 = vrot.slane %v5113, %v5117
    %v5152 = vunpack.c.l.b16 %v5081
    %v5153 = vunpack.c.l.b16 %v5082
    %v5154 = vunpack.c.l.b16 %v5083
    %v5155 = vunpack.c.l.b16 %v5084
    %v5156 = vunpack.c.l.b16 %v5085
    %v5157 = vunpack.c.l.b16 %v5086
    %v5158 = vunpack.c.l.b16 %v5087
    %v5159 = vunpack.c.l.b16 %v5088
    %v5160 = vunpack.c.l.b16 %v5089
    %v5161 = vunpack.c.l.b16 %v5090
    %v5162 = vunpack.c.l.b16 %v5091
    %v5163 = vunpack.c.l.b16 %v5092
    %v5164 = vunpack.c.l.b16 %v5093
    %v5165 = vunpack.c.l.b16 %v5094
    %v5166 = vunpack.c.l.b16 %v5095
    %v5167 = vunpack.c.l.b16 %v5096
    %v5168 = vunpack.c.l.b16 %v5097
    %v5169 = vunpack.c.l.b16 %v5098
    %v5170 = vunpack.c.l.b16 %v5099
    %v5171 = vunpack.c.l.b16 %v5100
    %v5172 = vunpack.c.l.b16 %v5101
    %v5173 = vunpack.c.l.b16 %v5102
    %v5174 = vunpack.c.l.b16 %v5103
    %v5175 = vunpack.c.l.b16 %v5104
    %v5176 = vunpack.c.l.b16 %v5105
    %v5177 = vunpack.c.l.b16 %v5106
    %v5178 = vunpack.c.l.b16 %v5107
    %v5179 = vunpack.c.l.b16 %v5108
    %v5180 = vunpack.c.l.b16 %v5109
    %v5181 = vunpack.c.l.b16 %v5110
    %v5182 = vunpack.c.l.b16 %v5111
    %v5183 = vunpack.c.l.b16 %v5112
    %v5184 = vpack.c.b16 %v5153, %v5152
    %v5185 = vpack.c.b16 %v5155, %v5154
    %v5186 = vpack.c.b16 %v5157, %v5156
    %v5187 = vpack.c.b16 %v5159, %v5158
    %v5188 = vpack.c.b16 %v5161, %v5160
    %v5189 = vpack.c.b16 %v5163, %v5162
    %v5190 = vpack.c.b16 %v5165, %v5164
    %v5191 = vpack.c.b16 %v5167, %v5166
    %v5192 = vpack.c.b16 %v5169, %v5168
    %v5193 = vpack.c.b16 %v5171, %v5170
    %v5194 = vpack.c.b16 %v5173, %v5172
    %v5195 = vpack.c.b16 %v5175, %v5174
    %v5196 = vpack.c.b16 %v5177, %v5176
    %v5197 = vpack.c.b16 %v5179, %v5178
    %v5198 = vpack.c.b16 %v5181, %v5180
    %v5199 = vpack.c.b16 %v5183, %v5182
    %5216 = vmatprep.subr.bf16.mxu0 0
    %5217 = vmatpush1.bf16.msra.mxu0 %v5191
    %5218 = vmatprep.subr.bf16.mxu0 0
    %5219 = vmatpush1.bf16.msra.mxu0 %v5190
    %5220 = vmatprep.subr.bf16.mxu0 0
    %5221 = vmatpush1.bf16.msra.mxu0 %v5189
    %5222 = vmatprep.subr.bf16.mxu0 0
    %5223 = vmatpush1.bf16.msra.mxu0 %v5188
    %5224 = vmatprep.subr.bf16.mxu0 0
    %5225 = vmatpush1.bf16.msra.mxu0 %v5187
    %5226 = vmatprep.subr.bf16.mxu0 0
    %5227 = vmatpush1.bf16.msra.mxu0 %v5186
    %5228 = vmatprep.subr.bf16.mxu0 0
    %5229 = vmatpush1.bf16.msra.mxu0 %v5185
    %5230 = vmatprep.subr.bf16.mxu0 0
    %5231 = vmatpush1.bf16.msra.mxu0 %v5184
    %5232 = vmatprep.subr.bf16.mxu0 0
    %5233 = vmatpush2.bf16.msra.mxu0 %v5199
    %5234 = vmatprep.subr.bf16.mxu0 0
    %5235 = vmatpush2.bf16.msra.mxu0 %v5198
    %5236 = vmatprep.subr.bf16.mxu0 0
    %5237 = vmatpush2.bf16.msra.mxu0 %v5197
    %5238 = vmatprep.subr.bf16.mxu0 0
    %5239 = vmatpush2.bf16.msra.mxu0 %v5196
    %5240 = vmatprep.subr.bf16.mxu0 0
    %5241 = vmatpush2.bf16.msra.mxu0 %v5195
    %5242 = vmatprep.subr.bf16.mxu0 0
    %5243 = vmatpush2.bf16.msra.mxu0 %v5194
    %5244 = vmatprep.subr.bf16.mxu0 0
    %5245 = vmatpush2.bf16.msra.mxu0 %v5193
    %5246 = vmatprep.subr.bf16.mxu0 0
    %5247 = vmatpush2.bf16.msra.mxu0 %v5192
    %5248 = vmatprep.mubr.bf16.mxu0 %v5080
    %5249 = vmatmul.mubr.bf16.gmra.mxu0 %v5079
    %v5250 = vpop.f32.mrf.mxu0
    %v5251 = vadd.f32 %v5118, %v5250
    %v5252 = vpop.f32.mrf.mxu0
    %v5253 = vpop.f32.mrf.mxu0
    %v5254 = vpop.f32.mrf.mxu0
    %5255 = vdwg.mxu0
    %v5256 = vmax.f32 %v5251, 0.0
    %v5257 = vpack.c.bf16 %v5256, %v5256
    %v5258 = vld [vmem:[#allocation8] sm:$0xf]
    %v5259 = vld [vmem:[#allocation8 + $0x4] sm:$0xf]
    %v5260 = vld [vmem:[#allocation8 + $0x8] sm:$0xf]
    %v5261 = vld [vmem:[#allocation8 + $0xc] sm:$0xf]
    %v5262 = vld [vmem:[#allocation8 + $0x10] sm:$0xf]
    %v5263 = vld [vmem:[#allocation8 + $0x14] sm:$0xf]
    %v5264 = vld [vmem:[#allocation8 + $0x18] sm:$0xf]
    %v5265 = vld [vmem:[#allocation8 + $0x1c] sm:$0xf]
    %v5266 = vld [vmem:[#allocation8 + $0x20] sm:$0xf]
    %v5267 = vld [vmem:[#allocation8 + $0x24] sm:$0xf]
    %v5268 = vld [vmem:[#allocation8 + $0x28] sm:$0xf]
    %v5269 = vld [vmem:[#allocation8 + $0x2c] sm:$0xf]
    %v5270 = vld [vmem:[#allocation8 + $0x30] sm:$0xf]
    %v5271 = vld [vmem:[#allocation8 + $0x34] sm:$0xf]
    %v5272 = vld [vmem:[#allocation8 + $0x38] sm:$0xf]
    %v5273 = vld [vmem:[#allocation8 + $0x3c] sm:$0xf]
    %v5274 = vld [vmem:[%s10] sm:$0x1]
    %v5276 = vlaneseq
    %v5277 = vshrl.u32 %v5276, 7
    %v5278 = vsub.s32 0, %v5277
    %v5279 = vrot.slane %v5274, %v5278
    %v5297 = vunpack.c.l.b16 %v5258
    %v5298 = vunpack.c.l.b16 %v5259
    %v5299 = vunpack.c.l.b16 %v5260
    %v5300 = vunpack.c.l.b16 %v5261
    %v5301 = vunpack.c.l.b16 %v5262
    %v5302 = vunpack.c.l.b16 %v5263
    %v5303 = vunpack.c.l.b16 %v5264
    %v5304 = vunpack.c.l.b16 %v5265
    %v5305 = vunpack.c.l.b16 %v5266
    %v5306 = vunpack.c.l.b16 %v5267
    %v5307 = vunpack.c.l.b16 %v5268
    %v5308 = vunpack.c.l.b16 %v5269
    %v5309 = vunpack.c.l.b16 %v5270
    %v5310 = vunpack.c.l.b16 %v5271
    %v5311 = vunpack.c.l.b16 %v5272
    %v5312 = vunpack.c.l.b16 %v5273
    %v5313 = vpack.c.b16 %v5298, %v5297
    %v5314 = vpack.c.b16 %v5300, %v5299
    %v5315 = vpack.c.b16 %v5302, %v5301
    %v5316 = vpack.c.b16 %v5304, %v5303
    %v5317 = vpack.c.b16 %v5306, %v5305
    %v5318 = vpack.c.b16 %v5308, %v5307
    %v5319 = vpack.c.b16 %v5310, %v5309
    %v5320 = vpack.c.b16 %v5312, %v5311
    %5329 = vmatprep.subr.bf16.mxu0 0
    %5330 = vmatpush1.bf16.msra.mxu0 %v5320
    %5331 = vmatprep.subr.bf16.mxu0 0
    %5332 = vmatpush1.bf16.msra.mxu0 %v5319
    %5333 = vmatprep.subr.bf16.mxu0 0
    %5334 = vmatpush1.bf16.msra.mxu0 %v5318
    %5335 = vmatprep.subr.bf16.mxu0 0
    %5336 = vmatpush1.bf16.msra.mxu0 %v5317
    %5337 = vmatprep.subr.bf16.mxu0 0
    %5338 = vmatpush1.bf16.msra.mxu0 %v5316
    %5339 = vmatprep.subr.bf16.mxu0 0
    %5340 = vmatpush1.bf16.msra.mxu0 %v5315
    %5341 = vmatprep.subr.bf16.mxu0 0
    %5342 = vmatpush1.bf16.msra.mxu0 %v5314
    %5343 = vmatprep.subr.bf16.mxu0 0
    %5344 = vmatpush1.bf16.msra.mxu0 %v5313
    %5345 = vmatprep.subr.bf16.mxu0 0
    %5346 = vmatpush2.bf16.msra.mxu0 0
    %5347 = vmatprep.subr.bf16.mxu0 0
    %5348 = vmatpush2.bf16.msra.mxu0 0
    %5349 = vmatprep.subr.bf16.mxu0 0
    %5350 = vmatpush2.bf16.msra.mxu0 0
    %5351 = vmatprep.subr.bf16.mxu0 0
    %5352 = vmatpush2.bf16.msra.mxu0 0
    %5353 = vmatprep.subr.bf16.mxu0 0
    %5354 = vmatpush2.bf16.msra.mxu0 0
    %5355 = vmatprep.subr.bf16.mxu0 0
    %5356 = vmatpush2.bf16.msra.mxu0 0
    %5357 = vmatprep.subr.bf16.mxu0 0
    %5358 = vmatpush2.bf16.msra.mxu0 0
    %5359 = vmatprep.subr.bf16.mxu0 0
    %5360 = vmatpush2.bf16.msra.mxu0 0
    %5361 = vmatprep.mubr.bf16.mxu0 0
    %5362 = vmatmul.mubr.bf16.gmra.mxu0 %v5257
    %v5363 = vpop.f32.mrf.mxu0
    %v5364 = vadd.f32 %v5279, %v5363
    %v5365 = vpop.f32.mrf.mxu0
    %v5366 = vpop.f32.mrf.mxu0
    %v5367 = vpop.f32.mrf.mxu0
    %5368 = vdwg.mxu0
    %5369 = vst [vmem:[#allocation10] sm:$0xff] %v5364
    // Predicated region
    $region62: #{tpu_custom_call.1} parent=1 // pred_check
      _
    $region63: #{tpu_custom_call.1} parent=1 // pred_check_branch
      %5371 = sbr.rel (0) target = $region65
    $region64: #{tpu_custom_call.1} parent=1 // pred_region
      %s5373 = ssub.s32 128, 128
      %5374 = vsyncadd [#allocation4], %s5373
      %s5376 = sshll.u32 [#allocation10], 4
      %s5377 = int_to_ptr.vmem [resolvable:$true] %s5376
      %5379 = dma.vmem_to_hbm [thread:$0]  %s5377, 128, %s11, [#allocation4]
    $region65: #{tpu_custom_call.1} parent=1 // pred_fallthru
      _
    // Predicated region
    $region66: #{tpu_custom_call.1} parent=1 // pred_check
      _
    $region67: #{tpu_custom_call.1} parent=1 // pred_check_branch
      %5381 = sbr.rel (0) target = $region69
    $region68: #{tpu_custom_call.1} parent=1 // pred_region
      %5382 = dma.done [#allocation4], 128
    $region69: #{tpu_custom_call.1} parent=1 // pred_fallthru
      _
    %5383 = vsyncpa [#allocation3], 1
    %5384 = vsyncpa [#allocation6], 1
    %5385 = vsyncpa [#allocation9], 1
    %5386 = vsyncpa [#allocation4], 1

</llo_original>
